<compile_context>
chip_gen: v5e
topology: v5e:2x2
jax: 0.10.0
libtpu: 0.0.40
codegen_flags: <defaults>
</compile_context>

<pallas_src>
import functools

import jax
import jax.numpy as jnp
from jax.experimental import pallas as pl


# Small, module-consistent shapes.
BATCH = 2
STUDENT_HIDDEN = 32   # student_hidden_size
HIDDEN = 32           # hidden_size
NUM_QUESTIONS = 64    # num_questions (small stand-in for 7652)
NUM_ATOMS = 51        # keep the C51 atom count


def _precise_dot(a, b, dims):
    """dot_general that stays ~f32-accurate even if the matmul path rounds its
    inputs to bf16: split `a` into a bf16-exact head plus the small residual
    and accumulate two MXU passes (`b` is an exact 0/1 indicator, so only `a`
    needs the split).  Under an exact-f32 matmul this is numerically a no-op.
    """
    a_hi = a.astype(jnp.bfloat16).astype(jnp.float32)
    a_lo = a - a_hi
    hi = jax.lax.dot_general(a_hi, b, dims, preferred_element_type=jnp.float32)
    lo = jax.lax.dot_general(a_lo, b, dims, preferred_element_type=jnp.float32)
    return hi + lo


def _actor_kernel(obs_ref, w1_ref, b1_ref, w2_ref, b2_ref, out_ref, *, num_atoms):
    """Single-shot fused forward of AllKCC51Actor.

    obs_ref : (B, S)      w1_ref : (S, H)      b1_ref : (1, H)
    w2_ref  : (H, Q*A)    b2_ref : (1, Q*A)    out_ref: (B, Q*A)
    """
    qa = out_ref.shape[1]
    na = num_atoms
    nq = qa // na

    # Layer 1: relu(obs @ W1 + b1) -> (B, H)
    h = jnp.dot(obs_ref[...], w1_ref[...], preferred_element_type=jnp.float32)
    h = jnp.maximum(h + b1_ref[...], 0.0)

    # Layer 2: ONE fused, lane-dense matmul over every question*atom column,
    # then relu (matches the reference's F.relu before softmax).
    x = jnp.dot(h, w2_ref[...], preferred_element_type=jnp.float32)
    x = jnp.maximum(x + b2_ref[...], 0.0)                      # (B, Q*A)

    # Grouped softmax over each question's contiguous A atoms WITHOUT reshaping
    # the lane axis (Mosaic-unfriendly 51-wide split).  Subtracting the per-row
    # global max — a constant within every group — keeps exp() stable and
    # leaves each group's softmax mathematically unchanged.
    m = jnp.max(x, axis=-1, keepdims=True)                     # (B, 1)
    e = jnp.exp(x - m)                                         # (B, Q*A)

    # Block-diagonal 0/1 indicator G[q, i] = (i // A == q), built on-chip
    # (avoids an extra HBM operand; only cheap iota/compare VPU work).
    col = jax.lax.broadcasted_iota(jnp.int32, (nq, qa), 1)
    base = jax.lax.broadcasted_iota(jnp.int32, (nq, qa), 0) * na
    g = jnp.where(jnp.logical_and(col >= base, col < base + na), 1.0, 0.0)

    # Per-question denominators: (B, Q*A) . (Q, Q*A)^T -> (B, Q)
    gsum = _precise_dot(e, g, (((1,), (1,)), ((), ())))
    inv = pl.reciprocal(gsum, approx=True)
    inv = inv * (2.0 - gsum * inv)        # one Newton step -> ~f32 accuracy
    # Broadcast 1/sum back to every atom column: (B, Q) @ (Q, Q*A) -> (B, Q*A)
    inv_full = _precise_dot(inv, g, (((1,), (0,)), ((), ())))

    out_ref[...] = e * inv_full


def all_kc_c51_actor_forward(obs, w1, b1, w2, b2, *, num_atoms=NUM_ATOMS):
    """Pallas forward of AllKCC51Actor.

    obs: (B, S) f32
    w1:  (S, H) f32, b1: (H,) f32
    w2:  (H, Q*A) f32 (column index = q*A + a), b2: (Q*A,) f32
    returns: (B, Q, A) f32, softmax over the atom axis A.
    """
    batch = obs.shape[0]
    hidden = w1.shape[1]
    qa = w2.shape[1]
    num_q = qa // num_atoms

    # No grid: the entire problem (~0.5 MB of operands) fits comfortably in
    # VMEM on v5e/v6e/v7x, so every operand/result is one full-array VMEM
    # block and there is zero per-step pipeline overhead.
    out_flat = pl.pallas_call(
        functools.partial(_actor_kernel, num_atoms=num_atoms),
        out_shape=jax.ShapeDtypeStruct((batch, qa), jnp.float32),
    )(obs, w1, b1.reshape(1, hidden), w2, b2.reshape(1, qa))

    # Free metadata reshape back to the PyTorch (B, Q, A) convention.
    return out_flat.reshape(batch, num_q, num_atoms)


def reference_forward(obs, w1, b1, w2, b2, num_q, num_atoms):
    h = jnp.maximum(obs @ w1 + b1, 0.0)
    x = jnp.maximum(h @ w2 + b2, 0.0)
    x = x.reshape(obs.shape[0], num_q, num_atoms)
    return jax.nn.softmax(x, axis=2)


if __name__ == "__main__":
    key = jax.random.PRNGKey(0)
    k_obs, k_w1, k_b1, k_w2, k_b2 = jax.random.split(key, 5)

    obs = jax.random.normal(k_obs, (BATCH, STUDENT_HIDDEN), dtype=jnp.float32)

    # Deterministic synthetic parameters (nn.Linear weights, stored pre-transposed).
    w1 = 0.1 * jax.random.normal(k_w1, (STUDENT_HIDDEN, HIDDEN), dtype=jnp.float32)
    b1 = 0.1 * jax.random.normal(k_b1, (HIDDEN,), dtype=jnp.float32)
    w2 = 0.1 * jax.random.normal(
        k_w2, (HIDDEN, NUM_QUESTIONS * NUM_ATOMS), dtype=jnp.float32)
    b2 = 0.1 * jax.random.normal(k_b2, (NUM_QUESTIONS * NUM_ATOMS,), dtype=jnp.float32)

    out = all_kc_c51_actor_forward(obs, w1, b1, w2, b2)
    out = jax.block_until_ready(out)

    ref = reference_forward(obs, w1, b1, w2, b2, NUM_QUESTIONS, NUM_ATOMS)
    assert out.shape == (BATCH, NUM_QUESTIONS, NUM_ATOMS)
    assert jnp.allclose(out, ref, atol=1e-5, rtol=1e-5), "mismatch vs reference"
    assert jnp.allclose(out.sum(axis=2), 1.0, atol=1e-5), "softmax does not normalize"

    # TODO(synk): the PyTorch forward also returns `state` unchanged; that
    # passthrough has no kernel work and is omitted here.
    print("KERNEL_OK")
</pallas_src>

<mosaic_0001>
module attributes {stable_mosaic.version = 11 : i64} {
  func.func @_actor_kernel(%arg0: memref<2x32xf32, #tpu.memory_space<vmem>>, %arg1: memref<32x32xf32, #tpu.memory_space<vmem>>, %arg2: memref<1x32xf32, #tpu.memory_space<vmem>>, %arg3: memref<32x3264xf32, #tpu.memory_space<vmem>>, %arg4: memref<1x3264xf32, #tpu.memory_space<vmem>>, %arg5: memref<2x3264xf32, #tpu.memory_space<vmem>>) attributes {dimension_semantics = [], scalar_prefetch = 0 : i64, scratch_operands = 0 : i64, tpu.core_type = #tpu.core_type<tc>} {
    %c0 = arith.constant 0 : index
    %c0_0 = arith.constant 0 : index
    %0 = vector.load %arg0[%c0, %c0_0] : memref<2x32xf32, #tpu.memory_space<vmem>>, vector<2x32xf32>
    %c0_1 = arith.constant 0 : index
    %c0_2 = arith.constant 0 : index
    %1 = vector.load %arg1[%c0_1, %c0_2] : memref<32x32xf32, #tpu.memory_space<vmem>>, vector<32x32xf32>
    %cst = arith.constant dense<0.000000e+00> : vector<2x32xf32>
    %2 = tpu.matmul %0, %1, %cst {dimension_numbers = #tpu.dot_dimension_numbers<[1], [0], [0], [1], [0, 0, 1, 1], [], []>} : vector<2x32xf32>, vector<32x32xf32>, vector<2x32xf32> -> vector<2x32xf32>
    %c0_3 = arith.constant 0 : index
    %c0_4 = arith.constant 0 : index
    %3 = vector.load %arg2[%c0_3, %c0_4] : memref<1x32xf32, #tpu.memory_space<vmem>>, vector<1x32xf32>
    %4 = vector.broadcast %3 : vector<1x32xf32> to vector<2x32xf32>
    %5 = arith.addf %2, %4 : vector<2x32xf32>
    %cst_5 = arith.constant 0.000000e+00 : f32
    %6 = vector.broadcast %cst_5 : f32 to vector<2x32xf32>
    %7 = arith.maximumf %5, %6 : vector<2x32xf32>
    %c0_6 = arith.constant 0 : index
    %c0_7 = arith.constant 0 : index
    %8 = vector.load %arg3[%c0_6, %c0_7] : memref<32x3264xf32, #tpu.memory_space<vmem>>, vector<32x3264xf32>
    %cst_8 = arith.constant dense<0.000000e+00> : vector<2x3264xf32>
    %9 = tpu.matmul %7, %8, %cst_8 {dimension_numbers = #tpu.dot_dimension_numbers<[1], [0], [0], [1], [0, 0, 1, 1], [], []>} : vector<2x32xf32>, vector<32x3264xf32>, vector<2x3264xf32> -> vector<2x3264xf32>
    %c0_9 = arith.constant 0 : index
    %c0_10 = arith.constant 0 : index
    %10 = vector.load %arg4[%c0_9, %c0_10] : memref<1x3264xf32, #tpu.memory_space<vmem>>, vector<1x3264xf32>
    %11 = vector.broadcast %10 : vector<1x3264xf32> to vector<2x3264xf32>
    %12 = arith.addf %9, %11 : vector<2x3264xf32>
    %cst_11 = arith.constant 0.000000e+00 : f32
    %13 = vector.broadcast %cst_11 : f32 to vector<2x3264xf32>
    %14 = arith.maximumf %12, %13 : vector<2x3264xf32>
    %cst_12 = arith.constant dense<0xFF800000> : vector<2xf32>
    %15 = vector.multi_reduction <maximumf>, %14, %cst_12 [1] : vector<2x3264xf32> to vector<2xf32>
    %16 = vector.shape_cast %15 : vector<2xf32> to vector<2x1xf32>
    %17 = vector.broadcast %16 : vector<2x1xf32> to vector<2x3264xf32>
    %18 = arith.subf %14, %17 : vector<2x3264xf32>
    %19 = math.exp %18 : vector<2x3264xf32>
    %20 = tpu.iota {dimensions = array<i32: 1>} : vector<64x3264xi32>
    %21 = tpu.iota {dimensions = array<i32: 0>} : vector<64x3264xi32>
    %c51_i32 = arith.constant 51 : i32
    %22 = vector.broadcast %c51_i32 : i32 to vector<64x3264xi32>
    %23 = arith.muli %21, %22 : vector<64x3264xi32>
    %24 = arith.cmpi sge, %20, %23 : vector<64x3264xi32>
    %c51_i32_13 = arith.constant 51 : i32
    %25 = vector.broadcast %c51_i32_13 : i32 to vector<64x3264xi32>
    %26 = arith.addi %23, %25 : vector<64x3264xi32>
    %27 = arith.cmpi slt, %20, %26 : vector<64x3264xi32>
    %28 = arith.andi %24, %27 : vector<64x3264xi1>
    %cst_14 = arith.constant 1.000000e+00 : f32
    %cst_15 = arith.constant 0.000000e+00 : f32
    %29 = vector.broadcast %cst_14 : f32 to vector<64x3264xf32>
    %30 = vector.broadcast %cst_15 : f32 to vector<64x3264xf32>
    %31 = arith.select %28, %29, %30 : vector<64x3264xi1>, vector<64x3264xf32>
    %32 = arith.truncf %19 : vector<2x3264xf32> to vector<2x3264xbf16>
    %33 = arith.extf %32 : vector<2x3264xbf16> to vector<2x3264xf32>
    %34 = arith.subf %19, %33 : vector<2x3264xf32>
    %cst_16 = arith.constant dense<0.000000e+00> : vector<2x64xf32>
    %35 = tpu.matmul %33, %31, %cst_16 {dimension_numbers = #tpu.dot_dimension_numbers<[1], [1], [0], [0], [0, 0, 1, 0], [], []>} : vector<2x3264xf32>, vector<64x3264xf32>, vector<2x64xf32> -> vector<2x64xf32>
    %cst_17 = arith.constant dense<0.000000e+00> : vector<2x64xf32>
    %36 = tpu.matmul %34, %31, %cst_17 {dimension_numbers = #tpu.dot_dimension_numbers<[1], [1], [0], [0], [0, 0, 1, 0], [], []>} : vector<2x3264xf32>, vector<64x3264xf32>, vector<2x64xf32> -> vector<2x64xf32>
    %37 = arith.addf %35, %36 : vector<2x64xf32>
    %38 = tpu.reciprocal %37 {approx = true} : vector<2x64xf32> -> vector<2x64xf32>
    %39 = arith.mulf %37, %38 : vector<2x64xf32>
    %cst_18 = arith.constant 2.000000e+00 : f32
    %40 = vector.broadcast %cst_18 : f32 to vector<2x64xf32>
    %41 = arith.subf %40, %39 : vector<2x64xf32>
    %42 = arith.mulf %38, %41 : vector<2x64xf32>
    %43 = arith.truncf %42 : vector<2x64xf32> to vector<2x64xbf16>
    %44 = arith.extf %43 : vector<2x64xbf16> to vector<2x64xf32>
    %45 = arith.subf %42, %44 : vector<2x64xf32>
    %cst_19 = arith.constant dense<0.000000e+00> : vector<2x3264xf32>
    %46 = tpu.matmul %44, %31, %cst_19 {dimension_numbers = #tpu.dot_dimension_numbers<[1], [0], [0], [1], [0, 0, 1, 1], [], []>} : vector<2x64xf32>, vector<64x3264xf32>, vector<2x3264xf32> -> vector<2x3264xf32>
    %cst_20 = arith.constant dense<0.000000e+00> : vector<2x3264xf32>
    %47 = tpu.matmul %45, %31, %cst_20 {dimension_numbers = #tpu.dot_dimension_numbers<[1], [0], [0], [1], [0, 0, 1, 1], [], []>} : vector<2x64xf32>, vector<64x3264xf32>, vector<2x3264xf32> -> vector<2x3264xf32>
    %48 = arith.addf %46, %47 : vector<2x3264xf32>
    %49 = arith.mulf %19, %48 : vector<2x3264xf32>
    %c0_21 = arith.constant 0 : index
    %c0_22 = arith.constant 0 : index
    %50 = vector.load %arg5[%c0_21, %c0_22] : memref<2x3264xf32, #tpu.memory_space<vmem>>, vector<2x3264xf32>
    tpu.vector_store %arg5[%c0_21, %c0_22], %49 {strides = array<i32>} : memref<2x3264xf32, #tpu.memory_space<vmem>>, vector<2x3264xf32>,
    return
  }
}

</mosaic_0001>

<llo_original>
// kernel: tpu_custom_call.1
$region0: #{tpu_custom_call.1}
  #allocation0 [shape = 'u32[]', space=smem, size = 0x4, offset = 0x4, fixed_abs, tag = 'smem constant byte address 0x4 - core index']
  #allocation1 [shape = 'u32[72,128]{1,0:T(1,128)}', space=vmem, size = 0x9000, scoped, tag = 'internal scratch']
  %s0 = inlined_call_operand.hbm [shape: f32[2,32], index: 0, kind: input, shape index: {}]
  %s1 = inlined_call_operand.hbm [shape: f32[32,32], index: 1, kind: input, shape index: {}]
  %s2 = inlined_call_operand.vmem [shape: f32[1,32], index: 2, kind: input, shape index: {}]
  %s3 = inlined_call_operand.hbm [shape: f32[32,3264], index: 3, kind: input, shape index: {}]
  %s4 = inlined_call_operand.hbm [shape: f32[1,3264], index: 4, kind: input, shape index: {}]
  %s5 = inlined_call_operand.hbm [shape: f32[2,3264], index: 5, kind: output, shape index: {}]
  %s6 = sld [smem:[#allocation0]]
  $region46: #{tpu_custom_call.1} parent=0
    _
  %s8 = ssub.s32 1, %s6
  %s9 = scalar_select 0, %s8, %s6
  $region1: #{tpu_custom_call.1} parent=0
    #allocation2 [shape = 'u8[1024]{0}', space=vmem, size = 0x400, scoped, tag = 'input window, operand 0, single buffered']
    #allocation3 [shape = 's32[1]{0}', space=sflag, size = 0x4, scoped, tag = 'scoped memory for tpu_custom_call.1']
    #allocation4 [shape = 's32[1]{0}', space=sflag, size = 0x4, scoped, tag = 'scoped memory for tpu_custom_call.1']
    #allocation5 [shape = 'u8[16384]{0}', space=vmem, size = 0x4000, scoped, tag = 'input window, operand 1, single buffered']
    #allocation6 [shape = 's32[1]{0}', space=sflag, size = 0x4, scoped, tag = 'scoped memory for tpu_custom_call.1']
    #allocation7 [shape = 'u8[425984]{0}', space=vmem, size = 0x68000, scoped, tag = 'input window, operand 3, single buffered']
    #allocation8 [shape = 'u8[13312]{0}', space=vmem, size = 0x3400, scoped, tag = 'input window, operand 4, single buffered']
    #allocation9 [shape = 's32[1]{0}', space=sflag, size = 0x4, scoped, tag = 'scoped memory for tpu_custom_call.1']
    #allocation10 [shape = 'u8[26624]{0}', space=vmem, size = 0x6800, scoped, tag = 'output window, operand 0, single buffered']
    %10 = vsyncpa [#allocation3], 0
    %11 = vsyncpa [#allocation6], 0
    %12 = vsyncpa [#allocation9], 0
    %13 = vsyncpa [#allocation4], 0
    // Predicated region
    $region2: #{tpu_custom_call.1} parent=1 // pred_check
      _
    $region3: #{tpu_custom_call.1} parent=1 // pred_check_branch
      %15 = sbr.rel (0) target = $region5
    $region4: #{tpu_custom_call.1} parent=1 // pred_region
      %17 = vsyncadd [#allocation3], 0
      %s19 = sshll.u32 %s0, 4
      %s20 = int_to_ptr.hbm [resolvable:$true] %s19
      %s21 = sshll.u32 [#allocation2], 4
      %s22 = int_to_ptr.vmem [resolvable:$true] %s21
      %24 = dma.hbm_to_vmem [thread:$0]  %s20, 32, %s22, [#allocation3]
    $region5: #{tpu_custom_call.1} parent=1 // pred_fallthru
      _
    // Predicated region
    $region6: #{tpu_custom_call.1} parent=1 // pred_check
      _
    $region7: #{tpu_custom_call.1} parent=1 // pred_check_branch
      %26 = sbr.rel (0) target = $region9
    $region8: #{tpu_custom_call.1} parent=1 // pred_region
      %28 = vsyncadd [#allocation6], 0
      %s29 = sshll.u32 %s1, 4
      %s30 = int_to_ptr.hbm [resolvable:$true] %s29
      %s31 = sshll.u32 [#allocation5], 4
      %s32 = int_to_ptr.vmem [resolvable:$true] %s31
      %37 = dma.hbm_to_vmem [thread:$0]  %s30, 512, %s32, [#allocation6], 128, 128, 8
    $region9: #{tpu_custom_call.1} parent=1 // pred_fallthru
      _
    // Predicated region
    $region10: #{tpu_custom_call.1} parent=1 // pred_check
      _
    $region11: #{tpu_custom_call.1} parent=1 // pred_check_branch
      %39 = sbr.rel (0) target = $region13
    $region12: #{tpu_custom_call.1} parent=1 // pred_region
      _
    $region13: #{tpu_custom_call.1} parent=1 // pred_fallthru
      _
    // Predicated region
    $region14: #{tpu_custom_call.1} parent=1 // pred_check
      _
    $region15: #{tpu_custom_call.1} parent=1 // pred_check_branch
      %41 = sbr.rel (0) target = $region17
    $region16: #{tpu_custom_call.1} parent=1 // pred_region
      %43 = vsyncadd [#allocation6], 0
      %s44 = sshll.u32 %s3, 4
      %s45 = int_to_ptr.hbm [resolvable:$true] %s44
      %s46 = sshll.u32 [#allocation7], 4
      %s47 = int_to_ptr.vmem [resolvable:$true] %s46
      %52 = dma.hbm_to_vmem [thread:$0]  %s45, 13312, %s47, [#allocation6], 3328, 3328, 208
    $region17: #{tpu_custom_call.1} parent=1 // pred_fallthru
      _
    // Predicated region
    $region18: #{tpu_custom_call.1} parent=1 // pred_check
      _
    $region19: #{tpu_custom_call.1} parent=1 // pred_check_branch
      %54 = sbr.rel (0) target = $region21
    $region20: #{tpu_custom_call.1} parent=1 // pred_region
      %56 = vsyncadd [#allocation9], 0
      %s58 = sshll.u32 %s4, 4
      %s59 = int_to_ptr.hbm [resolvable:$true] %s58
      %s60 = sshll.u32 [#allocation8], 4
      %s61 = int_to_ptr.vmem [resolvable:$true] %s60
      %63 = dma.hbm_to_vmem [thread:$0]  %s59, 416, %s61, [#allocation9]
    $region21: #{tpu_custom_call.1} parent=1 // pred_fallthru
      _
    // Predicated region
    $region22: #{tpu_custom_call.1} parent=1 // pred_check
      _
    $region23: #{tpu_custom_call.1} parent=1 // pred_check_branch
      %65 = sbr.rel (0) target = $region25
    $region24: #{tpu_custom_call.1} parent=1 // pred_region
      %67 = dma.done [#allocation3], 32
    $region25: #{tpu_custom_call.1} parent=1 // pred_fallthru
      _
    // Predicated region
    $region26: #{tpu_custom_call.1} parent=1 // pred_check
      _
    $region27: #{tpu_custom_call.1} parent=1 // pred_check_branch
      %69 = sbr.rel (0) target = $region29
    $region28: #{tpu_custom_call.1} parent=1 // pred_region
      %71 = dma.done [#allocation6], 512
    $region29: #{tpu_custom_call.1} parent=1 // pred_fallthru
      _
    // Predicated region
    $region30: #{tpu_custom_call.1} parent=1 // pred_check
      _
    $region31: #{tpu_custom_call.1} parent=1 // pred_check_branch
      %73 = sbr.rel (0) target = $region33
    $region32: #{tpu_custom_call.1} parent=1 // pred_region
      %75 = dma.done [#allocation6], 13312
    $region33: #{tpu_custom_call.1} parent=1 // pred_fallthru
      _
    // Predicated region
    $region34: #{tpu_custom_call.1} parent=1 // pred_check
      _
    $region35: #{tpu_custom_call.1} parent=1 // pred_check_branch
      %77 = sbr.rel (0) target = $region37
    $region36: #{tpu_custom_call.1} parent=1 // pred_region
      %79 = dma.done [#allocation9], 416
    $region37: #{tpu_custom_call.1} parent=1 // pred_fallthru
      _
    %v80 = vld [vmem:[#allocation2] sm:$0x3]
    %v81 = vld [vmem:[#allocation5] sm:$0xff]
    %v82 = vld [vmem:[#allocation5 + $0x8] sm:$0xff]
    %v83 = vld [vmem:[#allocation5 + $0x10] sm:$0xff]
    %v84 = vld [vmem:[#allocation5 + $0x18] sm:$0xff]
    %v85 = vld [vmem:[%s2] sm:$0x1]
    %v87 = vperm.slane %v85, 0
    %vm89 = vcmask 261120
    %v91 = vsel %vm89, %v80, 0
    %93 = vmatpush.msra.mxu0 0.0
    %94 = vmatpush.msra.mxu0 0.0
    %95 = vmatpush.msra.mxu0 0.0
    %96 = vmatpush.msra.mxu0 0.0
    %97 = vmatpush.msra.mxu0 0.0
    %98 = vmatpush.msra.mxu0 0.0
    %99 = vmatpush.msra.mxu0 0.0
    %100 = vmatpush.msra.mxu0 0.0
    %101 = vmatpush.msra.mxu0 0.0
    %102 = vmatpush.msra.mxu0 0.0
    %103 = vmatpush.msra.mxu0 0.0
    %104 = vmatpush.msra.mxu0 0.0
    %105 = vmatpush.msra.mxu0 %v84
    %106 = vmatpush.msra.mxu0 %v83
    %107 = vmatpush.msra.mxu0 %v82
    %108 = vmatpush.msra.mxu0 %v81
    %109 = vmatmul.f32.gmra.mxu0 %v91
    %v110 = vpop.f32.mrf.mxu0
    %v111 = vadd.f32 %v87, %v110
    %112 = vdwg.mxu0
    %v113 = vmax.f32 %v111, 0.0
    %v114 = vld [vmem:[#allocation7] sm:$0xff]
    %v115 = vld [vmem:[#allocation7 + $0x8] sm:$0xff]
    %v116 = vld [vmem:[#allocation7 + $0x10] sm:$0xff]
    %v117 = vld [vmem:[#allocation7 + $0x18] sm:$0xff]
    %v118 = vld [vmem:[#allocation7 + $0x20] sm:$0xff]
    %v119 = vld [vmem:[#allocation7 + $0x28] sm:$0xff]
    %v120 = vld [vmem:[#allocation7 + $0x30] sm:$0xff]
    %v121 = vld [vmem:[#allocation7 + $0x38] sm:$0xff]
    %v122 = vld [vmem:[#allocation7 + $0x40] sm:$0xff]
    %v123 = vld [vmem:[#allocation7 + $0x48] sm:$0xff]
    %v124 = vld [vmem:[#allocation7 + $0x50] sm:$0xff]
    %v125 = vld [vmem:[#allocation7 + $0x58] sm:$0xff]
    %v126 = vld [vmem:[#allocation7 + $0x60] sm:$0xff]
    %v127 = vld [vmem:[#allocation7 + $0x68] sm:$0xff]
    %v128 = vld [vmem:[#allocation7 + $0x70] sm:$0xff]
    %v129 = vld [vmem:[#allocation7 + $0x78] sm:$0xff]
    %v130 = vld [vmem:[#allocation7 + $0x80] sm:$0xff]
    %v131 = vld [vmem:[#allocation7 + $0x88] sm:$0xff]
    %v132 = vld [vmem:[#allocation7 + $0x90] sm:$0xff]
    %v133 = vld [vmem:[#allocation7 + $0x98] sm:$0xff]
    %v134 = vld [vmem:[#allocation7 + $0xa0] sm:$0xff]
    %v135 = vld [vmem:[#allocation7 + $0xa8] sm:$0xff]
    %v136 = vld [vmem:[#allocation7 + $0xb0] sm:$0xff]
    %v137 = vld [vmem:[#allocation7 + $0xb8] sm:$0xff]
    %v138 = vld [vmem:[#allocation7 + $0xc0] sm:$0xff]
    %v139 = vld [vmem:[#allocation7 + $0xc8] sm:$0xff]
    %v140 = vld [vmem:[#allocation7 + $0xd0] sm:$0xff]
    %v141 = vld [vmem:[#allocation7 + $0xd8] sm:$0xff]
    %v142 = vld [vmem:[#allocation7 + $0xe0] sm:$0xff]
    %v143 = vld [vmem:[#allocation7 + $0xe8] sm:$0xff]
    %v144 = vld [vmem:[#allocation7 + $0xf0] sm:$0xff]
    %v145 = vld [vmem:[#allocation7 + $0xf8] sm:$0xff]
    %v146 = vld [vmem:[#allocation7 + $0x100] sm:$0xff]
    %v147 = vld [vmem:[#allocation7 + $0x108] sm:$0xff]
    %v148 = vld [vmem:[#allocation7 + $0x110] sm:$0xff]
    %v149 = vld [vmem:[#allocation7 + $0x118] sm:$0xff]
    %v150 = vld [vmem:[#allocation7 + $0x120] sm:$0xff]
    %v151 = vld [vmem:[#allocation7 + $0x128] sm:$0xff]
    %v152 = vld [vmem:[#allocation7 + $0x130] sm:$0xff]
    %v153 = vld [vmem:[#allocation7 + $0x138] sm:$0xff]
    %v154 = vld [vmem:[#allocation7 + $0x140] sm:$0xff]
    %v155 = vld [vmem:[#allocation7 + $0x148] sm:$0xff]
    %v156 = vld [vmem:[#allocation7 + $0x150] sm:$0xff]
    %v157 = vld [vmem:[#allocation7 + $0x158] sm:$0xff]
    %v158 = vld [vmem:[#allocation7 + $0x160] sm:$0xff]
    %v159 = vld [vmem:[#allocation7 + $0x168] sm:$0xff]
    %v160 = vld [vmem:[#allocation7 + $0x170] sm:$0xff]
    %v161 = vld [vmem:[#allocation7 + $0x178] sm:$0xff]
    %v162 = vld [vmem:[#allocation7 + $0x180] sm:$0xff]
    %v163 = vld [vmem:[#allocation7 + $0x188] sm:$0xff]
    %v164 = vld [vmem:[#allocation7 + $0x190] sm:$0xff]
    %v165 = vld [vmem:[#allocation7 + $0x198] sm:$0xff]
    %v166 = vld [vmem:[#allocation7 + $0x1a0] sm:$0xff]
    %v167 = vld [vmem:[#allocation7 + $0x1a8] sm:$0xff]
    %v168 = vld [vmem:[#allocation7 + $0x1b0] sm:$0xff]
    %v169 = vld [vmem:[#allocation7 + $0x1b8] sm:$0xff]
    %v170 = vld [vmem:[#allocation7 + $0x1c0] sm:$0xff]
    %v171 = vld [vmem:[#allocation7 + $0x1c8] sm:$0xff]
    %v172 = vld [vmem:[#allocation7 + $0x1d0] sm:$0xff]
    %v173 = vld [vmem:[#allocation7 + $0x1d8] sm:$0xff]
    %v174 = vld [vmem:[#allocation7 + $0x1e0] sm:$0xff]
    %v175 = vld [vmem:[#allocation7 + $0x1e8] sm:$0xff]
    %v176 = vld [vmem:[#allocation7 + $0x1f0] sm:$0xff]
    %v177 = vld [vmem:[#allocation7 + $0x1f8] sm:$0xff]
    %v178 = vld [vmem:[#allocation7 + $0x200] sm:$0xff]
    %v179 = vld [vmem:[#allocation7 + $0x208] sm:$0xff]
    %v180 = vld [vmem:[#allocation7 + $0x210] sm:$0xff]
    %v181 = vld [vmem:[#allocation7 + $0x218] sm:$0xff]
    %v182 = vld [vmem:[#allocation7 + $0x220] sm:$0xff]
    %v183 = vld [vmem:[#allocation7 + $0x228] sm:$0xff]
    %v184 = vld [vmem:[#allocation7 + $0x230] sm:$0xff]
    %v185 = vld [vmem:[#allocation7 + $0x238] sm:$0xff]
    %v186 = vld [vmem:[#allocation7 + $0x240] sm:$0xff]
    %v187 = vld [vmem:[#allocation7 + $0x248] sm:$0xff]
    %v188 = vld [vmem:[#allocation7 + $0x250] sm:$0xff]
    %v189 = vld [vmem:[#allocation7 + $0x258] sm:$0xff]
    %v190 = vld [vmem:[#allocation7 + $0x260] sm:$0xff]
    %v191 = vld [vmem:[#allocation7 + $0x268] sm:$0xff]
    %v192 = vld [vmem:[#allocation7 + $0x270] sm:$0xff]
    %v193 = vld [vmem:[#allocation7 + $0x278] sm:$0xff]
    %v194 = vld [vmem:[#allocation7 + $0x280] sm:$0xff]
    %v195 = vld [vmem:[#allocation7 + $0x288] sm:$0xff]
    %v196 = vld [vmem:[#allocation7 + $0x290] sm:$0xff]
    %v197 = vld [vmem:[#allocation7 + $0x298] sm:$0xff]
    %v198 = vld [vmem:[#allocation7 + $0x2a0] sm:$0xff]
    %v199 = vld [vmem:[#allocation7 + $0x2a8] sm:$0xff]
    %v200 = vld [vmem:[#allocation7 + $0x2b0] sm:$0xff]
    %v201 = vld [vmem:[#allocation7 + $0x2b8] sm:$0xff]
    %v202 = vld [vmem:[#allocation7 + $0x2c0] sm:$0xff]
    %v203 = vld [vmem:[#allocation7 + $0x2c8] sm:$0xff]
    %v204 = vld [vmem:[#allocation7 + $0x2d0] sm:$0xff]
    %v205 = vld [vmem:[#allocation7 + $0x2d8] sm:$0xff]
    %v206 = vld [vmem:[#allocation7 + $0x2e0] sm:$0xff]
    %v207 = vld [vmem:[#allocation7 + $0x2e8] sm:$0xff]
    %v208 = vld [vmem:[#allocation7 + $0x2f0] sm:$0xff]
    %v209 = vld [vmem:[#allocation7 + $0x2f8] sm:$0xff]
    %v210 = vld [vmem:[#allocation7 + $0x300] sm:$0xff]
    %v211 = vld [vmem:[#allocation7 + $0x308] sm:$0xff]
    %v212 = vld [vmem:[#allocation7 + $0x310] sm:$0xff]
    %v213 = vld [vmem:[#allocation7 + $0x318] sm:$0xff]
    %v214 = vld [vmem:[#allocation7 + $0x320] sm:$0xff]
    %v215 = vld [vmem:[#allocation7 + $0x328] sm:$0xff]
    %v216 = vld [vmem:[#allocation7 + $0x330] sm:$0xff]
    %v217 = vld [vmem:[#allocation7 + $0x338] sm:$0xff]
    %v218 = vld [vmem:[#allocation8] sm:$0xff]
    %v219 = vld [vmem:[#allocation8 + $0x8] sm:$0xff]
    %v220 = vld [vmem:[#allocation8 + $0x10] sm:$0xff]
    %v221 = vld [vmem:[#allocation8 + $0x18] sm:$0x3]
    %v226 = vperm.slane %v218, 0
    %v227 = vperm.slane %v218, 1
    %v228 = vperm.slane %v218, 2
    %v229 = vperm.slane %v218, 3
    %v230 = vperm.slane %v218, 4
    %v231 = vperm.slane %v218, 5
    %v232 = vperm.slane %v218, 6
    %v233 = vperm.slane %v218, 7
    %v234 = vperm.slane %v219, 0
    %v235 = vperm.slane %v219, 1
    %v236 = vperm.slane %v219, 2
    %v237 = vperm.slane %v219, 3
    %v238 = vperm.slane %v219, 4
    %v239 = vperm.slane %v219, 5
    %v240 = vperm.slane %v219, 6
    %v241 = vperm.slane %v219, 7
    %v242 = vperm.slane %v220, 0
    %v243 = vperm.slane %v220, 1
    %v244 = vperm.slane %v220, 2
    %v245 = vperm.slane %v220, 3
    %v246 = vperm.slane %v220, 4
    %v247 = vperm.slane %v220, 5
    %v248 = vperm.slane %v220, 6
    %v249 = vperm.slane %v220, 7
    %v250 = vperm.slane %v221, 0
    %v251 = vperm.slane %v221, 1
    %v279 = vsel %vm89, %v113, 0
    %281 = vmatpush.msra.mxu0 0.0
    %282 = vmatpush.msra.mxu0 0.0
    %283 = vmatpush.msra.mxu0 0.0
    %284 = vmatpush.msra.mxu0 0.0
    %285 = vmatpush.msra.mxu0 0.0
    %286 = vmatpush.msra.mxu0 0.0
    %287 = vmatpush.msra.mxu0 0.0
    %288 = vmatpush.msra.mxu0 0.0
    %289 = vmatpush.msra.mxu0 0.0
    %290 = vmatpush.msra.mxu0 0.0
    %291 = vmatpush.msra.mxu0 0.0
    %292 = vmatpush.msra.mxu0 0.0
    %293 = vmatpush.msra.mxu0 %v192
    %294 = vmatpush.msra.mxu0 %v166
    %295 = vmatpush.msra.mxu0 %v140
    %296 = vmatpush.msra.mxu0 %v114
    %297 = vmatmul.f32.gmra.mxu0 %v279
    %v298 = vpop.f32.mrf.mxu0
    %v299 = vadd.f32 %v226, %v298
    %300 = vdwg.mxu0
    %301 = vmatpush.msra.mxu0 0.0
    %302 = vmatpush.msra.mxu0 0.0
    %303 = vmatpush.msra.mxu0 0.0
    %304 = vmatpush.msra.mxu0 0.0
    %305 = vmatpush.msra.mxu0 0.0
    %306 = vmatpush.msra.mxu0 0.0
    %307 = vmatpush.msra.mxu0 0.0
    %308 = vmatpush.msra.mxu0 0.0
    %309 = vmatpush.msra.mxu0 0.0
    %310 = vmatpush.msra.mxu0 0.0
    %311 = vmatpush.msra.mxu0 0.0
    %312 = vmatpush.msra.mxu0 0.0
    %313 = vmatpush.msra.mxu0 %v193
    %314 = vmatpush.msra.mxu0 %v167
    %315 = vmatpush.msra.mxu0 %v141
    %316 = vmatpush.msra.mxu0 %v115
    %317 = vmatmul.f32.gmra.mxu0 %v279
    %v318 = vpop.f32.mrf.mxu0
    %v319 = vadd.f32 %v227, %v318
    %320 = vdwg.mxu0
    %321 = vmatpush.msra.mxu0 0.0
    %322 = vmatpush.msra.mxu0 0.0
    %323 = vmatpush.msra.mxu0 0.0
    %324 = vmatpush.msra.mxu0 0.0
    %325 = vmatpush.msra.mxu0 0.0
    %326 = vmatpush.msra.mxu0 0.0
    %327 = vmatpush.msra.mxu0 0.0
    %328 = vmatpush.msra.mxu0 0.0
    %329 = vmatpush.msra.mxu0 0.0
    %330 = vmatpush.msra.mxu0 0.0
    %331 = vmatpush.msra.mxu0 0.0
    %332 = vmatpush.msra.mxu0 0.0
    %333 = vmatpush.msra.mxu0 %v194
    %334 = vmatpush.msra.mxu0 %v168
    %335 = vmatpush.msra.mxu0 %v142
    %336 = vmatpush.msra.mxu0 %v116
    %337 = vmatmul.f32.gmra.mxu0 %v279
    %v338 = vpop.f32.mrf.mxu0
    %v339 = vadd.f32 %v228, %v338
    %340 = vdwg.mxu0
    %341 = vmatpush.msra.mxu0 0.0
    %342 = vmatpush.msra.mxu0 0.0
    %343 = vmatpush.msra.mxu0 0.0
    %344 = vmatpush.msra.mxu0 0.0
    %345 = vmatpush.msra.mxu0 0.0
    %346 = vmatpush.msra.mxu0 0.0
    %347 = vmatpush.msra.mxu0 0.0
    %348 = vmatpush.msra.mxu0 0.0
    %349 = vmatpush.msra.mxu0 0.0
    %350 = vmatpush.msra.mxu0 0.0
    %351 = vmatpush.msra.mxu0 0.0
    %352 = vmatpush.msra.mxu0 0.0
    %353 = vmatpush.msra.mxu0 %v195
    %354 = vmatpush.msra.mxu0 %v169
    %355 = vmatpush.msra.mxu0 %v143
    %356 = vmatpush.msra.mxu0 %v117
    %357 = vmatmul.f32.gmra.mxu0 %v279
    %v358 = vpop.f32.mrf.mxu0
    %v359 = vadd.f32 %v229, %v358
    %360 = vdwg.mxu0
    %361 = vmatpush.msra.mxu0 0.0
    %362 = vmatpush.msra.mxu0 0.0
    %363 = vmatpush.msra.mxu0 0.0
    %364 = vmatpush.msra.mxu0 0.0
    %365 = vmatpush.msra.mxu0 0.0
    %366 = vmatpush.msra.mxu0 0.0
    %367 = vmatpush.msra.mxu0 0.0
    %368 = vmatpush.msra.mxu0 0.0
    %369 = vmatpush.msra.mxu0 0.0
    %370 = vmatpush.msra.mxu0 0.0
    %371 = vmatpush.msra.mxu0 0.0
    %372 = vmatpush.msra.mxu0 0.0
    %373 = vmatpush.msra.mxu0 %v196
    %374 = vmatpush.msra.mxu0 %v170
    %375 = vmatpush.msra.mxu0 %v144
    %376 = vmatpush.msra.mxu0 %v118
    %377 = vmatmul.f32.gmra.mxu0 %v279
    %v378 = vpop.f32.mrf.mxu0
    %v379 = vadd.f32 %v230, %v378
    %380 = vdwg.mxu0
    %381 = vmatpush.msra.mxu0 0.0
    %382 = vmatpush.msra.mxu0 0.0
    %383 = vmatpush.msra.mxu0 0.0
    %384 = vmatpush.msra.mxu0 0.0
    %385 = vmatpush.msra.mxu0 0.0
    %386 = vmatpush.msra.mxu0 0.0
    %387 = vmatpush.msra.mxu0 0.0
    %388 = vmatpush.msra.mxu0 0.0
    %389 = vmatpush.msra.mxu0 0.0
    %390 = vmatpush.msra.mxu0 0.0
    %391 = vmatpush.msra.mxu0 0.0
    %392 = vmatpush.msra.mxu0 0.0
    %393 = vmatpush.msra.mxu0 %v197
    %394 = vmatpush.msra.mxu0 %v171
    %395 = vmatpush.msra.mxu0 %v145
    %396 = vmatpush.msra.mxu0 %v119
    %397 = vmatmul.f32.gmra.mxu0 %v279
    %v398 = vpop.f32.mrf.mxu0
    %v399 = vadd.f32 %v231, %v398
    %400 = vdwg.mxu0
    %401 = vmatpush.msra.mxu0 0.0
    %402 = vmatpush.msra.mxu0 0.0
    %403 = vmatpush.msra.mxu0 0.0
    %404 = vmatpush.msra.mxu0 0.0
    %405 = vmatpush.msra.mxu0 0.0
    %406 = vmatpush.msra.mxu0 0.0
    %407 = vmatpush.msra.mxu0 0.0
    %408 = vmatpush.msra.mxu0 0.0
    %409 = vmatpush.msra.mxu0 0.0
    %410 = vmatpush.msra.mxu0 0.0
    %411 = vmatpush.msra.mxu0 0.0
    %412 = vmatpush.msra.mxu0 0.0
    %413 = vmatpush.msra.mxu0 %v198
    %414 = vmatpush.msra.mxu0 %v172
    %415 = vmatpush.msra.mxu0 %v146
    %416 = vmatpush.msra.mxu0 %v120
    %417 = vmatmul.f32.gmra.mxu0 %v279
    %v418 = vpop.f32.mrf.mxu0
    %v419 = vadd.f32 %v232, %v418
    %420 = vdwg.mxu0
    %421 = vmatpush.msra.mxu0 0.0
    %422 = vmatpush.msra.mxu0 0.0
    %423 = vmatpush.msra.mxu0 0.0
    %424 = vmatpush.msra.mxu0 0.0
    %425 = vmatpush.msra.mxu0 0.0
    %426 = vmatpush.msra.mxu0 0.0
    %427 = vmatpush.msra.mxu0 0.0
    %428 = vmatpush.msra.mxu0 0.0
    %429 = vmatpush.msra.mxu0 0.0
    %430 = vmatpush.msra.mxu0 0.0
    %431 = vmatpush.msra.mxu0 0.0
    %432 = vmatpush.msra.mxu0 0.0
    %433 = vmatpush.msra.mxu0 %v199
    %434 = vmatpush.msra.mxu0 %v173
    %435 = vmatpush.msra.mxu0 %v147
    %436 = vmatpush.msra.mxu0 %v121
    %437 = vmatmul.f32.gmra.mxu0 %v279
    %v438 = vpop.f32.mrf.mxu0
    %v439 = vadd.f32 %v233, %v438
    %440 = vdwg.mxu0
    %441 = vmatpush.msra.mxu0 0.0
    %442 = vmatpush.msra.mxu0 0.0
    %443 = vmatpush.msra.mxu0 0.0
    %444 = vmatpush.msra.mxu0 0.0
    %445 = vmatpush.msra.mxu0 0.0
    %446 = vmatpush.msra.mxu0 0.0
    %447 = vmatpush.msra.mxu0 0.0
    %448 = vmatpush.msra.mxu0 0.0
    %449 = vmatpush.msra.mxu0 0.0
    %450 = vmatpush.msra.mxu0 0.0
    %451 = vmatpush.msra.mxu0 0.0
    %452 = vmatpush.msra.mxu0 0.0
    %453 = vmatpush.msra.mxu0 %v200
    %454 = vmatpush.msra.mxu0 %v174
    %455 = vmatpush.msra.mxu0 %v148
    %456 = vmatpush.msra.mxu0 %v122
    %457 = vmatmul.f32.gmra.mxu0 %v279
    %v458 = vpop.f32.mrf.mxu0
    %v459 = vadd.f32 %v234, %v458
    %460 = vdwg.mxu0
    %461 = vmatpush.msra.mxu0 0.0
    %462 = vmatpush.msra.mxu0 0.0
    %463 = vmatpush.msra.mxu0 0.0
    %464 = vmatpush.msra.mxu0 0.0
    %465 = vmatpush.msra.mxu0 0.0
    %466 = vmatpush.msra.mxu0 0.0
    %467 = vmatpush.msra.mxu0 0.0
    %468 = vmatpush.msra.mxu0 0.0
    %469 = vmatpush.msra.mxu0 0.0
    %470 = vmatpush.msra.mxu0 0.0
    %471 = vmatpush.msra.mxu0 0.0
    %472 = vmatpush.msra.mxu0 0.0
    %473 = vmatpush.msra.mxu0 %v201
    %474 = vmatpush.msra.mxu0 %v175
    %475 = vmatpush.msra.mxu0 %v149
    %476 = vmatpush.msra.mxu0 %v123
    %477 = vmatmul.f32.gmra.mxu0 %v279
    %v478 = vpop.f32.mrf.mxu0
    %v479 = vadd.f32 %v235, %v478
    %480 = vdwg.mxu0
    %481 = vmatpush.msra.mxu0 0.0
    %482 = vmatpush.msra.mxu0 0.0
    %483 = vmatpush.msra.mxu0 0.0
    %484 = vmatpush.msra.mxu0 0.0
    %485 = vmatpush.msra.mxu0 0.0
    %486 = vmatpush.msra.mxu0 0.0
    %487 = vmatpush.msra.mxu0 0.0
    %488 = vmatpush.msra.mxu0 0.0
    %489 = vmatpush.msra.mxu0 0.0
    %490 = vmatpush.msra.mxu0 0.0
    %491 = vmatpush.msra.mxu0 0.0
    %492 = vmatpush.msra.mxu0 0.0
    %493 = vmatpush.msra.mxu0 %v202
    %494 = vmatpush.msra.mxu0 %v176
    %495 = vmatpush.msra.mxu0 %v150
    %496 = vmatpush.msra.mxu0 %v124
    %497 = vmatmul.f32.gmra.mxu0 %v279
    %v498 = vpop.f32.mrf.mxu0
    %v499 = vadd.f32 %v236, %v498
    %500 = vdwg.mxu0
    %501 = vmatpush.msra.mxu0 0.0
    %502 = vmatpush.msra.mxu0 0.0
    %503 = vmatpush.msra.mxu0 0.0
    %504 = vmatpush.msra.mxu0 0.0
    %505 = vmatpush.msra.mxu0 0.0
    %506 = vmatpush.msra.mxu0 0.0
    %507 = vmatpush.msra.mxu0 0.0
    %508 = vmatpush.msra.mxu0 0.0
    %509 = vmatpush.msra.mxu0 0.0
    %510 = vmatpush.msra.mxu0 0.0
    %511 = vmatpush.msra.mxu0 0.0
    %512 = vmatpush.msra.mxu0 0.0
    %513 = vmatpush.msra.mxu0 %v203
    %514 = vmatpush.msra.mxu0 %v177
    %515 = vmatpush.msra.mxu0 %v151
    %516 = vmatpush.msra.mxu0 %v125
    %517 = vmatmul.f32.gmra.mxu0 %v279
    %v518 = vpop.f32.mrf.mxu0
    %v519 = vadd.f32 %v237, %v518
    %520 = vdwg.mxu0
    %521 = vmatpush.msra.mxu0 0.0
    %522 = vmatpush.msra.mxu0 0.0
    %523 = vmatpush.msra.mxu0 0.0
    %524 = vmatpush.msra.mxu0 0.0
    %525 = vmatpush.msra.mxu0 0.0
    %526 = vmatpush.msra.mxu0 0.0
    %527 = vmatpush.msra.mxu0 0.0
    %528 = vmatpush.msra.mxu0 0.0
    %529 = vmatpush.msra.mxu0 0.0
    %530 = vmatpush.msra.mxu0 0.0
    %531 = vmatpush.msra.mxu0 0.0
    %532 = vmatpush.msra.mxu0 0.0
    %533 = vmatpush.msra.mxu0 %v204
    %534 = vmatpush.msra.mxu0 %v178
    %535 = vmatpush.msra.mxu0 %v152
    %536 = vmatpush.msra.mxu0 %v126
    %537 = vmatmul.f32.gmra.mxu0 %v279
    %v538 = vpop.f32.mrf.mxu0
    %v539 = vadd.f32 %v238, %v538
    %540 = vdwg.mxu0
    %541 = vmatpush.msra.mxu0 0.0
    %542 = vmatpush.msra.mxu0 0.0
    %543 = vmatpush.msra.mxu0 0.0
    %544 = vmatpush.msra.mxu0 0.0
    %545 = vmatpush.msra.mxu0 0.0
    %546 = vmatpush.msra.mxu0 0.0
    %547 = vmatpush.msra.mxu0 0.0
    %548 = vmatpush.msra.mxu0 0.0
    %549 = vmatpush.msra.mxu0 0.0
    %550 = vmatpush.msra.mxu0 0.0
    %551 = vmatpush.msra.mxu0 0.0
    %552 = vmatpush.msra.mxu0 0.0
    %553 = vmatpush.msra.mxu0 %v205
    %554 = vmatpush.msra.mxu0 %v179
    %555 = vmatpush.msra.mxu0 %v153
    %556 = vmatpush.msra.mxu0 %v127
    %557 = vmatmul.f32.gmra.mxu0 %v279
    %v558 = vpop.f32.mrf.mxu0
    %v559 = vadd.f32 %v239, %v558
    %560 = vdwg.mxu0
    %561 = vmatpush.msra.mxu0 0.0
    %562 = vmatpush.msra.mxu0 0.0
    %563 = vmatpush.msra.mxu0 0.0
    %564 = vmatpush.msra.mxu0 0.0
    %565 = vmatpush.msra.mxu0 0.0
    %566 = vmatpush.msra.mxu0 0.0
    %567 = vmatpush.msra.mxu0 0.0
    %568 = vmatpush.msra.mxu0 0.0
    %569 = vmatpush.msra.mxu0 0.0
    %570 = vmatpush.msra.mxu0 0.0
    %571 = vmatpush.msra.mxu0 0.0
    %572 = vmatpush.msra.mxu0 0.0
    %573 = vmatpush.msra.mxu0 %v206
    %574 = vmatpush.msra.mxu0 %v180
    %575 = vmatpush.msra.mxu0 %v154
    %576 = vmatpush.msra.mxu0 %v128
    %577 = vmatmul.f32.gmra.mxu0 %v279
    %v578 = vpop.f32.mrf.mxu0
    %v579 = vadd.f32 %v240, %v578
    %580 = vdwg.mxu0
    %581 = vmatpush.msra.mxu0 0.0
    %582 = vmatpush.msra.mxu0 0.0
    %583 = vmatpush.msra.mxu0 0.0
    %584 = vmatpush.msra.mxu0 0.0
    %585 = vmatpush.msra.mxu0 0.0
    %586 = vmatpush.msra.mxu0 0.0
    %587 = vmatpush.msra.mxu0 0.0
    %588 = vmatpush.msra.mxu0 0.0
    %589 = vmatpush.msra.mxu0 0.0
    %590 = vmatpush.msra.mxu0 0.0
    %591 = vmatpush.msra.mxu0 0.0
    %592 = vmatpush.msra.mxu0 0.0
    %593 = vmatpush.msra.mxu0 %v207
    %594 = vmatpush.msra.mxu0 %v181
    %595 = vmatpush.msra.mxu0 %v155
    %596 = vmatpush.msra.mxu0 %v129
    %597 = vmatmul.f32.gmra.mxu0 %v279
    %v598 = vpop.f32.mrf.mxu0
    %v599 = vadd.f32 %v241, %v598
    %600 = vdwg.mxu0
    %601 = vmatpush.msra.mxu0 0.0
    %602 = vmatpush.msra.mxu0 0.0
    %603 = vmatpush.msra.mxu0 0.0
    %604 = vmatpush.msra.mxu0 0.0
    %605 = vmatpush.msra.mxu0 0.0
    %606 = vmatpush.msra.mxu0 0.0
    %607 = vmatpush.msra.mxu0 0.0
    %608 = vmatpush.msra.mxu0 0.0
    %609 = vmatpush.msra.mxu0 0.0
    %610 = vmatpush.msra.mxu0 0.0
    %611 = vmatpush.msra.mxu0 0.0
    %612 = vmatpush.msra.mxu0 0.0
    %613 = vmatpush.msra.mxu0 %v208
    %614 = vmatpush.msra.mxu0 %v182
    %615 = vmatpush.msra.mxu0 %v156
    %616 = vmatpush.msra.mxu0 %v130
    %617 = vmatmul.f32.gmra.mxu0 %v279
    %v618 = vpop.f32.mrf.mxu0
    %v619 = vadd.f32 %v242, %v618
    %620 = vdwg.mxu0
    %621 = vmatpush.msra.mxu0 0.0
    %622 = vmatpush.msra.mxu0 0.0
    %623 = vmatpush.msra.mxu0 0.0
    %624 = vmatpush.msra.mxu0 0.0
    %625 = vmatpush.msra.mxu0 0.0
    %626 = vmatpush.msra.mxu0 0.0
    %627 = vmatpush.msra.mxu0 0.0
    %628 = vmatpush.msra.mxu0 0.0
    %629 = vmatpush.msra.mxu0 0.0
    %630 = vmatpush.msra.mxu0 0.0
    %631 = vmatpush.msra.mxu0 0.0
    %632 = vmatpush.msra.mxu0 0.0
    %633 = vmatpush.msra.mxu0 %v209
    %634 = vmatpush.msra.mxu0 %v183
    %635 = vmatpush.msra.mxu0 %v157
    %636 = vmatpush.msra.mxu0 %v131
    %637 = vmatmul.f32.gmra.mxu0 %v279
    %v638 = vpop.f32.mrf.mxu0
    %v639 = vadd.f32 %v243, %v638
    %640 = vdwg.mxu0
    %641 = vmatpush.msra.mxu0 0.0
    %642 = vmatpush.msra.mxu0 0.0
    %643 = vmatpush.msra.mxu0 0.0
    %644 = vmatpush.msra.mxu0 0.0
    %645 = vmatpush.msra.mxu0 0.0
    %646 = vmatpush.msra.mxu0 0.0
    %647 = vmatpush.msra.mxu0 0.0
    %648 = vmatpush.msra.mxu0 0.0
    %649 = vmatpush.msra.mxu0 0.0
    %650 = vmatpush.msra.mxu0 0.0
    %651 = vmatpush.msra.mxu0 0.0
    %652 = vmatpush.msra.mxu0 0.0
    %653 = vmatpush.msra.mxu0 %v210
    %654 = vmatpush.msra.mxu0 %v184
    %655 = vmatpush.msra.mxu0 %v158
    %656 = vmatpush.msra.mxu0 %v132
    %657 = vmatmul.f32.gmra.mxu0 %v279
    %v658 = vpop.f32.mrf.mxu0
    %v659 = vadd.f32 %v244, %v658
    %660 = vdwg.mxu0
    %661 = vmatpush.msra.mxu0 0.0
    %662 = vmatpush.msra.mxu0 0.0
    %663 = vmatpush.msra.mxu0 0.0
    %664 = vmatpush.msra.mxu0 0.0
    %665 = vmatpush.msra.mxu0 0.0
    %666 = vmatpush.msra.mxu0 0.0
    %667 = vmatpush.msra.mxu0 0.0
    %668 = vmatpush.msra.mxu0 0.0
    %669 = vmatpush.msra.mxu0 0.0
    %670 = vmatpush.msra.mxu0 0.0
    %671 = vmatpush.msra.mxu0 0.0
    %672 = vmatpush.msra.mxu0 0.0
    %673 = vmatpush.msra.mxu0 %v211
    %674 = vmatpush.msra.mxu0 %v185
    %675 = vmatpush.msra.mxu0 %v159
    %676 = vmatpush.msra.mxu0 %v133
    %677 = vmatmul.f32.gmra.mxu0 %v279
    %v678 = vpop.f32.mrf.mxu0
    %v679 = vadd.f32 %v245, %v678
    %680 = vdwg.mxu0
    %681 = vmatpush.msra.mxu0 0.0
    %682 = vmatpush.msra.mxu0 0.0
    %683 = vmatpush.msra.mxu0 0.0
    %684 = vmatpush.msra.mxu0 0.0
    %685 = vmatpush.msra.mxu0 0.0
    %686 = vmatpush.msra.mxu0 0.0
    %687 = vmatpush.msra.mxu0 0.0
    %688 = vmatpush.msra.mxu0 0.0
    %689 = vmatpush.msra.mxu0 0.0
    %690 = vmatpush.msra.mxu0 0.0
    %691 = vmatpush.msra.mxu0 0.0
    %692 = vmatpush.msra.mxu0 0.0
    %693 = vmatpush.msra.mxu0 %v212
    %694 = vmatpush.msra.mxu0 %v186
    %695 = vmatpush.msra.mxu0 %v160
    %696 = vmatpush.msra.mxu0 %v134
    %697 = vmatmul.f32.gmra.mxu0 %v279
    %v698 = vpop.f32.mrf.mxu0
    %v699 = vadd.f32 %v246, %v698
    %700 = vdwg.mxu0
    %701 = vmatpush.msra.mxu0 0.0
    %702 = vmatpush.msra.mxu0 0.0
    %703 = vmatpush.msra.mxu0 0.0
    %704 = vmatpush.msra.mxu0 0.0
    %705 = vmatpush.msra.mxu0 0.0
    %706 = vmatpush.msra.mxu0 0.0
    %707 = vmatpush.msra.mxu0 0.0
    %708 = vmatpush.msra.mxu0 0.0
    %709 = vmatpush.msra.mxu0 0.0
    %710 = vmatpush.msra.mxu0 0.0
    %711 = vmatpush.msra.mxu0 0.0
    %712 = vmatpush.msra.mxu0 0.0
    %713 = vmatpush.msra.mxu0 %v213
    %714 = vmatpush.msra.mxu0 %v187
    %715 = vmatpush.msra.mxu0 %v161
    %716 = vmatpush.msra.mxu0 %v135
    %717 = vmatmul.f32.gmra.mxu0 %v279
    %v718 = vpop.f32.mrf.mxu0
    %v719 = vadd.f32 %v247, %v718
    %720 = vdwg.mxu0
    %721 = vmatpush.msra.mxu0 0.0
    %722 = vmatpush.msra.mxu0 0.0
    %723 = vmatpush.msra.mxu0 0.0
    %724 = vmatpush.msra.mxu0 0.0
    %725 = vmatpush.msra.mxu0 0.0
    %726 = vmatpush.msra.mxu0 0.0
    %727 = vmatpush.msra.mxu0 0.0
    %728 = vmatpush.msra.mxu0 0.0
    %729 = vmatpush.msra.mxu0 0.0
    %730 = vmatpush.msra.mxu0 0.0
    %731 = vmatpush.msra.mxu0 0.0
    %732 = vmatpush.msra.mxu0 0.0
    %733 = vmatpush.msra.mxu0 %v214
    %734 = vmatpush.msra.mxu0 %v188
    %735 = vmatpush.msra.mxu0 %v162
    %736 = vmatpush.msra.mxu0 %v136
    %737 = vmatmul.f32.gmra.mxu0 %v279
    %v738 = vpop.f32.mrf.mxu0
    %v739 = vadd.f32 %v248, %v738
    %740 = vdwg.mxu0
    %741 = vmatpush.msra.mxu0 0.0
    %742 = vmatpush.msra.mxu0 0.0
    %743 = vmatpush.msra.mxu0 0.0
    %744 = vmatpush.msra.mxu0 0.0
    %745 = vmatpush.msra.mxu0 0.0
    %746 = vmatpush.msra.mxu0 0.0
    %747 = vmatpush.msra.mxu0 0.0
    %748 = vmatpush.msra.mxu0 0.0
    %749 = vmatpush.msra.mxu0 0.0
    %750 = vmatpush.msra.mxu0 0.0
    %751 = vmatpush.msra.mxu0 0.0
    %752 = vmatpush.msra.mxu0 0.0
    %753 = vmatpush.msra.mxu0 %v215
    %754 = vmatpush.msra.mxu0 %v189
    %755 = vmatpush.msra.mxu0 %v163
    %756 = vmatpush.msra.mxu0 %v137
    %757 = vmatmul.f32.gmra.mxu0 %v279
    %v758 = vpop.f32.mrf.mxu0
    %v759 = vadd.f32 %v249, %v758
    %760 = vdwg.mxu0
    %761 = vmatpush.msra.mxu0 0.0
    %762 = vmatpush.msra.mxu0 0.0
    %763 = vmatpush.msra.mxu0 0.0
    %764 = vmatpush.msra.mxu0 0.0
    %765 = vmatpush.msra.mxu0 0.0
    %766 = vmatpush.msra.mxu0 0.0
    %767 = vmatpush.msra.mxu0 0.0
    %768 = vmatpush.msra.mxu0 0.0
    %769 = vmatpush.msra.mxu0 0.0
    %770 = vmatpush.msra.mxu0 0.0
    %771 = vmatpush.msra.mxu0 0.0
    %772 = vmatpush.msra.mxu0 0.0
    %773 = vmatpush.msra.mxu0 %v216
    %774 = vmatpush.msra.mxu0 %v190
    %775 = vmatpush.msra.mxu0 %v164
    %776 = vmatpush.msra.mxu0 %v138
    %777 = vmatmul.f32.gmra.mxu0 %v279
    %v778 = vpop.f32.mrf.mxu0
    %v779 = vadd.f32 %v250, %v778
    %780 = vdwg.mxu0
    %781 = vmatpush.msra.mxu0 0.0
    %782 = vmatpush.msra.mxu0 0.0
    %783 = vmatpush.msra.mxu0 0.0
    %784 = vmatpush.msra.mxu0 0.0
    %785 = vmatpush.msra.mxu0 0.0
    %786 = vmatpush.msra.mxu0 0.0
    %787 = vmatpush.msra.mxu0 0.0
    %788 = vmatpush.msra.mxu0 0.0
    %789 = vmatpush.msra.mxu0 0.0
    %790 = vmatpush.msra.mxu0 0.0
    %791 = vmatpush.msra.mxu0 0.0
    %792 = vmatpush.msra.mxu0 0.0
    %793 = vmatpush.msra.mxu0 %v217
    %794 = vmatpush.msra.mxu0 %v191
    %795 = vmatpush.msra.mxu0 %v165
    %796 = vmatpush.msra.mxu0 %v139
    %797 = vmatmul.f32.gmra.mxu0 %v279
    %v798 = vpop.f32.mrf.mxu0
    %v799 = vadd.f32 %v251, %v798
    %800 = vdwg.mxu0
    %v801 = vmax.f32 %v299, 0.0
    %v802 = vmax.f32 %v319, 0.0
    %v803 = vmax.f32 %v339, 0.0
    %v804 = vmax.f32 %v359, 0.0
    %v805 = vmax.f32 %v379, 0.0
    %v806 = vmax.f32 %v399, 0.0
    %v807 = vmax.f32 %v419, 0.0
    %v808 = vmax.f32 %v439, 0.0
    %v809 = vmax.f32 %v459, 0.0
    %v810 = vmax.f32 %v479, 0.0
    %v811 = vmax.f32 %v499, 0.0
    %v812 = vmax.f32 %v519, 0.0
    %v813 = vmax.f32 %v539, 0.0
    %v814 = vmax.f32 %v559, 0.0
    %v815 = vmax.f32 %v579, 0.0
    %v816 = vmax.f32 %v599, 0.0
    %v817 = vmax.f32 %v619, 0.0
    %v818 = vmax.f32 %v639, 0.0
    %v819 = vmax.f32 %v659, 0.0
    %v820 = vmax.f32 %v679, 0.0
    %v821 = vmax.f32 %v699, 0.0
    %v822 = vmax.f32 %v719, 0.0
    %v823 = vmax.f32 %v739, 0.0
    %v824 = vmax.f32 %v759, 0.0
    %v825 = vmax.f32 %v779, 0.0
    %v826 = vmax.f32 %v799, 0.0
    %vm827 = vcmask 1041408
    %v828 = vsel %vm827, %v801, -inf
    %v829 = vsel %vm827, %v802, -inf
    %v830 = vsel %vm827, %v803, -inf
    %v831 = vsel %vm827, %v804, -inf
    %v832 = vsel %vm827, %v805, -inf
    %v833 = vmax.f32 %v828, %v832
    %v834 = vsel %vm827, %v806, -inf
    %v835 = vmax.f32 %v829, %v834
    %v836 = vsel %vm827, %v807, -inf
    %v837 = vmax.f32 %v830, %v836
    %v838 = vsel %vm827, %v808, -inf
    %v839 = vmax.f32 %v831, %v838
    %v840 = vsel %vm827, %v809, -inf
    %v841 = vmax.f32 %v833, %v840
    %v842 = vsel %vm827, %v810, -inf
    %v843 = vmax.f32 %v835, %v842
    %v844 = vsel %vm827, %v811, -inf
    %v845 = vmax.f32 %v837, %v844
    %v846 = vsel %vm827, %v812, -inf
    %v847 = vmax.f32 %v839, %v846
    %v848 = vsel %vm827, %v813, -inf
    %v849 = vmax.f32 %v841, %v848
    %v850 = vsel %vm827, %v814, -inf
    %v851 = vmax.f32 %v843, %v850
    %v852 = vsel %vm827, %v815, -inf
    %v853 = vmax.f32 %v845, %v852
    %v854 = vsel %vm827, %v816, -inf
    %v855 = vmax.f32 %v847, %v854
    %v856 = vsel %vm827, %v817, -inf
    %v857 = vmax.f32 %v849, %v856
    %v858 = vsel %vm827, %v818, -inf
    %v859 = vmax.f32 %v851, %v858
    %v860 = vsel %vm827, %v819, -inf
    %v861 = vmax.f32 %v853, %v860
    %v862 = vsel %vm827, %v820, -inf
    %v863 = vmax.f32 %v855, %v862
    %v864 = vsel %vm827, %v821, -inf
    %v865 = vmax.f32 %v857, %v864
    %v866 = vsel %vm827, %v822, -inf
    %v867 = vmax.f32 %v859, %v866
    %v868 = vsel %vm827, %v823, -inf
    %v869 = vmax.f32 %v861, %v868
    %v870 = vsel %vm827, %v824, -inf
    %v871 = vmax.f32 %v863, %v870
    %v872 = vsel %vm827, %v825, -inf
    %v873 = vmax.f32 %v865, %v872
    %vm874 = vcmask 517120
    %v875 = vsel %vm874, %v826, -inf
    %v876 = vmax.f32 %v867, %v875
    %v877 = vmax.f32 %v873, %v876
    %v878 = vmax.f32 %v869, %v871
    %v879 = vmax.f32 %v877, %v878
    %880 = vmax.xlane.f32.xlu0 %v879
    %v881 = vpop.xlane.xlu0 %880
    %v882 = vsub.f32 %v801, %v881
    %v883 = vsub.f32 %v802, %v881
    %v884 = vsub.f32 %v803, %v881
    %v885 = vsub.f32 %v804, %v881
    %v886 = vsub.f32 %v805, %v881
    %v887 = vsub.f32 %v806, %v881
    %v888 = vsub.f32 %v807, %v881
    %v889 = vsub.f32 %v808, %v881
    %v890 = vsub.f32 %v809, %v881
    %v891 = vsub.f32 %v810, %v881
    %v892 = vsub.f32 %v811, %v881
    %v893 = vsub.f32 %v812, %v881
    %v894 = vsub.f32 %v813, %v881
    %v895 = vsub.f32 %v814, %v881
    %v896 = vsub.f32 %v815, %v881
    %v897 = vsub.f32 %v816, %v881
    %v898 = vsub.f32 %v817, %v881
    %v899 = vsub.f32 %v818, %v881
    %v900 = vsub.f32 %v819, %v881
    %v901 = vsub.f32 %v820, %v881
    %v902 = vsub.f32 %v821, %v881
    %v903 = vsub.f32 %v822, %v881
    %v904 = vsub.f32 %v823, %v881
    %v905 = vsub.f32 %v824, %v881
    %v906 = vsub.f32 %v825, %v881
    %v907 = vsub.f32 %v826, %v881
    %v908 = vmul.f32 %v882, 1.442695
    %v909 = vpow.pop %v908
    %v910 = vmul.f32 %v883, 1.442695
    %v911 = vpow.pop %v910
    %v912 = vmul.f32 %v884, 1.442695
    %v913 = vpow.pop %v912
    %v914 = vmul.f32 %v885, 1.442695
    %v915 = vpow.pop %v914
    %v916 = vmul.f32 %v886, 1.442695
    %v917 = vpow.pop %v916
    %v918 = vmul.f32 %v887, 1.442695
    %v919 = vpow.pop %v918
    %v920 = vmul.f32 %v888, 1.442695
    %v921 = vpow.pop %v920
    %v922 = vmul.f32 %v889, 1.442695
    %v923 = vpow.pop %v922
    %v924 = vmul.f32 %v890, 1.442695
    %v925 = vpow.pop %v924
    %v926 = vmul.f32 %v891, 1.442695
    %v927 = vpow.pop %v926
    %v928 = vmul.f32 %v892, 1.442695
    %v929 = vpow.pop %v928
    %v930 = vmul.f32 %v893, 1.442695
    %v931 = vpow.pop %v930
    %v932 = vmul.f32 %v894, 1.442695
    %v933 = vpow.pop %v932
    %v934 = vmul.f32 %v895, 1.442695
    %v935 = vpow.pop %v934
    %v936 = vmul.f32 %v896, 1.442695
    %v937 = vpow.pop %v936
    %v938 = vmul.f32 %v897, 1.442695
    %v939 = vpow.pop %v938
    %v940 = vmul.f32 %v898, 1.442695
    %v941 = vpow.pop %v940
    %v942 = vmul.f32 %v899, 1.442695
    %v943 = vpow.pop %v942
    %v944 = vmul.f32 %v900, 1.442695
    %v945 = vpow.pop %v944
    %v946 = vmul.f32 %v901, 1.442695
    %v947 = vpow.pop %v946
    %v948 = vmul.f32 %v902, 1.442695
    %v949 = vpow.pop %v948
    %v950 = vmul.f32 %v903, 1.442695
    %v951 = vpow.pop %v950
    %v952 = vmul.f32 %v904, 1.442695
    %v953 = vpow.pop %v952
    %v954 = vmul.f32 %v905, 1.442695
    %v955 = vpow.pop %v954
    %v956 = vmul.f32 %v906, 1.442695
    %v957 = vpow.pop %v956
    %v958 = vmul.f32 %v907, 1.442695
    %v959 = vpow.pop %v958
    %v960 = vlaneseq
    %v961 = vand.u32 %v960, 127
    %v962 = vadd.s32 %v961, 128
    %v963 = vadd.s32 %v961, 256
    %v964 = vadd.s32 %v961, 384
    %v965 = vadd.s32 %v961, 512
    %v966 = vadd.s32 %v961, 640
    %v967 = vadd.s32 %v961, 768
    %v968 = vadd.s32 %v961, 896
    %v969 = vadd.s32 %v961, 1024
    %v970 = vadd.s32 %v961, 1152
    %v971 = vadd.s32 %v961, 1280
    %v972 = vadd.s32 %v961, 1408
    %v973 = vadd.s32 %v961, 1536
    %v974 = vadd.s32 %v961, 1664
    %v975 = vadd.s32 %v961, 1792
    %v976 = vadd.s32 %v961, 1920
    %v977 = vadd.s32 %v961, 2048
    %v978 = vadd.s32 %v961, 2176
    %v979 = vadd.s32 %v961, 2304
    %v980 = vadd.s32 %v961, 2432
    %v981 = vadd.s32 %v961, 2560
    %v982 = vadd.s32 %v961, 2688
    %v983 = vadd.s32 %v961, 2816
    %v984 = vadd.s32 %v961, 2944
    %v985 = vadd.s32 %v961, 3072
    %v986 = vadd.s32 %v961, 3200
    %v987 = vlaneseq
    %v988 = vshrl.u32 %v987, 7
    %v989 = vadd.s32 %v988, 8
    %v990 = vadd.s32 %v988, 16
    %v991 = vadd.s32 %v988, 24
    %v992 = vadd.s32 %v988, 32
    %v993 = vadd.s32 %v988, 40
    %v994 = vadd.s32 %v988, 48
    %v995 = vadd.s32 %v988, 56
    %v996 = vmul.u32 %v988, 51
    %v997 = vmul.u32 %v989, 51
    %v998 = vmul.u32 %v990, 51
    %v999 = vmul.u32 %v991, 51
    %v1000 = vmul.u32 %v992, 51
    %v1001 = vmul.u32 %v993, 51
    %v1002 = vmul.u32 %v994, 51
    %v1003 = vmul.u32 %v995, 51
    %vm1004 = vcmp.ge.s32.totalorder %v961, %v996
    %vm1005 = vcmp.ge.s32.totalorder %v962, %v996
    %vm1006 = vcmp.ge.s32.totalorder %v963, %v996
    %vm1007 = vcmp.ge.s32.totalorder %v964, %v996
    %vm1008 = vcmp.ge.s32.totalorder %v965, %v996
    %vm1009 = vcmp.ge.s32.totalorder %v966, %v996
    %vm1010 = vcmp.ge.s32.totalorder %v967, %v996
    %vm1011 = vcmp.ge.s32.totalorder %v968, %v996
    %vm1012 = vcmp.ge.s32.totalorder %v969, %v996
    %vm1013 = vcmp.ge.s32.totalorder %v970, %v996
    %vm1014 = vcmp.ge.s32.totalorder %v971, %v996
    %vm1015 = vcmp.ge.s32.totalorder %v972, %v996
    %vm1016 = vcmp.ge.s32.totalorder %v973, %v996
    %vm1017 = vcmp.ge.s32.totalorder %v974, %v996
    %vm1018 = vcmp.ge.s32.totalorder %v975, %v996
    %vm1019 = vcmp.ge.s32.totalorder %v976, %v996
    %vm1020 = vcmp.ge.s32.totalorder %v977, %v996
    %vm1021 = vcmp.ge.s32.totalorder %v978, %v996
    %vm1022 = vcmp.ge.s32.totalorder %v979, %v996
    %vm1023 = vcmp.ge.s32.totalorder %v980, %v996
    %vm1024 = vcmp.ge.s32.totalorder %v981, %v996
    %vm1025 = vcmp.ge.s32.totalorder %v982, %v996
    %vm1026 = vcmp.ge.s32.totalorder %v983, %v996
    %vm1027 = vcmp.ge.s32.totalorder %v984, %v996
    %vm1028 = vcmp.ge.s32.totalorder %v985, %v996
    %vm1029 = vcmp.ge.s32.totalorder %v986, %v996
    %vm1030 = vcmp.ge.s32.totalorder %v961, %v997
    %vm1031 = vcmp.ge.s32.totalorder %v962, %v997
    %vm1032 = vcmp.ge.s32.totalorder %v963, %v997
    %vm1033 = vcmp.ge.s32.totalorder %v964, %v997
    %vm1034 = vcmp.ge.s32.totalorder %v965, %v997
    %vm1035 = vcmp.ge.s32.totalorder %v966, %v997
    %vm1036 = vcmp.ge.s32.totalorder %v967, %v997
    %vm1037 = vcmp.ge.s32.totalorder %v968, %v997
    %vm1038 = vcmp.ge.s32.totalorder %v969, %v997
    %vm1039 = vcmp.ge.s32.totalorder %v970, %v997
    %vm1040 = vcmp.ge.s32.totalorder %v971, %v997
    %vm1041 = vcmp.ge.s32.totalorder %v972, %v997
    %vm1042 = vcmp.ge.s32.totalorder %v973, %v997
    %vm1043 = vcmp.ge.s32.totalorder %v974, %v997
    %vm1044 = vcmp.ge.s32.totalorder %v975, %v997
    %vm1045 = vcmp.ge.s32.totalorder %v976, %v997
    %vm1046 = vcmp.ge.s32.totalorder %v977, %v997
    %vm1047 = vcmp.ge.s32.totalorder %v978, %v997
    %vm1048 = vcmp.ge.s32.totalorder %v979, %v997
    %vm1049 = vcmp.ge.s32.totalorder %v980, %v997
    %vm1050 = vcmp.ge.s32.totalorder %v981, %v997
    %vm1051 = vcmp.ge.s32.totalorder %v982, %v997
    %vm1052 = vcmp.ge.s32.totalorder %v983, %v997
    %vm1053 = vcmp.ge.s32.totalorder %v984, %v997
    %vm1054 = vcmp.ge.s32.totalorder %v985, %v997
    %vm1055 = vcmp.ge.s32.totalorder %v986, %v997
    %vm1056 = vcmp.ge.s32.totalorder %v961, %v998
    %vm1057 = vcmp.ge.s32.totalorder %v962, %v998
    %vm1058 = vcmp.ge.s32.totalorder %v963, %v998
    %vm1059 = vcmp.ge.s32.totalorder %v964, %v998
    %vm1060 = vcmp.ge.s32.totalorder %v965, %v998
    %vm1061 = vcmp.ge.s32.totalorder %v966, %v998
    %vm1062 = vcmp.ge.s32.totalorder %v967, %v998
    %vm1063 = vcmp.ge.s32.totalorder %v968, %v998
    %vm1064 = vcmp.ge.s32.totalorder %v969, %v998
    %vm1065 = vcmp.ge.s32.totalorder %v970, %v998
    %vm1066 = vcmp.ge.s32.totalorder %v971, %v998
    %vm1067 = vcmp.ge.s32.totalorder %v972, %v998
    %vm1068 = vcmp.ge.s32.totalorder %v973, %v998
    %vm1069 = vcmp.ge.s32.totalorder %v974, %v998
    %vm1070 = vcmp.ge.s32.totalorder %v975, %v998
    %vm1071 = vcmp.ge.s32.totalorder %v976, %v998
    %vm1072 = vcmp.ge.s32.totalorder %v977, %v998
    %vm1073 = vcmp.ge.s32.totalorder %v978, %v998
    %vm1074 = vcmp.ge.s32.totalorder %v979, %v998
    %vm1075 = vcmp.ge.s32.totalorder %v980, %v998
    %vm1076 = vcmp.ge.s32.totalorder %v981, %v998
    %vm1077 = vcmp.ge.s32.totalorder %v982, %v998
    %vm1078 = vcmp.ge.s32.totalorder %v983, %v998
    %vm1079 = vcmp.ge.s32.totalorder %v984, %v998
    %vm1080 = vcmp.ge.s32.totalorder %v985, %v998
    %vm1081 = vcmp.ge.s32.totalorder %v986, %v998
    %vm1082 = vcmp.ge.s32.totalorder %v961, %v999
    %vm1083 = vcmp.ge.s32.totalorder %v962, %v999
    %vm1084 = vcmp.ge.s32.totalorder %v963, %v999
    %vm1085 = vcmp.ge.s32.totalorder %v964, %v999
    %vm1086 = vcmp.ge.s32.totalorder %v965, %v999
    %vm1087 = vcmp.ge.s32.totalorder %v966, %v999
    %vm1088 = vcmp.ge.s32.totalorder %v967, %v999
    %vm1089 = vcmp.ge.s32.totalorder %v968, %v999
    %vm1090 = vcmp.ge.s32.totalorder %v969, %v999
    %vm1091 = vcmp.ge.s32.totalorder %v970, %v999
    %vm1092 = vcmp.ge.s32.totalorder %v971, %v999
    %vm1093 = vcmp.ge.s32.totalorder %v972, %v999
    %vm1094 = vcmp.ge.s32.totalorder %v973, %v999
    %vm1095 = vcmp.ge.s32.totalorder %v974, %v999
    %vm1096 = vcmp.ge.s32.totalorder %v975, %v999
    %vm1097 = vcmp.ge.s32.totalorder %v976, %v999
    %vm1098 = vcmp.ge.s32.totalorder %v977, %v999
    %vm1099 = vcmp.ge.s32.totalorder %v978, %v999
    %vm1100 = vcmp.ge.s32.totalorder %v979, %v999
    %vm1101 = vcmp.ge.s32.totalorder %v980, %v999
    %vm1102 = vcmp.ge.s32.totalorder %v981, %v999
    %vm1103 = vcmp.ge.s32.totalorder %v982, %v999
    %vm1104 = vcmp.ge.s32.totalorder %v983, %v999
    %vm1105 = vcmp.ge.s32.totalorder %v984, %v999
    %vm1106 = vcmp.ge.s32.totalorder %v985, %v999
    %vm1107 = vcmp.ge.s32.totalorder %v986, %v999
    %vm1108 = vcmp.ge.s32.totalorder %v961, %v1000
    %vm1109 = vcmp.ge.s32.totalorder %v962, %v1000
    %vm1110 = vcmp.ge.s32.totalorder %v963, %v1000
    %vm1111 = vcmp.ge.s32.totalorder %v964, %v1000
    %vm1112 = vcmp.ge.s32.totalorder %v965, %v1000
    %vm1113 = vcmp.ge.s32.totalorder %v966, %v1000
    %vm1114 = vcmp.ge.s32.totalorder %v967, %v1000
    %vm1115 = vcmp.ge.s32.totalorder %v968, %v1000
    %vm1116 = vcmp.ge.s32.totalorder %v969, %v1000
    %vm1117 = vcmp.ge.s32.totalorder %v970, %v1000
    %vm1118 = vcmp.ge.s32.totalorder %v971, %v1000
    %vm1119 = vcmp.ge.s32.totalorder %v972, %v1000
    %vm1120 = vcmp.ge.s32.totalorder %v973, %v1000
    %vm1121 = vcmp.ge.s32.totalorder %v974, %v1000
    %vm1122 = vcmp.ge.s32.totalorder %v975, %v1000
    %vm1123 = vcmp.ge.s32.totalorder %v976, %v1000
    %vm1124 = vcmp.ge.s32.totalorder %v977, %v1000
    %vm1125 = vcmp.ge.s32.totalorder %v978, %v1000
    %vm1126 = vcmp.ge.s32.totalorder %v979, %v1000
    %vm1127 = vcmp.ge.s32.totalorder %v980, %v1000
    %vm1128 = vcmp.ge.s32.totalorder %v981, %v1000
    %vm1129 = vcmp.ge.s32.totalorder %v982, %v1000
    %vm1130 = vcmp.ge.s32.totalorder %v983, %v1000
    %vm1131 = vcmp.ge.s32.totalorder %v984, %v1000
    %vm1132 = vcmp.ge.s32.totalorder %v985, %v1000
    %vm1133 = vcmp.ge.s32.totalorder %v986, %v1000
    %vm1134 = vcmp.ge.s32.totalorder %v961, %v1001
    %vm1135 = vcmp.ge.s32.totalorder %v962, %v1001
    %vm1136 = vcmp.ge.s32.totalorder %v963, %v1001
    %vm1137 = vcmp.ge.s32.totalorder %v964, %v1001
    %vm1138 = vcmp.ge.s32.totalorder %v965, %v1001
    %vm1139 = vcmp.ge.s32.totalorder %v966, %v1001
    %vm1140 = vcmp.ge.s32.totalorder %v967, %v1001
    %vm1141 = vcmp.ge.s32.totalorder %v968, %v1001
    %vm1142 = vcmp.ge.s32.totalorder %v969, %v1001
    %vm1143 = vcmp.ge.s32.totalorder %v970, %v1001
    %vm1144 = vcmp.ge.s32.totalorder %v971, %v1001
    %vm1145 = vcmp.ge.s32.totalorder %v972, %v1001
    %vm1146 = vcmp.ge.s32.totalorder %v973, %v1001
    %vm1147 = vcmp.ge.s32.totalorder %v974, %v1001
    %vm1148 = vcmp.ge.s32.totalorder %v975, %v1001
    %vm1149 = vcmp.ge.s32.totalorder %v976, %v1001
    %vm1150 = vcmp.ge.s32.totalorder %v977, %v1001
    %vm1151 = vcmp.ge.s32.totalorder %v978, %v1001
    %vm1152 = vcmp.ge.s32.totalorder %v979, %v1001
    %vm1153 = vcmp.ge.s32.totalorder %v980, %v1001
    %vm1154 = vcmp.ge.s32.totalorder %v981, %v1001
    %vm1155 = vcmp.ge.s32.totalorder %v982, %v1001
    %vm1156 = vcmp.ge.s32.totalorder %v983, %v1001
    %vm1157 = vcmp.ge.s32.totalorder %v984, %v1001
    %vm1158 = vcmp.ge.s32.totalorder %v985, %v1001
    %vm1159 = vcmp.ge.s32.totalorder %v986, %v1001
    %vm1160 = vcmp.ge.s32.totalorder %v961, %v1002
    %vm1161 = vcmp.ge.s32.totalorder %v962, %v1002
    %vm1162 = vcmp.ge.s32.totalorder %v963, %v1002
    %vm1163 = vcmp.ge.s32.totalorder %v964, %v1002
    %vm1164 = vcmp.ge.s32.totalorder %v965, %v1002
    %vm1165 = vcmp.ge.s32.totalorder %v966, %v1002
    %vm1166 = vcmp.ge.s32.totalorder %v967, %v1002
    %vm1167 = vcmp.ge.s32.totalorder %v968, %v1002
    %vm1168 = vcmp.ge.s32.totalorder %v969, %v1002
    %vm1169 = vcmp.ge.s32.totalorder %v970, %v1002
    %vm1170 = vcmp.ge.s32.totalorder %v971, %v1002
    %vm1171 = vcmp.ge.s32.totalorder %v972, %v1002
    %vm1172 = vcmp.ge.s32.totalorder %v973, %v1002
    %vm1173 = vcmp.ge.s32.totalorder %v974, %v1002
    %vm1174 = vcmp.ge.s32.totalorder %v975, %v1002
    %vm1175 = vcmp.ge.s32.totalorder %v976, %v1002
    %vm1176 = vcmp.ge.s32.totalorder %v977, %v1002
    %vm1177 = vcmp.ge.s32.totalorder %v978, %v1002
    %vm1178 = vcmp.ge.s32.totalorder %v979, %v1002
    %vm1179 = vcmp.ge.s32.totalorder %v980, %v1002
    %vm1180 = vcmp.ge.s32.totalorder %v981, %v1002
    %vm1181 = vcmp.ge.s32.totalorder %v982, %v1002
    %vm1182 = vcmp.ge.s32.totalorder %v983, %v1002
    %vm1183 = vcmp.ge.s32.totalorder %v984, %v1002
    %vm1184 = vcmp.ge.s32.totalorder %v985, %v1002
    %vm1185 = vcmp.ge.s32.totalorder %v986, %v1002
    %vm1186 = vcmp.ge.s32.totalorder %v961, %v1003
    %vm1187 = vcmp.ge.s32.totalorder %v962, %v1003
    %vm1188 = vcmp.ge.s32.totalorder %v963, %v1003
    %vm1189 = vcmp.ge.s32.totalorder %v964, %v1003
    %vm1190 = vcmp.ge.s32.totalorder %v965, %v1003
    %vm1191 = vcmp.ge.s32.totalorder %v966, %v1003
    %vm1192 = vcmp.ge.s32.totalorder %v967, %v1003
    %vm1193 = vcmp.ge.s32.totalorder %v968, %v1003
    %vm1194 = vcmp.ge.s32.totalorder %v969, %v1003
    %vm1195 = vcmp.ge.s32.totalorder %v970, %v1003
    %vm1196 = vcmp.ge.s32.totalorder %v971, %v1003
    %vm1197 = vcmp.ge.s32.totalorder %v972, %v1003
    %vm1198 = vcmp.ge.s32.totalorder %v973, %v1003
    %vm1199 = vcmp.ge.s32.totalorder %v974, %v1003
    %vm1200 = vcmp.ge.s32.totalorder %v975, %v1003
    %vm1201 = vcmp.ge.s32.totalorder %v976, %v1003
    %vm1202 = vcmp.ge.s32.totalorder %v977, %v1003
    %vm1203 = vcmp.ge.s32.totalorder %v978, %v1003
    %vm1204 = vcmp.ge.s32.totalorder %v979, %v1003
    %vm1205 = vcmp.ge.s32.totalorder %v980, %v1003
    %vm1206 = vcmp.ge.s32.totalorder %v981, %v1003
    %vm1207 = vcmp.ge.s32.totalorder %v982, %v1003
    %vm1208 = vcmp.ge.s32.totalorder %v983, %v1003
    %vm1209 = vcmp.ge.s32.totalorder %v984, %v1003
    %vm1210 = vcmp.ge.s32.totalorder %v985, %v1003
    %vm1211 = vcmp.ge.s32.totalorder %v986, %v1003
    %v1212 = vadd.s32 %v996, 51
    %v1213 = vadd.s32 %v997, 51
    %v1214 = vadd.s32 %v998, 51
    %v1215 = vadd.s32 %v999, 51
    %v1216 = vadd.s32 %v1000, 51
    %v1217 = vadd.s32 %v1001, 51
    %v1218 = vadd.s32 %v1002, 51
    %v1219 = vadd.s32 %v1003, 51
    %vm1220 = vcmp.lt.s32.totalorder %v961, %v1212
    %vm1221 = vcmp.lt.s32.totalorder %v962, %v1212
    %vm1222 = vcmp.lt.s32.totalorder %v963, %v1212
    %vm1223 = vcmp.lt.s32.totalorder %v964, %v1212
    %vm1224 = vcmp.lt.s32.totalorder %v965, %v1212
    %vm1225 = vcmp.lt.s32.totalorder %v966, %v1212
    %vm1226 = vcmp.lt.s32.totalorder %v967, %v1212
    %vm1227 = vcmp.lt.s32.totalorder %v968, %v1212
    %vm1228 = vcmp.lt.s32.totalorder %v969, %v1212
    %vm1229 = vcmp.lt.s32.totalorder %v970, %v1212
    %vm1230 = vcmp.lt.s32.totalorder %v971, %v1212
    %vm1231 = vcmp.lt.s32.totalorder %v972, %v1212
    %vm1232 = vcmp.lt.s32.totalorder %v973, %v1212
    %vm1233 = vcmp.lt.s32.totalorder %v974, %v1212
    %vm1234 = vcmp.lt.s32.totalorder %v975, %v1212
    %vm1235 = vcmp.lt.s32.totalorder %v976, %v1212
    %vm1236 = vcmp.lt.s32.totalorder %v977, %v1212
    %vm1237 = vcmp.lt.s32.totalorder %v978, %v1212
    %vm1238 = vcmp.lt.s32.totalorder %v979, %v1212
    %vm1239 = vcmp.lt.s32.totalorder %v980, %v1212
    %vm1240 = vcmp.lt.s32.totalorder %v981, %v1212
    %vm1241 = vcmp.lt.s32.totalorder %v982, %v1212
    %vm1242 = vcmp.lt.s32.totalorder %v983, %v1212
    %vm1243 = vcmp.lt.s32.totalorder %v984, %v1212
    %vm1244 = vcmp.lt.s32.totalorder %v985, %v1212
    %vm1245 = vcmp.lt.s32.totalorder %v986, %v1212
    %vm1246 = vcmp.lt.s32.totalorder %v961, %v1213
    %vm1247 = vcmp.lt.s32.totalorder %v962, %v1213
    %vm1248 = vcmp.lt.s32.totalorder %v963, %v1213
    %vm1249 = vcmp.lt.s32.totalorder %v964, %v1213
    %vm1250 = vcmp.lt.s32.totalorder %v965, %v1213
    %vm1251 = vcmp.lt.s32.totalorder %v966, %v1213
    %vm1252 = vcmp.lt.s32.totalorder %v967, %v1213
    %vm1253 = vcmp.lt.s32.totalorder %v968, %v1213
    %vm1254 = vcmp.lt.s32.totalorder %v969, %v1213
    %vm1255 = vcmp.lt.s32.totalorder %v970, %v1213
    %vm1256 = vcmp.lt.s32.totalorder %v971, %v1213
    %vm1257 = vcmp.lt.s32.totalorder %v972, %v1213
    %vm1258 = vcmp.lt.s32.totalorder %v973, %v1213
    %vm1259 = vcmp.lt.s32.totalorder %v974, %v1213
    %vm1260 = vcmp.lt.s32.totalorder %v975, %v1213
    %vm1261 = vcmp.lt.s32.totalorder %v976, %v1213
    %vm1262 = vcmp.lt.s32.totalorder %v977, %v1213
    %vm1263 = vcmp.lt.s32.totalorder %v978, %v1213
    %vm1264 = vcmp.lt.s32.totalorder %v979, %v1213
    %vm1265 = vcmp.lt.s32.totalorder %v980, %v1213
    %vm1266 = vcmp.lt.s32.totalorder %v981, %v1213
    %vm1267 = vcmp.lt.s32.totalorder %v982, %v1213
    %vm1268 = vcmp.lt.s32.totalorder %v983, %v1213
    %vm1269 = vcmp.lt.s32.totalorder %v984, %v1213
    %vm1270 = vcmp.lt.s32.totalorder %v985, %v1213
    %vm1271 = vcmp.lt.s32.totalorder %v986, %v1213
    %vm1272 = vcmp.lt.s32.totalorder %v961, %v1214
    %vm1273 = vcmp.lt.s32.totalorder %v962, %v1214
    %vm1274 = vcmp.lt.s32.totalorder %v963, %v1214
    %vm1275 = vcmp.lt.s32.totalorder %v964, %v1214
    %vm1276 = vcmp.lt.s32.totalorder %v965, %v1214
    %vm1277 = vcmp.lt.s32.totalorder %v966, %v1214
    %vm1278 = vcmp.lt.s32.totalorder %v967, %v1214
    %vm1279 = vcmp.lt.s32.totalorder %v968, %v1214
    %vm1280 = vcmp.lt.s32.totalorder %v969, %v1214
    %vm1281 = vcmp.lt.s32.totalorder %v970, %v1214
    %vm1282 = vcmp.lt.s32.totalorder %v971, %v1214
    %vm1283 = vcmp.lt.s32.totalorder %v972, %v1214
    %vm1284 = vcmp.lt.s32.totalorder %v973, %v1214
    %vm1285 = vcmp.lt.s32.totalorder %v974, %v1214
    %vm1286 = vcmp.lt.s32.totalorder %v975, %v1214
    %vm1287 = vcmp.lt.s32.totalorder %v976, %v1214
    %vm1288 = vcmp.lt.s32.totalorder %v977, %v1214
    %vm1289 = vcmp.lt.s32.totalorder %v978, %v1214
    %vm1290 = vcmp.lt.s32.totalorder %v979, %v1214
    %vm1291 = vcmp.lt.s32.totalorder %v980, %v1214
    %vm1292 = vcmp.lt.s32.totalorder %v981, %v1214
    %vm1293 = vcmp.lt.s32.totalorder %v982, %v1214
    %vm1294 = vcmp.lt.s32.totalorder %v983, %v1214
    %vm1295 = vcmp.lt.s32.totalorder %v984, %v1214
    %vm1296 = vcmp.lt.s32.totalorder %v985, %v1214
    %vm1297 = vcmp.lt.s32.totalorder %v986, %v1214
    %vm1298 = vcmp.lt.s32.totalorder %v961, %v1215
    %vm1299 = vcmp.lt.s32.totalorder %v962, %v1215
    %vm1300 = vcmp.lt.s32.totalorder %v963, %v1215
    %vm1301 = vcmp.lt.s32.totalorder %v964, %v1215
    %vm1302 = vcmp.lt.s32.totalorder %v965, %v1215
    %vm1303 = vcmp.lt.s32.totalorder %v966, %v1215
    %vm1304 = vcmp.lt.s32.totalorder %v967, %v1215
    %vm1305 = vcmp.lt.s32.totalorder %v968, %v1215
    %vm1306 = vcmp.lt.s32.totalorder %v969, %v1215
    %vm1307 = vcmp.lt.s32.totalorder %v970, %v1215
    %vm1308 = vcmp.lt.s32.totalorder %v971, %v1215
    %vm1309 = vcmp.lt.s32.totalorder %v972, %v1215
    %vm1310 = vcmp.lt.s32.totalorder %v973, %v1215
    %vm1311 = vcmp.lt.s32.totalorder %v974, %v1215
    %vm1312 = vcmp.lt.s32.totalorder %v975, %v1215
    %vm1313 = vcmp.lt.s32.totalorder %v976, %v1215
    %vm1314 = vcmp.lt.s32.totalorder %v977, %v1215
    %vm1315 = vcmp.lt.s32.totalorder %v978, %v1215
    %vm1316 = vcmp.lt.s32.totalorder %v979, %v1215
    %vm1317 = vcmp.lt.s32.totalorder %v980, %v1215
    %vm1318 = vcmp.lt.s32.totalorder %v981, %v1215
    %vm1319 = vcmp.lt.s32.totalorder %v982, %v1215
    %vm1320 = vcmp.lt.s32.totalorder %v983, %v1215
    %vm1321 = vcmp.lt.s32.totalorder %v984, %v1215
    %vm1322 = vcmp.lt.s32.totalorder %v985, %v1215
    %vm1323 = vcmp.lt.s32.totalorder %v986, %v1215
    %vm1324 = vcmp.lt.s32.totalorder %v961, %v1216
    %vm1325 = vcmp.lt.s32.totalorder %v962, %v1216
    %vm1326 = vcmp.lt.s32.totalorder %v963, %v1216
    %vm1327 = vcmp.lt.s32.totalorder %v964, %v1216
    %vm1328 = vcmp.lt.s32.totalorder %v965, %v1216
    %vm1329 = vcmp.lt.s32.totalorder %v966, %v1216
    %vm1330 = vcmp.lt.s32.totalorder %v967, %v1216
    %vm1331 = vcmp.lt.s32.totalorder %v968, %v1216
    %vm1332 = vcmp.lt.s32.totalorder %v969, %v1216
    %vm1333 = vcmp.lt.s32.totalorder %v970, %v1216
    %vm1334 = vcmp.lt.s32.totalorder %v971, %v1216
    %vm1335 = vcmp.lt.s32.totalorder %v972, %v1216
    %vm1336 = vcmp.lt.s32.totalorder %v973, %v1216
    %vm1337 = vcmp.lt.s32.totalorder %v974, %v1216
    %vm1338 = vcmp.lt.s32.totalorder %v975, %v1216
    %vm1339 = vcmp.lt.s32.totalorder %v976, %v1216
    %vm1340 = vcmp.lt.s32.totalorder %v977, %v1216
    %vm1341 = vcmp.lt.s32.totalorder %v978, %v1216
    %vm1342 = vcmp.lt.s32.totalorder %v979, %v1216
    %vm1343 = vcmp.lt.s32.totalorder %v980, %v1216
    %vm1344 = vcmp.lt.s32.totalorder %v981, %v1216
    %vm1345 = vcmp.lt.s32.totalorder %v982, %v1216
    %vm1346 = vcmp.lt.s32.totalorder %v983, %v1216
    %vm1347 = vcmp.lt.s32.totalorder %v984, %v1216
    %vm1348 = vcmp.lt.s32.totalorder %v985, %v1216
    %vm1349 = vcmp.lt.s32.totalorder %v986, %v1216
    %vm1350 = vcmp.lt.s32.totalorder %v961, %v1217
    %vm1351 = vcmp.lt.s32.totalorder %v962, %v1217
    %vm1352 = vcmp.lt.s32.totalorder %v963, %v1217
    %vm1353 = vcmp.lt.s32.totalorder %v964, %v1217
    %vm1354 = vcmp.lt.s32.totalorder %v965, %v1217
    %vm1355 = vcmp.lt.s32.totalorder %v966, %v1217
    %vm1356 = vcmp.lt.s32.totalorder %v967, %v1217
    %vm1357 = vcmp.lt.s32.totalorder %v968, %v1217
    %vm1358 = vcmp.lt.s32.totalorder %v969, %v1217
    %vm1359 = vcmp.lt.s32.totalorder %v970, %v1217
    %vm1360 = vcmp.lt.s32.totalorder %v971, %v1217
    %vm1361 = vcmp.lt.s32.totalorder %v972, %v1217
    %vm1362 = vcmp.lt.s32.totalorder %v973, %v1217
    %vm1363 = vcmp.lt.s32.totalorder %v974, %v1217
    %vm1364 = vcmp.lt.s32.totalorder %v975, %v1217
    %vm1365 = vcmp.lt.s32.totalorder %v976, %v1217
    %vm1366 = vcmp.lt.s32.totalorder %v977, %v1217
    %vm1367 = vcmp.lt.s32.totalorder %v978, %v1217
    %vm1368 = vcmp.lt.s32.totalorder %v979, %v1217
    %vm1369 = vcmp.lt.s32.totalorder %v980, %v1217
    %vm1370 = vcmp.lt.s32.totalorder %v981, %v1217
    %vm1371 = vcmp.lt.s32.totalorder %v982, %v1217
    %vm1372 = vcmp.lt.s32.totalorder %v983, %v1217
    %vm1373 = vcmp.lt.s32.totalorder %v984, %v1217
    %vm1374 = vcmp.lt.s32.totalorder %v985, %v1217
    %vm1375 = vcmp.lt.s32.totalorder %v986, %v1217
    %vm1376 = vcmp.lt.s32.totalorder %v961, %v1218
    %vm1377 = vcmp.lt.s32.totalorder %v962, %v1218
    %vm1378 = vcmp.lt.s32.totalorder %v963, %v1218
    %vm1379 = vcmp.lt.s32.totalorder %v964, %v1218
    %vm1380 = vcmp.lt.s32.totalorder %v965, %v1218
    %vm1381 = vcmp.lt.s32.totalorder %v966, %v1218
    %vm1382 = vcmp.lt.s32.totalorder %v967, %v1218
    %vm1383 = vcmp.lt.s32.totalorder %v968, %v1218
    %vm1384 = vcmp.lt.s32.totalorder %v969, %v1218
    %vm1385 = vcmp.lt.s32.totalorder %v970, %v1218
    %vm1386 = vcmp.lt.s32.totalorder %v971, %v1218
    %vm1387 = vcmp.lt.s32.totalorder %v972, %v1218
    %vm1388 = vcmp.lt.s32.totalorder %v973, %v1218
    %vm1389 = vcmp.lt.s32.totalorder %v974, %v1218
    %vm1390 = vcmp.lt.s32.totalorder %v975, %v1218
    %vm1391 = vcmp.lt.s32.totalorder %v976, %v1218
    %vm1392 = vcmp.lt.s32.totalorder %v977, %v1218
    %vm1393 = vcmp.lt.s32.totalorder %v978, %v1218
    %vm1394 = vcmp.lt.s32.totalorder %v979, %v1218
    %vm1395 = vcmp.lt.s32.totalorder %v980, %v1218
    %vm1396 = vcmp.lt.s32.totalorder %v981, %v1218
    %vm1397 = vcmp.lt.s32.totalorder %v982, %v1218
    %vm1398 = vcmp.lt.s32.totalorder %v983, %v1218
    %vm1399 = vcmp.lt.s32.totalorder %v984, %v1218
    %vm1400 = vcmp.lt.s32.totalorder %v985, %v1218
    %vm1401 = vcmp.lt.s32.totalorder %v986, %v1218
    %vm1402 = vcmp.lt.s32.totalorder %v961, %v1219
    %vm1403 = vcmp.lt.s32.totalorder %v962, %v1219
    %vm1404 = vcmp.lt.s32.totalorder %v963, %v1219
    %vm1405 = vcmp.lt.s32.totalorder %v964, %v1219
    %vm1406 = vcmp.lt.s32.totalorder %v965, %v1219
    %vm1407 = vcmp.lt.s32.totalorder %v966, %v1219
    %vm1408 = vcmp.lt.s32.totalorder %v967, %v1219
    %vm1409 = vcmp.lt.s32.totalorder %v968, %v1219
    %vm1410 = vcmp.lt.s32.totalorder %v969, %v1219
    %vm1411 = vcmp.lt.s32.totalorder %v970, %v1219
    %vm1412 = vcmp.lt.s32.totalorder %v971, %v1219
    %vm1413 = vcmp.lt.s32.totalorder %v972, %v1219
    %vm1414 = vcmp.lt.s32.totalorder %v973, %v1219
    %vm1415 = vcmp.lt.s32.totalorder %v974, %v1219
    %vm1416 = vcmp.lt.s32.totalorder %v975, %v1219
    %vm1417 = vcmp.lt.s32.totalorder %v976, %v1219
    %vm1418 = vcmp.lt.s32.totalorder %v977, %v1219
    %vm1419 = vcmp.lt.s32.totalorder %v978, %v1219
    %vm1420 = vcmp.lt.s32.totalorder %v979, %v1219
    %vm1421 = vcmp.lt.s32.totalorder %v980, %v1219
    %vm1422 = vcmp.lt.s32.totalorder %v981, %v1219
    %vm1423 = vcmp.lt.s32.totalorder %v982, %v1219
    %vm1424 = vcmp.lt.s32.totalorder %v983, %v1219
    %vm1425 = vcmp.lt.s32.totalorder %v984, %v1219
    %vm1426 = vcmp.lt.s32.totalorder %v985, %v1219
    %vm1427 = vcmp.lt.s32.totalorder %v986, %v1219
    %vm1428 = vmand %vm1004, %vm1220
    %vm1429 = vmand %vm1005, %vm1221
    %vm1430 = vmand %vm1006, %vm1222
    %vm1431 = vmand %vm1007, %vm1223
    %vm1432 = vmand %vm1008, %vm1224
    %vm1433 = vmand %vm1009, %vm1225
    %vm1434 = vmand %vm1010, %vm1226
    %vm1435 = vmand %vm1011, %vm1227
    %vm1436 = vmand %vm1012, %vm1228
    %vm1437 = vmand %vm1013, %vm1229
    %vm1438 = vmand %vm1014, %vm1230
    %vm1439 = vmand %vm1015, %vm1231
    %vm1440 = vmand %vm1016, %vm1232
    %vm1441 = vmand %vm1017, %vm1233
    %vm1442 = vmand %vm1018, %vm1234
    %vm1443 = vmand %vm1019, %vm1235
    %vm1444 = vmand %vm1020, %vm1236
    %vm1445 = vmand %vm1021, %vm1237
    %vm1446 = vmand %vm1022, %vm1238
    %vm1447 = vmand %vm1023, %vm1239
    %vm1448 = vmand %vm1024, %vm1240
    %vm1449 = vmand %vm1025, %vm1241
    %vm1450 = vmand %vm1026, %vm1242
    %vm1451 = vmand %vm1027, %vm1243
    %vm1452 = vmand %vm1028, %vm1244
    %vm1453 = vmand %vm1029, %vm1245
    %vm1454 = vmand %vm1030, %vm1246
    %vm1455 = vmand %vm1031, %vm1247
    %vm1456 = vmand %vm1032, %vm1248
    %vm1457 = vmand %vm1033, %vm1249
    %vm1458 = vmand %vm1034, %vm1250
    %vm1459 = vmand %vm1035, %vm1251
    %vm1460 = vmand %vm1036, %vm1252
    %vm1461 = vmand %vm1037, %vm1253
    %vm1462 = vmand %vm1038, %vm1254
    %vm1463 = vmand %vm1039, %vm1255
    %vm1464 = vmand %vm1040, %vm1256
    %vm1465 = vmand %vm1041, %vm1257
    %vm1466 = vmand %vm1042, %vm1258
    %vm1467 = vmand %vm1043, %vm1259
    %vm1468 = vmand %vm1044, %vm1260
    %vm1469 = vmand %vm1045, %vm1261
    %vm1470 = vmand %vm1046, %vm1262
    %vm1471 = vmand %vm1047, %vm1263
    %vm1472 = vmand %vm1048, %vm1264
    %vm1473 = vmand %vm1049, %vm1265
    %vm1474 = vmand %vm1050, %vm1266
    %vm1475 = vmand %vm1051, %vm1267
    %vm1476 = vmand %vm1052, %vm1268
    %vm1477 = vmand %vm1053, %vm1269
    %vm1478 = vmand %vm1054, %vm1270
    %vm1479 = vmand %vm1055, %vm1271
    %vm1480 = vmand %vm1056, %vm1272
    %vm1481 = vmand %vm1057, %vm1273
    %vm1482 = vmand %vm1058, %vm1274
    %vm1483 = vmand %vm1059, %vm1275
    %vm1484 = vmand %vm1060, %vm1276
    %vm1485 = vmand %vm1061, %vm1277
    %vm1486 = vmand %vm1062, %vm1278
    %vm1487 = vmand %vm1063, %vm1279
    %vm1488 = vmand %vm1064, %vm1280
    %vm1489 = vmand %vm1065, %vm1281
    %vm1490 = vmand %vm1066, %vm1282
    %vm1491 = vmand %vm1067, %vm1283
    %vm1492 = vmand %vm1068, %vm1284
    %vm1493 = vmand %vm1069, %vm1285
    %vm1494 = vmand %vm1070, %vm1286
    %vm1495 = vmand %vm1071, %vm1287
    %vm1496 = vmand %vm1072, %vm1288
    %vm1497 = vmand %vm1073, %vm1289
    %vm1498 = vmand %vm1074, %vm1290
    %vm1499 = vmand %vm1075, %vm1291
    %vm1500 = vmand %vm1076, %vm1292
    %vm1501 = vmand %vm1077, %vm1293
    %vm1502 = vmand %vm1078, %vm1294
    %vm1503 = vmand %vm1079, %vm1295
    %vm1504 = vmand %vm1080, %vm1296
    %vm1505 = vmand %vm1081, %vm1297
    %vm1506 = vmand %vm1082, %vm1298
    %vm1507 = vmand %vm1083, %vm1299
    %vm1508 = vmand %vm1084, %vm1300
    %vm1509 = vmand %vm1085, %vm1301
    %vm1510 = vmand %vm1086, %vm1302
    %vm1511 = vmand %vm1087, %vm1303
    %vm1512 = vmand %vm1088, %vm1304
    %vm1513 = vmand %vm1089, %vm1305
    %vm1514 = vmand %vm1090, %vm1306
    %vm1515 = vmand %vm1091, %vm1307
    %vm1516 = vmand %vm1092, %vm1308
    %vm1517 = vmand %vm1093, %vm1309
    %vm1518 = vmand %vm1094, %vm1310
    %vm1519 = vmand %vm1095, %vm1311
    %vm1520 = vmand %vm1096, %vm1312
    %vm1521 = vmand %vm1097, %vm1313
    %vm1522 = vmand %vm1098, %vm1314
    %vm1523 = vmand %vm1099, %vm1315
    %vm1524 = vmand %vm1100, %vm1316
    %vm1525 = vmand %vm1101, %vm1317
    %vm1526 = vmand %vm1102, %vm1318
    %vm1527 = vmand %vm1103, %vm1319
    %vm1528 = vmand %vm1104, %vm1320
    %vm1529 = vmand %vm1105, %vm1321
    %vm1530 = vmand %vm1106, %vm1322
    %vm1531 = vmand %vm1107, %vm1323
    %vm1532 = vmand %vm1108, %vm1324
    %vm1533 = vmand %vm1109, %vm1325
    %vm1534 = vmand %vm1110, %vm1326
    %vm1535 = vmand %vm1111, %vm1327
    %vm1536 = vmand %vm1112, %vm1328
    %vm1537 = vmand %vm1113, %vm1329
    %vm1538 = vmand %vm1114, %vm1330
    %vm1539 = vmand %vm1115, %vm1331
    %vm1540 = vmand %vm1116, %vm1332
    %vm1541 = vmand %vm1117, %vm1333
    %vm1542 = vmand %vm1118, %vm1334
    %vm1543 = vmand %vm1119, %vm1335
    %vm1544 = vmand %vm1120, %vm1336
    %vm1545 = vmand %vm1121, %vm1337
    %vm1546 = vmand %vm1122, %vm1338
    %vm1547 = vmand %vm1123, %vm1339
    %vm1548 = vmand %vm1124, %vm1340
    %vm1549 = vmand %vm1125, %vm1341
    %vm1550 = vmand %vm1126, %vm1342
    %vm1551 = vmand %vm1127, %vm1343
    %vm1552 = vmand %vm1128, %vm1344
    %vm1553 = vmand %vm1129, %vm1345
    %vm1554 = vmand %vm1130, %vm1346
    %vm1555 = vmand %vm1131, %vm1347
    %vm1556 = vmand %vm1132, %vm1348
    %vm1557 = vmand %vm1133, %vm1349
    %vm1558 = vmand %vm1134, %vm1350
    %vm1559 = vmand %vm1135, %vm1351
    %vm1560 = vmand %vm1136, %vm1352
    %vm1561 = vmand %vm1137, %vm1353
    %vm1562 = vmand %vm1138, %vm1354
    %vm1563 = vmand %vm1139, %vm1355
    %vm1564 = vmand %vm1140, %vm1356
    %vm1565 = vmand %vm1141, %vm1357
    %vm1566 = vmand %vm1142, %vm1358
    %vm1567 = vmand %vm1143, %vm1359
    %vm1568 = vmand %vm1144, %vm1360
    %vm1569 = vmand %vm1145, %vm1361
    %vm1570 = vmand %vm1146, %vm1362
    %vm1571 = vmand %vm1147, %vm1363
    %vm1572 = vmand %vm1148, %vm1364
    %vm1573 = vmand %vm1149, %vm1365
    %vm1574 = vmand %vm1150, %vm1366
    %vm1575 = vmand %vm1151, %vm1367
    %vm1576 = vmand %vm1152, %vm1368
    %vm1577 = vmand %vm1153, %vm1369
    %vm1578 = vmand %vm1154, %vm1370
    %vm1579 = vmand %vm1155, %vm1371
    %vm1580 = vmand %vm1156, %vm1372
    %vm1581 = vmand %vm1157, %vm1373
    %vm1582 = vmand %vm1158, %vm1374
    %vm1583 = vmand %vm1159, %vm1375
    %vm1584 = vmand %vm1160, %vm1376
    %vm1585 = vmand %vm1161, %vm1377
    %vm1586 = vmand %vm1162, %vm1378
    %vm1587 = vmand %vm1163, %vm1379
    %vm1588 = vmand %vm1164, %vm1380
    %vm1589 = vmand %vm1165, %vm1381
    %vm1590 = vmand %vm1166, %vm1382
    %vm1591 = vmand %vm1167, %vm1383
    %vm1592 = vmand %vm1168, %vm1384
    %vm1593 = vmand %vm1169, %vm1385
    %vm1594 = vmand %vm1170, %vm1386
    %vm1595 = vmand %vm1171, %vm1387
    %vm1596 = vmand %vm1172, %vm1388
    %vm1597 = vmand %vm1173, %vm1389
    %vm1598 = vmand %vm1174, %vm1390
    %vm1599 = vmand %vm1175, %vm1391
    %vm1600 = vmand %vm1176, %vm1392
    %vm1601 = vmand %vm1177, %vm1393
    %vm1602 = vmand %vm1178, %vm1394
    %vm1603 = vmand %vm1179, %vm1395
    %vm1604 = vmand %vm1180, %vm1396
    %vm1605 = vmand %vm1181, %vm1397
    %vm1606 = vmand %vm1182, %vm1398
    %vm1607 = vmand %vm1183, %vm1399
    %vm1608 = vmand %vm1184, %vm1400
    %vm1609 = vmand %vm1185, %vm1401
    %vm1610 = vmand %vm1186, %vm1402
    %vm1611 = vmand %vm1187, %vm1403
    %vm1612 = vmand %vm1188, %vm1404
    %vm1613 = vmand %vm1189, %vm1405
    %vm1614 = vmand %vm1190, %vm1406
    %vm1615 = vmand %vm1191, %vm1407
    %vm1616 = vmand %vm1192, %vm1408
    %vm1617 = vmand %vm1193, %vm1409
    %vm1618 = vmand %vm1194, %vm1410
    %vm1619 = vmand %vm1195, %vm1411
    %vm1620 = vmand %vm1196, %vm1412
    %vm1621 = vmand %vm1197, %vm1413
    %vm1622 = vmand %vm1198, %vm1414
    %vm1623 = vmand %vm1199, %vm1415
    %vm1624 = vmand %vm1200, %vm1416
    %vm1625 = vmand %vm1201, %vm1417
    %vm1626 = vmand %vm1202, %vm1418
    %vm1627 = vmand %vm1203, %vm1419
    %vm1628 = vmand %vm1204, %vm1420
    %vm1629 = vmand %vm1205, %vm1421
    %vm1630 = vmand %vm1206, %vm1422
    %vm1631 = vmand %vm1207, %vm1423
    %vm1632 = vmand %vm1208, %vm1424
    %vm1633 = vmand %vm1209, %vm1425
    %vm1634 = vmand %vm1210, %vm1426
    %vm1635 = vmand %vm1211, %vm1427
    %v1636 = vsel %vm1428, 1.0, 0.0
    %v1637 = vsel %vm1429, 1.0, 0.0
    %v1638 = vsel %vm1430, 1.0, 0.0
    %v1639 = vsel %vm1431, 1.0, 0.0
    %v1640 = vsel %vm1432, 1.0, 0.0
    %v1641 = vsel %vm1433, 1.0, 0.0
    %v1642 = vsel %vm1434, 1.0, 0.0
    %v1643 = vsel %vm1435, 1.0, 0.0
    %v1644 = vsel %vm1436, 1.0, 0.0
    %v1645 = vsel %vm1437, 1.0, 0.0
    %v1646 = vsel %vm1438, 1.0, 0.0
    %v1647 = vsel %vm1439, 1.0, 0.0
    %v1648 = vsel %vm1440, 1.0, 0.0
    %v1649 = vsel %vm1441, 1.0, 0.0
    %v1650 = vsel %vm1442, 1.0, 0.0
    %v1651 = vsel %vm1443, 1.0, 0.0
    %v1652 = vsel %vm1444, 1.0, 0.0
    %v1653 = vsel %vm1445, 1.0, 0.0
    %v1654 = vsel %vm1446, 1.0, 0.0
    %v1655 = vsel %vm1447, 1.0, 0.0
    %v1656 = vsel %vm1448, 1.0, 0.0
    %v1657 = vsel %vm1449, 1.0, 0.0
    %v1658 = vsel %vm1450, 1.0, 0.0
    %v1659 = vsel %vm1451, 1.0, 0.0
    %v1660 = vsel %vm1452, 1.0, 0.0
    %v1661 = vsel %vm1453, 1.0, 0.0
    %v1662 = vsel %vm1454, 1.0, 0.0
    %v1663 = vsel %vm1455, 1.0, 0.0
    %v1664 = vsel %vm1456, 1.0, 0.0
    %v1665 = vsel %vm1457, 1.0, 0.0
    %v1666 = vsel %vm1458, 1.0, 0.0
    %v1667 = vsel %vm1459, 1.0, 0.0
    %v1668 = vsel %vm1460, 1.0, 0.0
    %v1669 = vsel %vm1461, 1.0, 0.0
    %v1670 = vsel %vm1462, 1.0, 0.0
    %v1671 = vsel %vm1463, 1.0, 0.0
    %v1672 = vsel %vm1464, 1.0, 0.0
    %v1673 = vsel %vm1465, 1.0, 0.0
    %v1674 = vsel %vm1466, 1.0, 0.0
    %v1675 = vsel %vm1467, 1.0, 0.0
    %v1676 = vsel %vm1468, 1.0, 0.0
    %v1677 = vsel %vm1469, 1.0, 0.0
    %v1678 = vsel %vm1470, 1.0, 0.0
    %v1679 = vsel %vm1471, 1.0, 0.0
    %v1680 = vsel %vm1472, 1.0, 0.0
    %v1681 = vsel %vm1473, 1.0, 0.0
    %v1682 = vsel %vm1474, 1.0, 0.0
    %v1683 = vsel %vm1475, 1.0, 0.0
    %v1684 = vsel %vm1476, 1.0, 0.0
    %v1685 = vsel %vm1477, 1.0, 0.0
    %v1686 = vsel %vm1478, 1.0, 0.0
    %v1687 = vsel %vm1479, 1.0, 0.0
    %v1688 = vsel %vm1480, 1.0, 0.0
    %v1689 = vsel %vm1481, 1.0, 0.0
    %v1690 = vsel %vm1482, 1.0, 0.0
    %v1691 = vsel %vm1483, 1.0, 0.0
    %v1692 = vsel %vm1484, 1.0, 0.0
    %v1693 = vsel %vm1485, 1.0, 0.0
    %v1694 = vsel %vm1486, 1.0, 0.0
    %v1695 = vsel %vm1487, 1.0, 0.0
    %v1696 = vsel %vm1488, 1.0, 0.0
    %v1697 = vsel %vm1489, 1.0, 0.0
    %v1698 = vsel %vm1490, 1.0, 0.0
    %v1699 = vsel %vm1491, 1.0, 0.0
    %v1700 = vsel %vm1492, 1.0, 0.0
    %v1701 = vsel %vm1493, 1.0, 0.0
    %v1702 = vsel %vm1494, 1.0, 0.0
    %v1703 = vsel %vm1495, 1.0, 0.0
    %v1704 = vsel %vm1496, 1.0, 0.0
    %v1705 = vsel %vm1497, 1.0, 0.0
    %v1706 = vsel %vm1498, 1.0, 0.0
    %v1707 = vsel %vm1499, 1.0, 0.0
    %v1708 = vsel %vm1500, 1.0, 0.0
    %v1709 = vsel %vm1501, 1.0, 0.0
    %v1710 = vsel %vm1502, 1.0, 0.0
    %v1711 = vsel %vm1503, 1.0, 0.0
    %v1712 = vsel %vm1504, 1.0, 0.0
    %v1713 = vsel %vm1505, 1.0, 0.0
    %v1714 = vsel %vm1506, 1.0, 0.0
    %v1715 = vsel %vm1507, 1.0, 0.0
    %v1716 = vsel %vm1508, 1.0, 0.0
    %v1717 = vsel %vm1509, 1.0, 0.0
    %v1718 = vsel %vm1510, 1.0, 0.0
    %v1719 = vsel %vm1511, 1.0, 0.0
    %v1720 = vsel %vm1512, 1.0, 0.0
    %v1721 = vsel %vm1513, 1.0, 0.0
    %v1722 = vsel %vm1514, 1.0, 0.0
    %v1723 = vsel %vm1515, 1.0, 0.0
    %v1724 = vsel %vm1516, 1.0, 0.0
    %v1725 = vsel %vm1517, 1.0, 0.0
    %v1726 = vsel %vm1518, 1.0, 0.0
    %v1727 = vsel %vm1519, 1.0, 0.0
    %v1728 = vsel %vm1520, 1.0, 0.0
    %v1729 = vsel %vm1521, 1.0, 0.0
    %v1730 = vsel %vm1522, 1.0, 0.0
    %v1731 = vsel %vm1523, 1.0, 0.0
    %v1732 = vsel %vm1524, 1.0, 0.0
    %v1733 = vsel %vm1525, 1.0, 0.0
    %v1734 = vsel %vm1526, 1.0, 0.0
    %v1735 = vsel %vm1527, 1.0, 0.0
    %v1736 = vsel %vm1528, 1.0, 0.0
    %v1737 = vsel %vm1529, 1.0, 0.0
    %v1738 = vsel %vm1530, 1.0, 0.0
    %v1739 = vsel %vm1531, 1.0, 0.0
    %v1740 = vsel %vm1532, 1.0, 0.0
    %v1741 = vsel %vm1533, 1.0, 0.0
    %v1742 = vsel %vm1534, 1.0, 0.0
    %v1743 = vsel %vm1535, 1.0, 0.0
    %v1744 = vsel %vm1536, 1.0, 0.0
    %v1745 = vsel %vm1537, 1.0, 0.0
    %v1746 = vsel %vm1538, 1.0, 0.0
    %v1747 = vsel %vm1539, 1.0, 0.0
    %v1748 = vsel %vm1540, 1.0, 0.0
    %v1749 = vsel %vm1541, 1.0, 0.0
    %v1750 = vsel %vm1542, 1.0, 0.0
    %v1751 = vsel %vm1543, 1.0, 0.0
    %v1752 = vsel %vm1544, 1.0, 0.0
    %v1753 = vsel %vm1545, 1.0, 0.0
    %v1754 = vsel %vm1546, 1.0, 0.0
    %v1755 = vsel %vm1547, 1.0, 0.0
    %v1756 = vsel %vm1548, 1.0, 0.0
    %v1757 = vsel %vm1549, 1.0, 0.0
    %v1758 = vsel %vm1550, 1.0, 0.0
    %v1759 = vsel %vm1551, 1.0, 0.0
    %v1760 = vsel %vm1552, 1.0, 0.0
    %v1761 = vsel %vm1553, 1.0, 0.0
    %v1762 = vsel %vm1554, 1.0, 0.0
    %v1763 = vsel %vm1555, 1.0, 0.0
    %v1764 = vsel %vm1556, 1.0, 0.0
    %v1765 = vsel %vm1557, 1.0, 0.0
    %v1766 = vsel %vm1558, 1.0, 0.0
    %v1767 = vsel %vm1559, 1.0, 0.0
    %v1768 = vsel %vm1560, 1.0, 0.0
    %v1769 = vsel %vm1561, 1.0, 0.0
    %v1770 = vsel %vm1562, 1.0, 0.0
    %v1771 = vsel %vm1563, 1.0, 0.0
    %v1772 = vsel %vm1564, 1.0, 0.0
    %v1773 = vsel %vm1565, 1.0, 0.0
    %v1774 = vsel %vm1566, 1.0, 0.0
    %v1775 = vsel %vm1567, 1.0, 0.0
    %v1776 = vsel %vm1568, 1.0, 0.0
    %v1777 = vsel %vm1569, 1.0, 0.0
    %v1778 = vsel %vm1570, 1.0, 0.0
    %v1779 = vsel %vm1571, 1.0, 0.0
    %v1780 = vsel %vm1572, 1.0, 0.0
    %v1781 = vsel %vm1573, 1.0, 0.0
    %v1782 = vsel %vm1574, 1.0, 0.0
    %v1783 = vsel %vm1575, 1.0, 0.0
    %v1784 = vsel %vm1576, 1.0, 0.0
    %v1785 = vsel %vm1577, 1.0, 0.0
    %v1786 = vsel %vm1578, 1.0, 0.0
    %v1787 = vsel %vm1579, 1.0, 0.0
    %v1788 = vsel %vm1580, 1.0, 0.0
    %v1789 = vsel %vm1581, 1.0, 0.0
    %v1790 = vsel %vm1582, 1.0, 0.0
    %v1791 = vsel %vm1583, 1.0, 0.0
    %v1792 = vsel %vm1584, 1.0, 0.0
    %v1793 = vsel %vm1585, 1.0, 0.0
    %v1794 = vsel %vm1586, 1.0, 0.0
    %v1795 = vsel %vm1587, 1.0, 0.0
    %v1796 = vsel %vm1588, 1.0, 0.0
    %v1797 = vsel %vm1589, 1.0, 0.0
    %v1798 = vsel %vm1590, 1.0, 0.0
    %v1799 = vsel %vm1591, 1.0, 0.0
    %v1800 = vsel %vm1592, 1.0, 0.0
    %v1801 = vsel %vm1593, 1.0, 0.0
    %v1802 = vsel %vm1594, 1.0, 0.0
    %v1803 = vsel %vm1595, 1.0, 0.0
    %v1804 = vsel %vm1596, 1.0, 0.0
    %v1805 = vsel %vm1597, 1.0, 0.0
    %v1806 = vsel %vm1598, 1.0, 0.0
    %v1807 = vsel %vm1599, 1.0, 0.0
    %v1808 = vsel %vm1600, 1.0, 0.0
    %v1809 = vsel %vm1601, 1.0, 0.0
    %v1810 = vsel %vm1602, 1.0, 0.0
    %v1811 = vsel %vm1603, 1.0, 0.0
    %v1812 = vsel %vm1604, 1.0, 0.0
    %v1813 = vsel %vm1605, 1.0, 0.0
    %v1814 = vsel %vm1606, 1.0, 0.0
    %v1815 = vsel %vm1607, 1.0, 0.0
    %v1816 = vsel %vm1608, 1.0, 0.0
    %v1817 = vsel %vm1609, 1.0, 0.0
    %v1818 = vsel %vm1610, 1.0, 0.0
    %v1819 = vsel %vm1611, 1.0, 0.0
    %v1820 = vsel %vm1612, 1.0, 0.0
    %v1821 = vsel %vm1613, 1.0, 0.0
    %v1822 = vsel %vm1614, 1.0, 0.0
    %v1823 = vsel %vm1615, 1.0, 0.0
    %v1824 = vsel %vm1616, 1.0, 0.0
    %v1825 = vsel %vm1617, 1.0, 0.0
    %v1826 = vsel %vm1618, 1.0, 0.0
    %v1827 = vsel %vm1619, 1.0, 0.0
    %v1828 = vsel %vm1620, 1.0, 0.0
    %v1829 = vsel %vm1621, 1.0, 0.0
    %v1830 = vsel %vm1622, 1.0, 0.0
    %v1831 = vsel %vm1623, 1.0, 0.0
    %v1832 = vsel %vm1624, 1.0, 0.0
    %v1833 = vsel %vm1625, 1.0, 0.0
    %v1834 = vsel %vm1626, 1.0, 0.0
    %v1835 = vsel %vm1627, 1.0, 0.0
    %v1836 = vsel %vm1628, 1.0, 0.0
    %v1837 = vsel %vm1629, 1.0, 0.0
    %v1838 = vsel %vm1630, 1.0, 0.0
    %v1839 = vsel %vm1631, 1.0, 0.0
    %v1840 = vsel %vm1632, 1.0, 0.0
    %v1841 = vsel %vm1633, 1.0, 0.0
    %v1842 = vsel %vm1634, 1.0, 0.0
    %v1843 = vsel %vm1635, 1.0, 0.0
    %v1844 = vpack.c.bf16 %v911, %v909
    %v1845 = vpack.c.bf16 %v915, %v913
    %v1846 = vpack.c.bf16 %v919, %v917
    %v1847 = vpack.c.bf16 %v923, %v921
    %v1848 = vpack.c.bf16 %v927, %v925
    %v1849 = vpack.c.bf16 %v931, %v929
    %v1850 = vpack.c.bf16 %v935, %v933
    %v1851 = vpack.c.bf16 %v939, %v937
    %v1852 = vpack.c.bf16 %v943, %v941
    %v1853 = vpack.c.bf16 %v947, %v945
    %v1854 = vpack.c.bf16 %v951, %v949
    %v1855 = vpack.c.bf16 %v955, %v953
    %v1856 = vpack.c.bf16 %v959, %v957
    %v1857 = vunpack.c.l.bf16 %v1844
    %v1858 = vunpack.c.h.bf16 %v1844
    %v1859 = vunpack.c.l.bf16 %v1845
    %v1860 = vunpack.c.h.bf16 %v1845
    %v1861 = vunpack.c.l.bf16 %v1846
    %v1862 = vunpack.c.h.bf16 %v1846
    %v1863 = vunpack.c.l.bf16 %v1847
    %v1864 = vunpack.c.h.bf16 %v1847
    %v1865 = vunpack.c.l.bf16 %v1848
    %v1866 = vunpack.c.h.bf16 %v1848
    %v1867 = vunpack.c.l.bf16 %v1849
    %v1868 = vunpack.c.h.bf16 %v1849
    %v1869 = vunpack.c.l.bf16 %v1850
    %v1870 = vunpack.c.h.bf16 %v1850
    %v1871 = vunpack.c.l.bf16 %v1851
    %v1872 = vunpack.c.h.bf16 %v1851
    %v1873 = vunpack.c.l.bf16 %v1852
    %v1874 = vunpack.c.h.bf16 %v1852
    %v1875 = vunpack.c.l.bf16 %v1853
    %v1876 = vunpack.c.h.bf16 %v1853
    %v1877 = vunpack.c.l.bf16 %v1854
    %v1878 = vunpack.c.h.bf16 %v1854
    %v1879 = vunpack.c.l.bf16 %v1855
    %v1880 = vunpack.c.h.bf16 %v1855
    %v1881 = vunpack.c.l.bf16 %v1856
    %v1882 = vunpack.c.h.bf16 %v1856
    %v1883 = vsub.f32 %v909, %v1857
    %v1884 = vsub.f32 %v911, %v1858
    %v1885 = vsub.f32 %v913, %v1859
    %v1886 = vsub.f32 %v915, %v1860
    %v1887 = vsub.f32 %v917, %v1861
    %v1888 = vsub.f32 %v919, %v1862
    %v1889 = vsub.f32 %v921, %v1863
    %v1890 = vsub.f32 %v923, %v1864
    %v1891 = vsub.f32 %v925, %v1865
    %v1892 = vsub.f32 %v927, %v1866
    %v1893 = vsub.f32 %v929, %v1867
    %v1894 = vsub.f32 %v931, %v1868
    %v1895 = vsub.f32 %v933, %v1869
    %v1896 = vsub.f32 %v935, %v1870
    %v1897 = vsub.f32 %v937, %v1871
    %v1898 = vsub.f32 %v939, %v1872
    %v1899 = vsub.f32 %v941, %v1873
    %v1900 = vsub.f32 %v943, %v1874
    %v1901 = vsub.f32 %v945, %v1875
    %v1902 = vsub.f32 %v947, %v1876
    %v1903 = vsub.f32 %v949, %v1877
    %v1904 = vsub.f32 %v951, %v1878
    %v1905 = vsub.f32 %v953, %v1879
    %v1906 = vsub.f32 %v955, %v1880
    %v1907 = vsub.f32 %v957, %v1881
    %v1908 = vsub.f32 %v959, %v1882
    %vm1909 = vcmask 523264
    %v1911 = vsel %vm1909, %v1908, 0
    %v1914 = vsel %vm1909, %v1661, 0
    %v1917 = vsel %vm1909, %v1687, 0
    %v1920 = vsel %vm1909, %v1713, 0
    %v1923 = vsel %vm1909, %v1739, 0
    %v1926 = vsel %vm1909, %v1765, 0
    %v1929 = vsel %vm1909, %v1791, 0
    %v1932 = vsel %vm1909, %v1817, 0
    %v1935 = vsel %vm1909, %v1843, 0
    %1937 = vmatpush.xpose.msra.mxu0 0.0
    %1938 = vmatpush.xpose.msra.mxu0 0.0
    %1939 = vmatpush.xpose.msra.mxu0 0.0
    %1940 = vmatpush.xpose.msra.mxu0 0.0
    %1941 = vmatpush.xpose.msra.mxu0 0.0
    %1942 = vmatpush.xpose.msra.mxu0 0.0
    %1943 = vmatpush.xpose.msra.mxu0 0.0
    %1944 = vmatpush.xpose.msra.mxu0 0.0
    %1945 = vmatpush.xpose.msra.mxu0 %v1818
    %1946 = vmatpush.xpose.msra.mxu0 %v1792
    %1947 = vmatpush.xpose.msra.mxu0 %v1766
    %1948 = vmatpush.xpose.msra.mxu0 %v1740
    %1949 = vmatpush.xpose.msra.mxu0 %v1714
    %1950 = vmatpush.xpose.msra.mxu0 %v1688
    %1951 = vmatpush.xpose.msra.mxu0 %v1662
    %1952 = vmatpush.xpose.msra.mxu0 %v1636
    %1953 = vmatmul.f32.gmra.mxu0 %v1883
    %v1954 = vpop.f32.mrf.mxu0
    %v1955 = vadd.f32 0.0, %v1954
    %1956 = vdwg.mxu0
    %1957 = vmatpush.xpose.msra.mxu0 0.0
    %1958 = vmatpush.xpose.msra.mxu0 0.0
    %1959 = vmatpush.xpose.msra.mxu0 0.0
    %1960 = vmatpush.xpose.msra.mxu0 0.0
    %1961 = vmatpush.xpose.msra.mxu0 0.0
    %1962 = vmatpush.xpose.msra.mxu0 0.0
    %1963 = vmatpush.xpose.msra.mxu0 0.0
    %1964 = vmatpush.xpose.msra.mxu0 0.0
    %1965 = vmatpush.xpose.msra.mxu0 %v1819
    %1966 = vmatpush.xpose.msra.mxu0 %v1793
    %1967 = vmatpush.xpose.msra.mxu0 %v1767
    %1968 = vmatpush.xpose.msra.mxu0 %v1741
    %1969 = vmatpush.xpose.msra.mxu0 %v1715
    %1970 = vmatpush.xpose.msra.mxu0 %v1689
    %1971 = vmatpush.xpose.msra.mxu0 %v1663
    %1972 = vmatpush.xpose.msra.mxu0 %v1637
    %1973 = vmatmul.f32.gmra.mxu0 %v1884
    %v1974 = vpop.f32.mrf.mxu0
    %v1975 = vadd.f32 %v1955, %v1974
    %1976 = vdwg.mxu0
    %1977 = vmatpush.xpose.msra.mxu0 0.0
    %1978 = vmatpush.xpose.msra.mxu0 0.0
    %1979 = vmatpush.xpose.msra.mxu0 0.0
    %1980 = vmatpush.xpose.msra.mxu0 0.0
    %1981 = vmatpush.xpose.msra.mxu0 0.0
    %1982 = vmatpush.xpose.msra.mxu0 0.0
    %1983 = vmatpush.xpose.msra.mxu0 0.0
    %1984 = vmatpush.xpose.msra.mxu0 0.0
    %1985 = vmatpush.xpose.msra.mxu0 %v1820
    %1986 = vmatpush.xpose.msra.mxu0 %v1794
    %1987 = vmatpush.xpose.msra.mxu0 %v1768
    %1988 = vmatpush.xpose.msra.mxu0 %v1742
    %1989 = vmatpush.xpose.msra.mxu0 %v1716
    %1990 = vmatpush.xpose.msra.mxu0 %v1690
    %1991 = vmatpush.xpose.msra.mxu0 %v1664
    %1992 = vmatpush.xpose.msra.mxu0 %v1638
    %1993 = vmatmul.f32.gmra.mxu0 %v1885
    %v1994 = vpop.f32.mrf.mxu0
    %v1995 = vadd.f32 %v1975, %v1994
    %1996 = vdwg.mxu0
    %1997 = vmatpush.xpose.msra.mxu0 0.0
    %1998 = vmatpush.xpose.msra.mxu0 0.0
    %1999 = vmatpush.xpose.msra.mxu0 0.0
    %2000 = vmatpush.xpose.msra.mxu0 0.0
    %2001 = vmatpush.xpose.msra.mxu0 0.0
    %2002 = vmatpush.xpose.msra.mxu0 0.0
    %2003 = vmatpush.xpose.msra.mxu0 0.0
    %2004 = vmatpush.xpose.msra.mxu0 0.0
    %2005 = vmatpush.xpose.msra.mxu0 %v1821
    %2006 = vmatpush.xpose.msra.mxu0 %v1795
    %2007 = vmatpush.xpose.msra.mxu0 %v1769
    %2008 = vmatpush.xpose.msra.mxu0 %v1743
    %2009 = vmatpush.xpose.msra.mxu0 %v1717
    %2010 = vmatpush.xpose.msra.mxu0 %v1691
    %2011 = vmatpush.xpose.msra.mxu0 %v1665
    %2012 = vmatpush.xpose.msra.mxu0 %v1639
    %2013 = vmatmul.f32.gmra.mxu0 %v1886
    %v2014 = vpop.f32.mrf.mxu0
    %v2015 = vadd.f32 %v1995, %v2014
    %2016 = vdwg.mxu0
    %2017 = vmatpush.xpose.msra.mxu0 0.0
    %2018 = vmatpush.xpose.msra.mxu0 0.0
    %2019 = vmatpush.xpose.msra.mxu0 0.0
    %2020 = vmatpush.xpose.msra.mxu0 0.0
    %2021 = vmatpush.xpose.msra.mxu0 0.0
    %2022 = vmatpush.xpose.msra.mxu0 0.0
    %2023 = vmatpush.xpose.msra.mxu0 0.0
    %2024 = vmatpush.xpose.msra.mxu0 0.0
    %2025 = vmatpush.xpose.msra.mxu0 %v1822
    %2026 = vmatpush.xpose.msra.mxu0 %v1796
    %2027 = vmatpush.xpose.msra.mxu0 %v1770
    %2028 = vmatpush.xpose.msra.mxu0 %v1744
    %2029 = vmatpush.xpose.msra.mxu0 %v1718
    %2030 = vmatpush.xpose.msra.mxu0 %v1692
    %2031 = vmatpush.xpose.msra.mxu0 %v1666
    %2032 = vmatpush.xpose.msra.mxu0 %v1640
    %2033 = vmatmul.f32.gmra.mxu0 %v1887
    %v2034 = vpop.f32.mrf.mxu0
    %v2035 = vadd.f32 %v2015, %v2034
    %2036 = vdwg.mxu0
    %2037 = vmatpush.xpose.msra.mxu0 0.0
    %2038 = vmatpush.xpose.msra.mxu0 0.0
    %2039 = vmatpush.xpose.msra.mxu0 0.0
    %2040 = vmatpush.xpose.msra.mxu0 0.0
    %2041 = vmatpush.xpose.msra.mxu0 0.0
    %2042 = vmatpush.xpose.msra.mxu0 0.0
    %2043 = vmatpush.xpose.msra.mxu0 0.0
    %2044 = vmatpush.xpose.msra.mxu0 0.0
    %2045 = vmatpush.xpose.msra.mxu0 %v1823
    %2046 = vmatpush.xpose.msra.mxu0 %v1797
    %2047 = vmatpush.xpose.msra.mxu0 %v1771
    %2048 = vmatpush.xpose.msra.mxu0 %v1745
    %2049 = vmatpush.xpose.msra.mxu0 %v1719
    %2050 = vmatpush.xpose.msra.mxu0 %v1693
    %2051 = vmatpush.xpose.msra.mxu0 %v1667
    %2052 = vmatpush.xpose.msra.mxu0 %v1641
    %2053 = vmatmul.f32.gmra.mxu0 %v1888
    %v2054 = vpop.f32.mrf.mxu0
    %v2055 = vadd.f32 %v2035, %v2054
    %2056 = vdwg.mxu0
    %2057 = vmatpush.xpose.msra.mxu0 0.0
    %2058 = vmatpush.xpose.msra.mxu0 0.0
    %2059 = vmatpush.xpose.msra.mxu0 0.0
    %2060 = vmatpush.xpose.msra.mxu0 0.0
    %2061 = vmatpush.xpose.msra.mxu0 0.0
    %2062 = vmatpush.xpose.msra.mxu0 0.0
    %2063 = vmatpush.xpose.msra.mxu0 0.0
    %2064 = vmatpush.xpose.msra.mxu0 0.0
    %2065 = vmatpush.xpose.msra.mxu0 %v1824
    %2066 = vmatpush.xpose.msra.mxu0 %v1798
    %2067 = vmatpush.xpose.msra.mxu0 %v1772
    %2068 = vmatpush.xpose.msra.mxu0 %v1746
    %2069 = vmatpush.xpose.msra.mxu0 %v1720
    %2070 = vmatpush.xpose.msra.mxu0 %v1694
    %2071 = vmatpush.xpose.msra.mxu0 %v1668
    %2072 = vmatpush.xpose.msra.mxu0 %v1642
    %2073 = vmatmul.f32.gmra.mxu0 %v1889
    %v2074 = vpop.f32.mrf.mxu0
    %v2075 = vadd.f32 %v2055, %v2074
    %2076 = vdwg.mxu0
    %2077 = vmatpush.xpose.msra.mxu0 0.0
    %2078 = vmatpush.xpose.msra.mxu0 0.0
    %2079 = vmatpush.xpose.msra.mxu0 0.0
    %2080 = vmatpush.xpose.msra.mxu0 0.0
    %2081 = vmatpush.xpose.msra.mxu0 0.0
    %2082 = vmatpush.xpose.msra.mxu0 0.0
    %2083 = vmatpush.xpose.msra.mxu0 0.0
    %2084 = vmatpush.xpose.msra.mxu0 0.0
    %2085 = vmatpush.xpose.msra.mxu0 %v1825
    %2086 = vmatpush.xpose.msra.mxu0 %v1799
    %2087 = vmatpush.xpose.msra.mxu0 %v1773
    %2088 = vmatpush.xpose.msra.mxu0 %v1747
    %2089 = vmatpush.xpose.msra.mxu0 %v1721
    %2090 = vmatpush.xpose.msra.mxu0 %v1695
    %2091 = vmatpush.xpose.msra.mxu0 %v1669
    %2092 = vmatpush.xpose.msra.mxu0 %v1643
    %2093 = vmatmul.f32.gmra.mxu0 %v1890
    %v2094 = vpop.f32.mrf.mxu0
    %v2095 = vadd.f32 %v2075, %v2094
    %2096 = vdwg.mxu0
    %2097 = vmatpush.xpose.msra.mxu0 0.0
    %2098 = vmatpush.xpose.msra.mxu0 0.0
    %2099 = vmatpush.xpose.msra.mxu0 0.0
    %2100 = vmatpush.xpose.msra.mxu0 0.0
    %2101 = vmatpush.xpose.msra.mxu0 0.0
    %2102 = vmatpush.xpose.msra.mxu0 0.0
    %2103 = vmatpush.xpose.msra.mxu0 0.0
    %2104 = vmatpush.xpose.msra.mxu0 0.0
    %2105 = vmatpush.xpose.msra.mxu0 %v1826
    %2106 = vmatpush.xpose.msra.mxu0 %v1800
    %2107 = vmatpush.xpose.msra.mxu0 %v1774
    %2108 = vmatpush.xpose.msra.mxu0 %v1748
    %2109 = vmatpush.xpose.msra.mxu0 %v1722
    %2110 = vmatpush.xpose.msra.mxu0 %v1696
    %2111 = vmatpush.xpose.msra.mxu0 %v1670
    %2112 = vmatpush.xpose.msra.mxu0 %v1644
    %2113 = vmatmul.f32.gmra.mxu0 %v1891
    %v2114 = vpop.f32.mrf.mxu0
    %v2115 = vadd.f32 %v2095, %v2114
    %2116 = vdwg.mxu0
    %2117 = vmatpush.xpose.msra.mxu0 0.0
    %2118 = vmatpush.xpose.msra.mxu0 0.0
    %2119 = vmatpush.xpose.msra.mxu0 0.0
    %2120 = vmatpush.xpose.msra.mxu0 0.0
    %2121 = vmatpush.xpose.msra.mxu0 0.0
    %2122 = vmatpush.xpose.msra.mxu0 0.0
    %2123 = vmatpush.xpose.msra.mxu0 0.0
    %2124 = vmatpush.xpose.msra.mxu0 0.0
    %2125 = vmatpush.xpose.msra.mxu0 %v1827
    %2126 = vmatpush.xpose.msra.mxu0 %v1801
    %2127 = vmatpush.xpose.msra.mxu0 %v1775
    %2128 = vmatpush.xpose.msra.mxu0 %v1749
    %2129 = vmatpush.xpose.msra.mxu0 %v1723
    %2130 = vmatpush.xpose.msra.mxu0 %v1697
    %2131 = vmatpush.xpose.msra.mxu0 %v1671
    %2132 = vmatpush.xpose.msra.mxu0 %v1645
    %2133 = vmatmul.f32.gmra.mxu0 %v1892
    %v2134 = vpop.f32.mrf.mxu0
    %v2135 = vadd.f32 %v2115, %v2134
    %2136 = vdwg.mxu0
    %2137 = vmatpush.xpose.msra.mxu0 0.0
    %2138 = vmatpush.xpose.msra.mxu0 0.0
    %2139 = vmatpush.xpose.msra.mxu0 0.0
    %2140 = vmatpush.xpose.msra.mxu0 0.0
    %2141 = vmatpush.xpose.msra.mxu0 0.0
    %2142 = vmatpush.xpose.msra.mxu0 0.0
    %2143 = vmatpush.xpose.msra.mxu0 0.0
    %2144 = vmatpush.xpose.msra.mxu0 0.0
    %2145 = vmatpush.xpose.msra.mxu0 %v1828
    %2146 = vmatpush.xpose.msra.mxu0 %v1802
    %2147 = vmatpush.xpose.msra.mxu0 %v1776
    %2148 = vmatpush.xpose.msra.mxu0 %v1750
    %2149 = vmatpush.xpose.msra.mxu0 %v1724
    %2150 = vmatpush.xpose.msra.mxu0 %v1698
    %2151 = vmatpush.xpose.msra.mxu0 %v1672
    %2152 = vmatpush.xpose.msra.mxu0 %v1646
    %2153 = vmatmul.f32.gmra.mxu0 %v1893
    %v2154 = vpop.f32.mrf.mxu0
    %v2155 = vadd.f32 %v2135, %v2154
    %2156 = vdwg.mxu0
    %2157 = vmatpush.xpose.msra.mxu0 0.0
    %2158 = vmatpush.xpose.msra.mxu0 0.0
    %2159 = vmatpush.xpose.msra.mxu0 0.0
    %2160 = vmatpush.xpose.msra.mxu0 0.0
    %2161 = vmatpush.xpose.msra.mxu0 0.0
    %2162 = vmatpush.xpose.msra.mxu0 0.0
    %2163 = vmatpush.xpose.msra.mxu0 0.0
    %2164 = vmatpush.xpose.msra.mxu0 0.0
    %2165 = vmatpush.xpose.msra.mxu0 %v1829
    %2166 = vmatpush.xpose.msra.mxu0 %v1803
    %2167 = vmatpush.xpose.msra.mxu0 %v1777
    %2168 = vmatpush.xpose.msra.mxu0 %v1751
    %2169 = vmatpush.xpose.msra.mxu0 %v1725
    %2170 = vmatpush.xpose.msra.mxu0 %v1699
    %2171 = vmatpush.xpose.msra.mxu0 %v1673
    %2172 = vmatpush.xpose.msra.mxu0 %v1647
    %2173 = vmatmul.f32.gmra.mxu0 %v1894
    %v2174 = vpop.f32.mrf.mxu0
    %v2175 = vadd.f32 %v2155, %v2174
    %2176 = vdwg.mxu0
    %2177 = vmatpush.xpose.msra.mxu0 0.0
    %2178 = vmatpush.xpose.msra.mxu0 0.0
    %2179 = vmatpush.xpose.msra.mxu0 0.0
    %2180 = vmatpush.xpose.msra.mxu0 0.0
    %2181 = vmatpush.xpose.msra.mxu0 0.0
    %2182 = vmatpush.xpose.msra.mxu0 0.0
    %2183 = vmatpush.xpose.msra.mxu0 0.0
    %2184 = vmatpush.xpose.msra.mxu0 0.0
    %2185 = vmatpush.xpose.msra.mxu0 %v1830
    %2186 = vmatpush.xpose.msra.mxu0 %v1804
    %2187 = vmatpush.xpose.msra.mxu0 %v1778
    %2188 = vmatpush.xpose.msra.mxu0 %v1752
    %2189 = vmatpush.xpose.msra.mxu0 %v1726
    %2190 = vmatpush.xpose.msra.mxu0 %v1700
    %2191 = vmatpush.xpose.msra.mxu0 %v1674
    %2192 = vmatpush.xpose.msra.mxu0 %v1648
    %2193 = vmatmul.f32.gmra.mxu0 %v1895
    %v2194 = vpop.f32.mrf.mxu0
    %v2195 = vadd.f32 %v2175, %v2194
    %2196 = vdwg.mxu0
    %2197 = vmatpush.xpose.msra.mxu0 0.0
    %2198 = vmatpush.xpose.msra.mxu0 0.0
    %2199 = vmatpush.xpose.msra.mxu0 0.0
    %2200 = vmatpush.xpose.msra.mxu0 0.0
    %2201 = vmatpush.xpose.msra.mxu0 0.0
    %2202 = vmatpush.xpose.msra.mxu0 0.0
    %2203 = vmatpush.xpose.msra.mxu0 0.0
    %2204 = vmatpush.xpose.msra.mxu0 0.0
    %2205 = vmatpush.xpose.msra.mxu0 %v1831
    %2206 = vmatpush.xpose.msra.mxu0 %v1805
    %2207 = vmatpush.xpose.msra.mxu0 %v1779
    %2208 = vmatpush.xpose.msra.mxu0 %v1753
    %2209 = vmatpush.xpose.msra.mxu0 %v1727
    %2210 = vmatpush.xpose.msra.mxu0 %v1701
    %2211 = vmatpush.xpose.msra.mxu0 %v1675
    %2212 = vmatpush.xpose.msra.mxu0 %v1649
    %2213 = vmatmul.f32.gmra.mxu0 %v1896
    %v2214 = vpop.f32.mrf.mxu0
    %v2215 = vadd.f32 %v2195, %v2214
    %2216 = vdwg.mxu0
    %2217 = vmatpush.xpose.msra.mxu0 0.0
    %2218 = vmatpush.xpose.msra.mxu0 0.0
    %2219 = vmatpush.xpose.msra.mxu0 0.0
    %2220 = vmatpush.xpose.msra.mxu0 0.0
    %2221 = vmatpush.xpose.msra.mxu0 0.0
    %2222 = vmatpush.xpose.msra.mxu0 0.0
    %2223 = vmatpush.xpose.msra.mxu0 0.0
    %2224 = vmatpush.xpose.msra.mxu0 0.0
    %2225 = vmatpush.xpose.msra.mxu0 %v1832
    %2226 = vmatpush.xpose.msra.mxu0 %v1806
    %2227 = vmatpush.xpose.msra.mxu0 %v1780
    %2228 = vmatpush.xpose.msra.mxu0 %v1754
    %2229 = vmatpush.xpose.msra.mxu0 %v1728
    %2230 = vmatpush.xpose.msra.mxu0 %v1702
    %2231 = vmatpush.xpose.msra.mxu0 %v1676
    %2232 = vmatpush.xpose.msra.mxu0 %v1650
    %2233 = vmatmul.f32.gmra.mxu0 %v1897
    %v2234 = vpop.f32.mrf.mxu0
    %v2235 = vadd.f32 %v2215, %v2234
    %2236 = vdwg.mxu0
    %2237 = vmatpush.xpose.msra.mxu0 0.0
    %2238 = vmatpush.xpose.msra.mxu0 0.0
    %2239 = vmatpush.xpose.msra.mxu0 0.0
    %2240 = vmatpush.xpose.msra.mxu0 0.0
    %2241 = vmatpush.xpose.msra.mxu0 0.0
    %2242 = vmatpush.xpose.msra.mxu0 0.0
    %2243 = vmatpush.xpose.msra.mxu0 0.0
    %2244 = vmatpush.xpose.msra.mxu0 0.0
    %2245 = vmatpush.xpose.msra.mxu0 %v1833
    %2246 = vmatpush.xpose.msra.mxu0 %v1807
    %2247 = vmatpush.xpose.msra.mxu0 %v1781
    %2248 = vmatpush.xpose.msra.mxu0 %v1755
    %2249 = vmatpush.xpose.msra.mxu0 %v1729
    %2250 = vmatpush.xpose.msra.mxu0 %v1703
    %2251 = vmatpush.xpose.msra.mxu0 %v1677
    %2252 = vmatpush.xpose.msra.mxu0 %v1651
    %2253 = vmatmul.f32.gmra.mxu0 %v1898
    %v2254 = vpop.f32.mrf.mxu0
    %v2255 = vadd.f32 %v2235, %v2254
    %2256 = vdwg.mxu0
    %2257 = vmatpush.xpose.msra.mxu0 0.0
    %2258 = vmatpush.xpose.msra.mxu0 0.0
    %2259 = vmatpush.xpose.msra.mxu0 0.0
    %2260 = vmatpush.xpose.msra.mxu0 0.0
    %2261 = vmatpush.xpose.msra.mxu0 0.0
    %2262 = vmatpush.xpose.msra.mxu0 0.0
    %2263 = vmatpush.xpose.msra.mxu0 0.0
    %2264 = vmatpush.xpose.msra.mxu0 0.0
    %2265 = vmatpush.xpose.msra.mxu0 %v1834
    %2266 = vmatpush.xpose.msra.mxu0 %v1808
    %2267 = vmatpush.xpose.msra.mxu0 %v1782
    %2268 = vmatpush.xpose.msra.mxu0 %v1756
    %2269 = vmatpush.xpose.msra.mxu0 %v1730
    %2270 = vmatpush.xpose.msra.mxu0 %v1704
    %2271 = vmatpush.xpose.msra.mxu0 %v1678
    %2272 = vmatpush.xpose.msra.mxu0 %v1652
    %2273 = vmatmul.f32.gmra.mxu0 %v1899
    %v2274 = vpop.f32.mrf.mxu0
    %v2275 = vadd.f32 %v2255, %v2274
    %2276 = vdwg.mxu0
    %2277 = vmatpush.xpose.msra.mxu0 0.0
    %2278 = vmatpush.xpose.msra.mxu0 0.0
    %2279 = vmatpush.xpose.msra.mxu0 0.0
    %2280 = vmatpush.xpose.msra.mxu0 0.0
    %2281 = vmatpush.xpose.msra.mxu0 0.0
    %2282 = vmatpush.xpose.msra.mxu0 0.0
    %2283 = vmatpush.xpose.msra.mxu0 0.0
    %2284 = vmatpush.xpose.msra.mxu0 0.0
    %2285 = vmatpush.xpose.msra.mxu0 %v1835
    %2286 = vmatpush.xpose.msra.mxu0 %v1809
    %2287 = vmatpush.xpose.msra.mxu0 %v1783
    %2288 = vmatpush.xpose.msra.mxu0 %v1757
    %2289 = vmatpush.xpose.msra.mxu0 %v1731
    %2290 = vmatpush.xpose.msra.mxu0 %v1705
    %2291 = vmatpush.xpose.msra.mxu0 %v1679
    %2292 = vmatpush.xpose.msra.mxu0 %v1653
    %2293 = vmatmul.f32.gmra.mxu0 %v1900
    %v2294 = vpop.f32.mrf.mxu0
    %v2295 = vadd.f32 %v2275, %v2294
    %2296 = vdwg.mxu0
    %2297 = vmatpush.xpose.msra.mxu0 0.0
    %2298 = vmatpush.xpose.msra.mxu0 0.0
    %2299 = vmatpush.xpose.msra.mxu0 0.0
    %2300 = vmatpush.xpose.msra.mxu0 0.0
    %2301 = vmatpush.xpose.msra.mxu0 0.0
    %2302 = vmatpush.xpose.msra.mxu0 0.0
    %2303 = vmatpush.xpose.msra.mxu0 0.0
    %2304 = vmatpush.xpose.msra.mxu0 0.0
    %2305 = vmatpush.xpose.msra.mxu0 %v1836
    %2306 = vmatpush.xpose.msra.mxu0 %v1810
    %2307 = vmatpush.xpose.msra.mxu0 %v1784
    %2308 = vmatpush.xpose.msra.mxu0 %v1758
    %2309 = vmatpush.xpose.msra.mxu0 %v1732
    %2310 = vmatpush.xpose.msra.mxu0 %v1706
    %2311 = vmatpush.xpose.msra.mxu0 %v1680
    %2312 = vmatpush.xpose.msra.mxu0 %v1654
    %2313 = vmatmul.f32.gmra.mxu0 %v1901
    %v2314 = vpop.f32.mrf.mxu0
    %v2315 = vadd.f32 %v2295, %v2314
    %2316 = vdwg.mxu0
    %2317 = vmatpush.xpose.msra.mxu0 0.0
    %2318 = vmatpush.xpose.msra.mxu0 0.0
    %2319 = vmatpush.xpose.msra.mxu0 0.0
    %2320 = vmatpush.xpose.msra.mxu0 0.0
    %2321 = vmatpush.xpose.msra.mxu0 0.0
    %2322 = vmatpush.xpose.msra.mxu0 0.0
    %2323 = vmatpush.xpose.msra.mxu0 0.0
    %2324 = vmatpush.xpose.msra.mxu0 0.0
    %2325 = vmatpush.xpose.msra.mxu0 %v1837
    %2326 = vmatpush.xpose.msra.mxu0 %v1811
    %2327 = vmatpush.xpose.msra.mxu0 %v1785
    %2328 = vmatpush.xpose.msra.mxu0 %v1759
    %2329 = vmatpush.xpose.msra.mxu0 %v1733
    %2330 = vmatpush.xpose.msra.mxu0 %v1707
    %2331 = vmatpush.xpose.msra.mxu0 %v1681
    %2332 = vmatpush.xpose.msra.mxu0 %v1655
    %2333 = vmatmul.f32.gmra.mxu0 %v1902
    %v2334 = vpop.f32.mrf.mxu0
    %v2335 = vadd.f32 %v2315, %v2334
    %2336 = vdwg.mxu0
    %2337 = vmatpush.xpose.msra.mxu0 0.0
    %2338 = vmatpush.xpose.msra.mxu0 0.0
    %2339 = vmatpush.xpose.msra.mxu0 0.0
    %2340 = vmatpush.xpose.msra.mxu0 0.0
    %2341 = vmatpush.xpose.msra.mxu0 0.0
    %2342 = vmatpush.xpose.msra.mxu0 0.0
    %2343 = vmatpush.xpose.msra.mxu0 0.0
    %2344 = vmatpush.xpose.msra.mxu0 0.0
    %2345 = vmatpush.xpose.msra.mxu0 %v1838
    %2346 = vmatpush.xpose.msra.mxu0 %v1812
    %2347 = vmatpush.xpose.msra.mxu0 %v1786
    %2348 = vmatpush.xpose.msra.mxu0 %v1760
    %2349 = vmatpush.xpose.msra.mxu0 %v1734
    %2350 = vmatpush.xpose.msra.mxu0 %v1708
    %2351 = vmatpush.xpose.msra.mxu0 %v1682
    %2352 = vmatpush.xpose.msra.mxu0 %v1656
    %2353 = vmatmul.f32.gmra.mxu0 %v1903
    %v2354 = vpop.f32.mrf.mxu0
    %v2355 = vadd.f32 %v2335, %v2354
    %2356 = vdwg.mxu0
    %2357 = vmatpush.xpose.msra.mxu0 0.0
    %2358 = vmatpush.xpose.msra.mxu0 0.0
    %2359 = vmatpush.xpose.msra.mxu0 0.0
    %2360 = vmatpush.xpose.msra.mxu0 0.0
    %2361 = vmatpush.xpose.msra.mxu0 0.0
    %2362 = vmatpush.xpose.msra.mxu0 0.0
    %2363 = vmatpush.xpose.msra.mxu0 0.0
    %2364 = vmatpush.xpose.msra.mxu0 0.0
    %2365 = vmatpush.xpose.msra.mxu0 %v1839
    %2366 = vmatpush.xpose.msra.mxu0 %v1813
    %2367 = vmatpush.xpose.msra.mxu0 %v1787
    %2368 = vmatpush.xpose.msra.mxu0 %v1761
    %2369 = vmatpush.xpose.msra.mxu0 %v1735
    %2370 = vmatpush.xpose.msra.mxu0 %v1709
    %2371 = vmatpush.xpose.msra.mxu0 %v1683
    %2372 = vmatpush.xpose.msra.mxu0 %v1657
    %2373 = vmatmul.f32.gmra.mxu0 %v1904
    %v2374 = vpop.f32.mrf.mxu0
    %v2375 = vadd.f32 %v2355, %v2374
    %2376 = vdwg.mxu0
    %2377 = vmatpush.xpose.msra.mxu0 0.0
    %2378 = vmatpush.xpose.msra.mxu0 0.0
    %2379 = vmatpush.xpose.msra.mxu0 0.0
    %2380 = vmatpush.xpose.msra.mxu0 0.0
    %2381 = vmatpush.xpose.msra.mxu0 0.0
    %2382 = vmatpush.xpose.msra.mxu0 0.0
    %2383 = vmatpush.xpose.msra.mxu0 0.0
    %2384 = vmatpush.xpose.msra.mxu0 0.0
    %2385 = vmatpush.xpose.msra.mxu0 %v1840
    %2386 = vmatpush.xpose.msra.mxu0 %v1814
    %2387 = vmatpush.xpose.msra.mxu0 %v1788
    %2388 = vmatpush.xpose.msra.mxu0 %v1762
    %2389 = vmatpush.xpose.msra.mxu0 %v1736
    %2390 = vmatpush.xpose.msra.mxu0 %v1710
    %2391 = vmatpush.xpose.msra.mxu0 %v1684
    %2392 = vmatpush.xpose.msra.mxu0 %v1658
    %2393 = vmatmul.f32.gmra.mxu0 %v1905
    %v2394 = vpop.f32.mrf.mxu0
    %v2395 = vadd.f32 %v2375, %v2394
    %2396 = vdwg.mxu0
    %2397 = vmatpush.xpose.msra.mxu0 0.0
    %2398 = vmatpush.xpose.msra.mxu0 0.0
    %2399 = vmatpush.xpose.msra.mxu0 0.0
    %2400 = vmatpush.xpose.msra.mxu0 0.0
    %2401 = vmatpush.xpose.msra.mxu0 0.0
    %2402 = vmatpush.xpose.msra.mxu0 0.0
    %2403 = vmatpush.xpose.msra.mxu0 0.0
    %2404 = vmatpush.xpose.msra.mxu0 0.0
    %2405 = vmatpush.xpose.msra.mxu0 %v1841
    %2406 = vmatpush.xpose.msra.mxu0 %v1815
    %2407 = vmatpush.xpose.msra.mxu0 %v1789
    %2408 = vmatpush.xpose.msra.mxu0 %v1763
    %2409 = vmatpush.xpose.msra.mxu0 %v1737
    %2410 = vmatpush.xpose.msra.mxu0 %v1711
    %2411 = vmatpush.xpose.msra.mxu0 %v1685
    %2412 = vmatpush.xpose.msra.mxu0 %v1659
    %2413 = vmatmul.f32.gmra.mxu0 %v1906
    %v2414 = vpop.f32.mrf.mxu0
    %v2415 = vadd.f32 %v2395, %v2414
    %2416 = vdwg.mxu0
    %2417 = vmatpush.xpose.msra.mxu0 0.0
    %2418 = vmatpush.xpose.msra.mxu0 0.0
    %2419 = vmatpush.xpose.msra.mxu0 0.0
    %2420 = vmatpush.xpose.msra.mxu0 0.0
    %2421 = vmatpush.xpose.msra.mxu0 0.0
    %2422 = vmatpush.xpose.msra.mxu0 0.0
    %2423 = vmatpush.xpose.msra.mxu0 0.0
    %2424 = vmatpush.xpose.msra.mxu0 0.0
    %2425 = vmatpush.xpose.msra.mxu0 %v1842
    %2426 = vmatpush.xpose.msra.mxu0 %v1816
    %2427 = vmatpush.xpose.msra.mxu0 %v1790
    %2428 = vmatpush.xpose.msra.mxu0 %v1764
    %2429 = vmatpush.xpose.msra.mxu0 %v1738
    %2430 = vmatpush.xpose.msra.mxu0 %v1712
    %2431 = vmatpush.xpose.msra.mxu0 %v1686
    %2432 = vmatpush.xpose.msra.mxu0 %v1660
    %2433 = vmatmul.f32.gmra.mxu0 %v1907
    %v2434 = vpop.f32.mrf.mxu0
    %v2435 = vadd.f32 %v2415, %v2434
    %2436 = vdwg.mxu0
    %2437 = vmatpush.xpose.msra.mxu0 0.0
    %2438 = vmatpush.xpose.msra.mxu0 0.0
    %2439 = vmatpush.xpose.msra.mxu0 0.0
    %2440 = vmatpush.xpose.msra.mxu0 0.0
    %2441 = vmatpush.xpose.msra.mxu0 0.0
    %2442 = vmatpush.xpose.msra.mxu0 0.0
    %2443 = vmatpush.xpose.msra.mxu0 0.0
    %2444 = vmatpush.xpose.msra.mxu0 0.0
    %2445 = vmatpush.xpose.msra.mxu0 %v1935
    %2446 = vmatpush.xpose.msra.mxu0 %v1932
    %2447 = vmatpush.xpose.msra.mxu0 %v1929
    %2448 = vmatpush.xpose.msra.mxu0 %v1926
    %2449 = vmatpush.xpose.msra.mxu0 %v1923
    %2450 = vmatpush.xpose.msra.mxu0 %v1920
    %2451 = vmatpush.xpose.msra.mxu0 %v1917
    %2452 = vmatpush.xpose.msra.mxu0 %v1914
    %2453 = vmatmul.f32.gmra.mxu0 %v1911
    %v2454 = vpop.f32.mrf.mxu0
    %v2455 = vadd.f32 %v2435, %v2454
    %2456 = vdwg.mxu0
    %v2458 = vsel %vm1909, %v1882, 0
    %2460 = vmatpush.xpose.msra.mxu0 0.0
    %2461 = vmatpush.xpose.msra.mxu0 0.0
    %2462 = vmatpush.xpose.msra.mxu0 0.0
    %2463 = vmatpush.xpose.msra.mxu0 0.0
    %2464 = vmatpush.xpose.msra.mxu0 0.0
    %2465 = vmatpush.xpose.msra.mxu0 0.0
    %2466 = vmatpush.xpose.msra.mxu0 0.0
    %2467 = vmatpush.xpose.msra.mxu0 0.0
    %2468 = vmatpush.xpose.msra.mxu0 %v1818
    %2469 = vmatpush.xpose.msra.mxu0 %v1792
    %2470 = vmatpush.xpose.msra.mxu0 %v1766
    %2471 = vmatpush.xpose.msra.mxu0 %v1740
    %2472 = vmatpush.xpose.msra.mxu0 %v1714
    %2473 = vmatpush.xpose.msra.mxu0 %v1688
    %2474 = vmatpush.xpose.msra.mxu0 %v1662
    %2475 = vmatpush.xpose.msra.mxu0 %v1636
    %2476 = vmatmul.f32.gmra.mxu0 %v1857
    %v2477 = vpop.f32.mrf.mxu0
    %v2478 = vadd.f32 %v2455, %v2477
    %2479 = vdwg.mxu0
    %2480 = vmatpush.xpose.msra.mxu0 0.0
    %2481 = vmatpush.xpose.msra.mxu0 0.0
    %2482 = vmatpush.xpose.msra.mxu0 0.0
    %2483 = vmatpush.xpose.msra.mxu0 0.0
    %2484 = vmatpush.xpose.msra.mxu0 0.0
    %2485 = vmatpush.xpose.msra.mxu0 0.0
    %2486 = vmatpush.xpose.msra.mxu0 0.0
    %2487 = vmatpush.xpose.msra.mxu0 0.0
    %2488 = vmatpush.xpose.msra.mxu0 %v1819
    %2489 = vmatpush.xpose.msra.mxu0 %v1793
    %2490 = vmatpush.xpose.msra.mxu0 %v1767
    %2491 = vmatpush.xpose.msra.mxu0 %v1741
    %2492 = vmatpush.xpose.msra.mxu0 %v1715
    %2493 = vmatpush.xpose.msra.mxu0 %v1689
    %2494 = vmatpush.xpose.msra.mxu0 %v1663
    %2495 = vmatpush.xpose.msra.mxu0 %v1637
    %2496 = vmatmul.f32.gmra.mxu0 %v1858
    %v2497 = vpop.f32.mrf.mxu0
    %v2498 = vadd.f32 %v2478, %v2497
    %2499 = vdwg.mxu0
    %2500 = vmatpush.xpose.msra.mxu0 0.0
    %2501 = vmatpush.xpose.msra.mxu0 0.0
    %2502 = vmatpush.xpose.msra.mxu0 0.0
    %2503 = vmatpush.xpose.msra.mxu0 0.0
    %2504 = vmatpush.xpose.msra.mxu0 0.0
    %2505 = vmatpush.xpose.msra.mxu0 0.0
    %2506 = vmatpush.xpose.msra.mxu0 0.0
    %2507 = vmatpush.xpose.msra.mxu0 0.0
    %2508 = vmatpush.xpose.msra.mxu0 %v1820
    %2509 = vmatpush.xpose.msra.mxu0 %v1794
    %2510 = vmatpush.xpose.msra.mxu0 %v1768
    %2511 = vmatpush.xpose.msra.mxu0 %v1742
    %2512 = vmatpush.xpose.msra.mxu0 %v1716
    %2513 = vmatpush.xpose.msra.mxu0 %v1690
    %2514 = vmatpush.xpose.msra.mxu0 %v1664
    %2515 = vmatpush.xpose.msra.mxu0 %v1638
    %2516 = vmatmul.f32.gmra.mxu0 %v1859
    %v2517 = vpop.f32.mrf.mxu0
    %v2518 = vadd.f32 %v2498, %v2517
    %2519 = vdwg.mxu0
    %2520 = vmatpush.xpose.msra.mxu0 0.0
    %2521 = vmatpush.xpose.msra.mxu0 0.0
    %2522 = vmatpush.xpose.msra.mxu0 0.0
    %2523 = vmatpush.xpose.msra.mxu0 0.0
    %2524 = vmatpush.xpose.msra.mxu0 0.0
    %2525 = vmatpush.xpose.msra.mxu0 0.0
    %2526 = vmatpush.xpose.msra.mxu0 0.0
    %2527 = vmatpush.xpose.msra.mxu0 0.0
    %2528 = vmatpush.xpose.msra.mxu0 %v1821
    %2529 = vmatpush.xpose.msra.mxu0 %v1795
    %2530 = vmatpush.xpose.msra.mxu0 %v1769
    %2531 = vmatpush.xpose.msra.mxu0 %v1743
    %2532 = vmatpush.xpose.msra.mxu0 %v1717
    %2533 = vmatpush.xpose.msra.mxu0 %v1691
    %2534 = vmatpush.xpose.msra.mxu0 %v1665
    %2535 = vmatpush.xpose.msra.mxu0 %v1639
    %2536 = vmatmul.f32.gmra.mxu0 %v1860
    %v2537 = vpop.f32.mrf.mxu0
    %v2538 = vadd.f32 %v2518, %v2537
    %2539 = vdwg.mxu0
    %2540 = vmatpush.xpose.msra.mxu0 0.0
    %2541 = vmatpush.xpose.msra.mxu0 0.0
    %2542 = vmatpush.xpose.msra.mxu0 0.0
    %2543 = vmatpush.xpose.msra.mxu0 0.0
    %2544 = vmatpush.xpose.msra.mxu0 0.0
    %2545 = vmatpush.xpose.msra.mxu0 0.0
    %2546 = vmatpush.xpose.msra.mxu0 0.0
    %2547 = vmatpush.xpose.msra.mxu0 0.0
    %2548 = vmatpush.xpose.msra.mxu0 %v1822
    %2549 = vmatpush.xpose.msra.mxu0 %v1796
    %2550 = vmatpush.xpose.msra.mxu0 %v1770
    %2551 = vmatpush.xpose.msra.mxu0 %v1744
    %2552 = vmatpush.xpose.msra.mxu0 %v1718
    %2553 = vmatpush.xpose.msra.mxu0 %v1692
    %2554 = vmatpush.xpose.msra.mxu0 %v1666
    %2555 = vmatpush.xpose.msra.mxu0 %v1640
    %2556 = vmatmul.f32.gmra.mxu0 %v1861
    %v2557 = vpop.f32.mrf.mxu0
    %v2558 = vadd.f32 %v2538, %v2557
    %2559 = vdwg.mxu0
    %2560 = vmatpush.xpose.msra.mxu0 0.0
    %2561 = vmatpush.xpose.msra.mxu0 0.0
    %2562 = vmatpush.xpose.msra.mxu0 0.0
    %2563 = vmatpush.xpose.msra.mxu0 0.0
    %2564 = vmatpush.xpose.msra.mxu0 0.0
    %2565 = vmatpush.xpose.msra.mxu0 0.0
    %2566 = vmatpush.xpose.msra.mxu0 0.0
    %2567 = vmatpush.xpose.msra.mxu0 0.0
    %2568 = vmatpush.xpose.msra.mxu0 %v1823
    %2569 = vmatpush.xpose.msra.mxu0 %v1797
    %2570 = vmatpush.xpose.msra.mxu0 %v1771
    %2571 = vmatpush.xpose.msra.mxu0 %v1745
    %2572 = vmatpush.xpose.msra.mxu0 %v1719
    %2573 = vmatpush.xpose.msra.mxu0 %v1693
    %2574 = vmatpush.xpose.msra.mxu0 %v1667
    %2575 = vmatpush.xpose.msra.mxu0 %v1641
    %2576 = vmatmul.f32.gmra.mxu0 %v1862
    %v2577 = vpop.f32.mrf.mxu0
    %v2578 = vadd.f32 %v2558, %v2577
    %2579 = vdwg.mxu0
    %2580 = vmatpush.xpose.msra.mxu0 0.0
    %2581 = vmatpush.xpose.msra.mxu0 0.0
    %2582 = vmatpush.xpose.msra.mxu0 0.0
    %2583 = vmatpush.xpose.msra.mxu0 0.0
    %2584 = vmatpush.xpose.msra.mxu0 0.0
    %2585 = vmatpush.xpose.msra.mxu0 0.0
    %2586 = vmatpush.xpose.msra.mxu0 0.0
    %2587 = vmatpush.xpose.msra.mxu0 0.0
    %2588 = vmatpush.xpose.msra.mxu0 %v1824
    %2589 = vmatpush.xpose.msra.mxu0 %v1798
    %2590 = vmatpush.xpose.msra.mxu0 %v1772
    %2591 = vmatpush.xpose.msra.mxu0 %v1746
    %2592 = vmatpush.xpose.msra.mxu0 %v1720
    %2593 = vmatpush.xpose.msra.mxu0 %v1694
    %2594 = vmatpush.xpose.msra.mxu0 %v1668
    %2595 = vmatpush.xpose.msra.mxu0 %v1642
    %2596 = vmatmul.f32.gmra.mxu0 %v1863
    %v2597 = vpop.f32.mrf.mxu0
    %v2598 = vadd.f32 %v2578, %v2597
    %2599 = vdwg.mxu0
    %2600 = vmatpush.xpose.msra.mxu0 0.0
    %2601 = vmatpush.xpose.msra.mxu0 0.0
    %2602 = vmatpush.xpose.msra.mxu0 0.0
    %2603 = vmatpush.xpose.msra.mxu0 0.0
    %2604 = vmatpush.xpose.msra.mxu0 0.0
    %2605 = vmatpush.xpose.msra.mxu0 0.0
    %2606 = vmatpush.xpose.msra.mxu0 0.0
    %2607 = vmatpush.xpose.msra.mxu0 0.0
    %2608 = vmatpush.xpose.msra.mxu0 %v1825
    %2609 = vmatpush.xpose.msra.mxu0 %v1799
    %2610 = vmatpush.xpose.msra.mxu0 %v1773
    %2611 = vmatpush.xpose.msra.mxu0 %v1747
    %2612 = vmatpush.xpose.msra.mxu0 %v1721
    %2613 = vmatpush.xpose.msra.mxu0 %v1695
    %2614 = vmatpush.xpose.msra.mxu0 %v1669
    %2615 = vmatpush.xpose.msra.mxu0 %v1643
    %2616 = vmatmul.f32.gmra.mxu0 %v1864
    %v2617 = vpop.f32.mrf.mxu0
    %v2618 = vadd.f32 %v2598, %v2617
    %2619 = vdwg.mxu0
    %2620 = vmatpush.xpose.msra.mxu0 0.0
    %2621 = vmatpush.xpose.msra.mxu0 0.0
    %2622 = vmatpush.xpose.msra.mxu0 0.0
    %2623 = vmatpush.xpose.msra.mxu0 0.0
    %2624 = vmatpush.xpose.msra.mxu0 0.0
    %2625 = vmatpush.xpose.msra.mxu0 0.0
    %2626 = vmatpush.xpose.msra.mxu0 0.0
    %2627 = vmatpush.xpose.msra.mxu0 0.0
    %2628 = vmatpush.xpose.msra.mxu0 %v1826
    %2629 = vmatpush.xpose.msra.mxu0 %v1800
    %2630 = vmatpush.xpose.msra.mxu0 %v1774
    %2631 = vmatpush.xpose.msra.mxu0 %v1748
    %2632 = vmatpush.xpose.msra.mxu0 %v1722
    %2633 = vmatpush.xpose.msra.mxu0 %v1696
    %2634 = vmatpush.xpose.msra.mxu0 %v1670
    %2635 = vmatpush.xpose.msra.mxu0 %v1644
    %2636 = vmatmul.f32.gmra.mxu0 %v1865
    %v2637 = vpop.f32.mrf.mxu0
    %v2638 = vadd.f32 %v2618, %v2637
    %2639 = vdwg.mxu0
    %2640 = vmatpush.xpose.msra.mxu0 0.0
    %2641 = vmatpush.xpose.msra.mxu0 0.0
    %2642 = vmatpush.xpose.msra.mxu0 0.0
    %2643 = vmatpush.xpose.msra.mxu0 0.0
    %2644 = vmatpush.xpose.msra.mxu0 0.0
    %2645 = vmatpush.xpose.msra.mxu0 0.0
    %2646 = vmatpush.xpose.msra.mxu0 0.0
    %2647 = vmatpush.xpose.msra.mxu0 0.0
    %2648 = vmatpush.xpose.msra.mxu0 %v1827
    %2649 = vmatpush.xpose.msra.mxu0 %v1801
    %2650 = vmatpush.xpose.msra.mxu0 %v1775
    %2651 = vmatpush.xpose.msra.mxu0 %v1749
    %2652 = vmatpush.xpose.msra.mxu0 %v1723
    %2653 = vmatpush.xpose.msra.mxu0 %v1697
    %2654 = vmatpush.xpose.msra.mxu0 %v1671
    %2655 = vmatpush.xpose.msra.mxu0 %v1645
    %2656 = vmatmul.f32.gmra.mxu0 %v1866
    %v2657 = vpop.f32.mrf.mxu0
    %v2658 = vadd.f32 %v2638, %v2657
    %2659 = vdwg.mxu0
    %2660 = vmatpush.xpose.msra.mxu0 0.0
    %2661 = vmatpush.xpose.msra.mxu0 0.0
    %2662 = vmatpush.xpose.msra.mxu0 0.0
    %2663 = vmatpush.xpose.msra.mxu0 0.0
    %2664 = vmatpush.xpose.msra.mxu0 0.0
    %2665 = vmatpush.xpose.msra.mxu0 0.0
    %2666 = vmatpush.xpose.msra.mxu0 0.0
    %2667 = vmatpush.xpose.msra.mxu0 0.0
    %2668 = vmatpush.xpose.msra.mxu0 %v1828
    %2669 = vmatpush.xpose.msra.mxu0 %v1802
    %2670 = vmatpush.xpose.msra.mxu0 %v1776
    %2671 = vmatpush.xpose.msra.mxu0 %v1750
    %2672 = vmatpush.xpose.msra.mxu0 %v1724
    %2673 = vmatpush.xpose.msra.mxu0 %v1698
    %2674 = vmatpush.xpose.msra.mxu0 %v1672
    %2675 = vmatpush.xpose.msra.mxu0 %v1646
    %2676 = vmatmul.f32.gmra.mxu0 %v1867
    %v2677 = vpop.f32.mrf.mxu0
    %v2678 = vadd.f32 %v2658, %v2677
    %2679 = vdwg.mxu0
    %2680 = vmatpush.xpose.msra.mxu0 0.0
    %2681 = vmatpush.xpose.msra.mxu0 0.0
    %2682 = vmatpush.xpose.msra.mxu0 0.0
    %2683 = vmatpush.xpose.msra.mxu0 0.0
    %2684 = vmatpush.xpose.msra.mxu0 0.0
    %2685 = vmatpush.xpose.msra.mxu0 0.0
    %2686 = vmatpush.xpose.msra.mxu0 0.0
    %2687 = vmatpush.xpose.msra.mxu0 0.0
    %2688 = vmatpush.xpose.msra.mxu0 %v1829
    %2689 = vmatpush.xpose.msra.mxu0 %v1803
    %2690 = vmatpush.xpose.msra.mxu0 %v1777
    %2691 = vmatpush.xpose.msra.mxu0 %v1751
    %2692 = vmatpush.xpose.msra.mxu0 %v1725
    %2693 = vmatpush.xpose.msra.mxu0 %v1699
    %2694 = vmatpush.xpose.msra.mxu0 %v1673
    %2695 = vmatpush.xpose.msra.mxu0 %v1647
    %2696 = vmatmul.f32.gmra.mxu0 %v1868
    %v2697 = vpop.f32.mrf.mxu0
    %v2698 = vadd.f32 %v2678, %v2697
    %2699 = vdwg.mxu0
    %2700 = vmatpush.xpose.msra.mxu0 0.0
    %2701 = vmatpush.xpose.msra.mxu0 0.0
    %2702 = vmatpush.xpose.msra.mxu0 0.0
    %2703 = vmatpush.xpose.msra.mxu0 0.0
    %2704 = vmatpush.xpose.msra.mxu0 0.0
    %2705 = vmatpush.xpose.msra.mxu0 0.0
    %2706 = vmatpush.xpose.msra.mxu0 0.0
    %2707 = vmatpush.xpose.msra.mxu0 0.0
    %2708 = vmatpush.xpose.msra.mxu0 %v1830
    %2709 = vmatpush.xpose.msra.mxu0 %v1804
    %2710 = vmatpush.xpose.msra.mxu0 %v1778
    %2711 = vmatpush.xpose.msra.mxu0 %v1752
    %2712 = vmatpush.xpose.msra.mxu0 %v1726
    %2713 = vmatpush.xpose.msra.mxu0 %v1700
    %2714 = vmatpush.xpose.msra.mxu0 %v1674
    %2715 = vmatpush.xpose.msra.mxu0 %v1648
    %2716 = vmatmul.f32.gmra.mxu0 %v1869
    %v2717 = vpop.f32.mrf.mxu0
    %v2718 = vadd.f32 %v2698, %v2717
    %2719 = vdwg.mxu0
    %2720 = vmatpush.xpose.msra.mxu0 0.0
    %2721 = vmatpush.xpose.msra.mxu0 0.0
    %2722 = vmatpush.xpose.msra.mxu0 0.0
    %2723 = vmatpush.xpose.msra.mxu0 0.0
    %2724 = vmatpush.xpose.msra.mxu0 0.0
    %2725 = vmatpush.xpose.msra.mxu0 0.0
    %2726 = vmatpush.xpose.msra.mxu0 0.0
    %2727 = vmatpush.xpose.msra.mxu0 0.0
    %2728 = vmatpush.xpose.msra.mxu0 %v1831
    %2729 = vmatpush.xpose.msra.mxu0 %v1805
    %2730 = vmatpush.xpose.msra.mxu0 %v1779
    %2731 = vmatpush.xpose.msra.mxu0 %v1753
    %2732 = vmatpush.xpose.msra.mxu0 %v1727
    %2733 = vmatpush.xpose.msra.mxu0 %v1701
    %2734 = vmatpush.xpose.msra.mxu0 %v1675
    %2735 = vmatpush.xpose.msra.mxu0 %v1649
    %2736 = vmatmul.f32.gmra.mxu0 %v1870
    %v2737 = vpop.f32.mrf.mxu0
    %v2738 = vadd.f32 %v2718, %v2737
    %2739 = vdwg.mxu0
    %2740 = vmatpush.xpose.msra.mxu0 0.0
    %2741 = vmatpush.xpose.msra.mxu0 0.0
    %2742 = vmatpush.xpose.msra.mxu0 0.0
    %2743 = vmatpush.xpose.msra.mxu0 0.0
    %2744 = vmatpush.xpose.msra.mxu0 0.0
    %2745 = vmatpush.xpose.msra.mxu0 0.0
    %2746 = vmatpush.xpose.msra.mxu0 0.0
    %2747 = vmatpush.xpose.msra.mxu0 0.0
    %2748 = vmatpush.xpose.msra.mxu0 %v1832
    %2749 = vmatpush.xpose.msra.mxu0 %v1806
    %2750 = vmatpush.xpose.msra.mxu0 %v1780
    %2751 = vmatpush.xpose.msra.mxu0 %v1754
    %2752 = vmatpush.xpose.msra.mxu0 %v1728
    %2753 = vmatpush.xpose.msra.mxu0 %v1702
    %2754 = vmatpush.xpose.msra.mxu0 %v1676
    %2755 = vmatpush.xpose.msra.mxu0 %v1650
    %2756 = vmatmul.f32.gmra.mxu0 %v1871
    %v2757 = vpop.f32.mrf.mxu0
    %v2758 = vadd.f32 %v2738, %v2757
    %2759 = vdwg.mxu0
    %2760 = vmatpush.xpose.msra.mxu0 0.0
    %2761 = vmatpush.xpose.msra.mxu0 0.0
    %2762 = vmatpush.xpose.msra.mxu0 0.0
    %2763 = vmatpush.xpose.msra.mxu0 0.0
    %2764 = vmatpush.xpose.msra.mxu0 0.0
    %2765 = vmatpush.xpose.msra.mxu0 0.0
    %2766 = vmatpush.xpose.msra.mxu0 0.0
    %2767 = vmatpush.xpose.msra.mxu0 0.0
    %2768 = vmatpush.xpose.msra.mxu0 %v1833
    %2769 = vmatpush.xpose.msra.mxu0 %v1807
    %2770 = vmatpush.xpose.msra.mxu0 %v1781
    %2771 = vmatpush.xpose.msra.mxu0 %v1755
    %2772 = vmatpush.xpose.msra.mxu0 %v1729
    %2773 = vmatpush.xpose.msra.mxu0 %v1703
    %2774 = vmatpush.xpose.msra.mxu0 %v1677
    %2775 = vmatpush.xpose.msra.mxu0 %v1651
    %2776 = vmatmul.f32.gmra.mxu0 %v1872
    %v2777 = vpop.f32.mrf.mxu0
    %v2778 = vadd.f32 %v2758, %v2777
    %2779 = vdwg.mxu0
    %2780 = vmatpush.xpose.msra.mxu0 0.0
    %2781 = vmatpush.xpose.msra.mxu0 0.0
    %2782 = vmatpush.xpose.msra.mxu0 0.0
    %2783 = vmatpush.xpose.msra.mxu0 0.0
    %2784 = vmatpush.xpose.msra.mxu0 0.0
    %2785 = vmatpush.xpose.msra.mxu0 0.0
    %2786 = vmatpush.xpose.msra.mxu0 0.0
    %2787 = vmatpush.xpose.msra.mxu0 0.0
    %2788 = vmatpush.xpose.msra.mxu0 %v1834
    %2789 = vmatpush.xpose.msra.mxu0 %v1808
    %2790 = vmatpush.xpose.msra.mxu0 %v1782
    %2791 = vmatpush.xpose.msra.mxu0 %v1756
    %2792 = vmatpush.xpose.msra.mxu0 %v1730
    %2793 = vmatpush.xpose.msra.mxu0 %v1704
    %2794 = vmatpush.xpose.msra.mxu0 %v1678
    %2795 = vmatpush.xpose.msra.mxu0 %v1652
    %2796 = vmatmul.f32.gmra.mxu0 %v1873
    %v2797 = vpop.f32.mrf.mxu0
    %v2798 = vadd.f32 %v2778, %v2797
    %2799 = vdwg.mxu0
    %2800 = vmatpush.xpose.msra.mxu0 0.0
    %2801 = vmatpush.xpose.msra.mxu0 0.0
    %2802 = vmatpush.xpose.msra.mxu0 0.0
    %2803 = vmatpush.xpose.msra.mxu0 0.0
    %2804 = vmatpush.xpose.msra.mxu0 0.0
    %2805 = vmatpush.xpose.msra.mxu0 0.0
    %2806 = vmatpush.xpose.msra.mxu0 0.0
    %2807 = vmatpush.xpose.msra.mxu0 0.0
    %2808 = vmatpush.xpose.msra.mxu0 %v1835
    %2809 = vmatpush.xpose.msra.mxu0 %v1809
    %2810 = vmatpush.xpose.msra.mxu0 %v1783
    %2811 = vmatpush.xpose.msra.mxu0 %v1757
    %2812 = vmatpush.xpose.msra.mxu0 %v1731
    %2813 = vmatpush.xpose.msra.mxu0 %v1705
    %2814 = vmatpush.xpose.msra.mxu0 %v1679
    %2815 = vmatpush.xpose.msra.mxu0 %v1653
    %2816 = vmatmul.f32.gmra.mxu0 %v1874
    %v2817 = vpop.f32.mrf.mxu0
    %v2818 = vadd.f32 %v2798, %v2817
    %2819 = vdwg.mxu0
    %2820 = vmatpush.xpose.msra.mxu0 0.0
    %2821 = vmatpush.xpose.msra.mxu0 0.0
    %2822 = vmatpush.xpose.msra.mxu0 0.0
    %2823 = vmatpush.xpose.msra.mxu0 0.0
    %2824 = vmatpush.xpose.msra.mxu0 0.0
    %2825 = vmatpush.xpose.msra.mxu0 0.0
    %2826 = vmatpush.xpose.msra.mxu0 0.0
    %2827 = vmatpush.xpose.msra.mxu0 0.0
    %2828 = vmatpush.xpose.msra.mxu0 %v1836
    %2829 = vmatpush.xpose.msra.mxu0 %v1810
    %2830 = vmatpush.xpose.msra.mxu0 %v1784
    %2831 = vmatpush.xpose.msra.mxu0 %v1758
    %2832 = vmatpush.xpose.msra.mxu0 %v1732
    %2833 = vmatpush.xpose.msra.mxu0 %v1706
    %2834 = vmatpush.xpose.msra.mxu0 %v1680
    %2835 = vmatpush.xpose.msra.mxu0 %v1654
    %2836 = vmatmul.f32.gmra.mxu0 %v1875
    %v2837 = vpop.f32.mrf.mxu0
    %v2838 = vadd.f32 %v2818, %v2837
    %2839 = vdwg.mxu0
    %2840 = vmatpush.xpose.msra.mxu0 0.0
    %2841 = vmatpush.xpose.msra.mxu0 0.0
    %2842 = vmatpush.xpose.msra.mxu0 0.0
    %2843 = vmatpush.xpose.msra.mxu0 0.0
    %2844 = vmatpush.xpose.msra.mxu0 0.0
    %2845 = vmatpush.xpose.msra.mxu0 0.0
    %2846 = vmatpush.xpose.msra.mxu0 0.0
    %2847 = vmatpush.xpose.msra.mxu0 0.0
    %2848 = vmatpush.xpose.msra.mxu0 %v1837
    %2849 = vmatpush.xpose.msra.mxu0 %v1811
    %2850 = vmatpush.xpose.msra.mxu0 %v1785
    %2851 = vmatpush.xpose.msra.mxu0 %v1759
    %2852 = vmatpush.xpose.msra.mxu0 %v1733
    %2853 = vmatpush.xpose.msra.mxu0 %v1707
    %2854 = vmatpush.xpose.msra.mxu0 %v1681
    %2855 = vmatpush.xpose.msra.mxu0 %v1655
    %2856 = vmatmul.f32.gmra.mxu0 %v1876
    %v2857 = vpop.f32.mrf.mxu0
    %v2858 = vadd.f32 %v2838, %v2857
    %2859 = vdwg.mxu0
    %2860 = vmatpush.xpose.msra.mxu0 0.0
    %2861 = vmatpush.xpose.msra.mxu0 0.0
    %2862 = vmatpush.xpose.msra.mxu0 0.0
    %2863 = vmatpush.xpose.msra.mxu0 0.0
    %2864 = vmatpush.xpose.msra.mxu0 0.0
    %2865 = vmatpush.xpose.msra.mxu0 0.0
    %2866 = vmatpush.xpose.msra.mxu0 0.0
    %2867 = vmatpush.xpose.msra.mxu0 0.0
    %2868 = vmatpush.xpose.msra.mxu0 %v1838
    %2869 = vmatpush.xpose.msra.mxu0 %v1812
    %2870 = vmatpush.xpose.msra.mxu0 %v1786
    %2871 = vmatpush.xpose.msra.mxu0 %v1760
    %2872 = vmatpush.xpose.msra.mxu0 %v1734
    %2873 = vmatpush.xpose.msra.mxu0 %v1708
    %2874 = vmatpush.xpose.msra.mxu0 %v1682
    %2875 = vmatpush.xpose.msra.mxu0 %v1656
    %2876 = vmatmul.f32.gmra.mxu0 %v1877
    %v2877 = vpop.f32.mrf.mxu0
    %v2878 = vadd.f32 %v2858, %v2877
    %2879 = vdwg.mxu0
    %2880 = vmatpush.xpose.msra.mxu0 0.0
    %2881 = vmatpush.xpose.msra.mxu0 0.0
    %2882 = vmatpush.xpose.msra.mxu0 0.0
    %2883 = vmatpush.xpose.msra.mxu0 0.0
    %2884 = vmatpush.xpose.msra.mxu0 0.0
    %2885 = vmatpush.xpose.msra.mxu0 0.0
    %2886 = vmatpush.xpose.msra.mxu0 0.0
    %2887 = vmatpush.xpose.msra.mxu0 0.0
    %2888 = vmatpush.xpose.msra.mxu0 %v1839
    %2889 = vmatpush.xpose.msra.mxu0 %v1813
    %2890 = vmatpush.xpose.msra.mxu0 %v1787
    %2891 = vmatpush.xpose.msra.mxu0 %v1761
    %2892 = vmatpush.xpose.msra.mxu0 %v1735
    %2893 = vmatpush.xpose.msra.mxu0 %v1709
    %2894 = vmatpush.xpose.msra.mxu0 %v1683
    %2895 = vmatpush.xpose.msra.mxu0 %v1657
    %2896 = vmatmul.f32.gmra.mxu0 %v1878
    %v2897 = vpop.f32.mrf.mxu0
    %v2898 = vadd.f32 %v2878, %v2897
    %2899 = vdwg.mxu0
    %2900 = vmatpush.xpose.msra.mxu0 0.0
    %2901 = vmatpush.xpose.msra.mxu0 0.0
    %2902 = vmatpush.xpose.msra.mxu0 0.0
    %2903 = vmatpush.xpose.msra.mxu0 0.0
    %2904 = vmatpush.xpose.msra.mxu0 0.0
    %2905 = vmatpush.xpose.msra.mxu0 0.0
    %2906 = vmatpush.xpose.msra.mxu0 0.0
    %2907 = vmatpush.xpose.msra.mxu0 0.0
    %2908 = vmatpush.xpose.msra.mxu0 %v1840
    %2909 = vmatpush.xpose.msra.mxu0 %v1814
    %2910 = vmatpush.xpose.msra.mxu0 %v1788
    %2911 = vmatpush.xpose.msra.mxu0 %v1762
    %2912 = vmatpush.xpose.msra.mxu0 %v1736
    %2913 = vmatpush.xpose.msra.mxu0 %v1710
    %2914 = vmatpush.xpose.msra.mxu0 %v1684
    %2915 = vmatpush.xpose.msra.mxu0 %v1658
    %2916 = vmatmul.f32.gmra.mxu0 %v1879
    %v2917 = vpop.f32.mrf.mxu0
    %v2918 = vadd.f32 %v2898, %v2917
    %2919 = vdwg.mxu0
    %2920 = vmatpush.xpose.msra.mxu0 0.0
    %2921 = vmatpush.xpose.msra.mxu0 0.0
    %2922 = vmatpush.xpose.msra.mxu0 0.0
    %2923 = vmatpush.xpose.msra.mxu0 0.0
    %2924 = vmatpush.xpose.msra.mxu0 0.0
    %2925 = vmatpush.xpose.msra.mxu0 0.0
    %2926 = vmatpush.xpose.msra.mxu0 0.0
    %2927 = vmatpush.xpose.msra.mxu0 0.0
    %2928 = vmatpush.xpose.msra.mxu0 %v1841
    %2929 = vmatpush.xpose.msra.mxu0 %v1815
    %2930 = vmatpush.xpose.msra.mxu0 %v1789
    %2931 = vmatpush.xpose.msra.mxu0 %v1763
    %2932 = vmatpush.xpose.msra.mxu0 %v1737
    %2933 = vmatpush.xpose.msra.mxu0 %v1711
    %2934 = vmatpush.xpose.msra.mxu0 %v1685
    %2935 = vmatpush.xpose.msra.mxu0 %v1659
    %2936 = vmatmul.f32.gmra.mxu0 %v1880
    %v2937 = vpop.f32.mrf.mxu0
    %v2938 = vadd.f32 %v2918, %v2937
    %2939 = vdwg.mxu0
    %2940 = vmatpush.xpose.msra.mxu0 0.0
    %2941 = vmatpush.xpose.msra.mxu0 0.0
    %2942 = vmatpush.xpose.msra.mxu0 0.0
    %2943 = vmatpush.xpose.msra.mxu0 0.0
    %2944 = vmatpush.xpose.msra.mxu0 0.0
    %2945 = vmatpush.xpose.msra.mxu0 0.0
    %2946 = vmatpush.xpose.msra.mxu0 0.0
    %2947 = vmatpush.xpose.msra.mxu0 0.0
    %2948 = vmatpush.xpose.msra.mxu0 %v1842
    %2949 = vmatpush.xpose.msra.mxu0 %v1816
    %2950 = vmatpush.xpose.msra.mxu0 %v1790
    %2951 = vmatpush.xpose.msra.mxu0 %v1764
    %2952 = vmatpush.xpose.msra.mxu0 %v1738
    %2953 = vmatpush.xpose.msra.mxu0 %v1712
    %2954 = vmatpush.xpose.msra.mxu0 %v1686
    %2955 = vmatpush.xpose.msra.mxu0 %v1660
    %2956 = vmatmul.f32.gmra.mxu0 %v1881
    %v2957 = vpop.f32.mrf.mxu0
    %v2958 = vadd.f32 %v2938, %v2957
    %2959 = vdwg.mxu0
    %2960 = vmatpush.xpose.msra.mxu0 0.0
    %2961 = vmatpush.xpose.msra.mxu0 0.0
    %2962 = vmatpush.xpose.msra.mxu0 0.0
    %2963 = vmatpush.xpose.msra.mxu0 0.0
    %2964 = vmatpush.xpose.msra.mxu0 0.0
    %2965 = vmatpush.xpose.msra.mxu0 0.0
    %2966 = vmatpush.xpose.msra.mxu0 0.0
    %2967 = vmatpush.xpose.msra.mxu0 0.0
    %2968 = vmatpush.xpose.msra.mxu0 %v1935
    %2969 = vmatpush.xpose.msra.mxu0 %v1932
    %2970 = vmatpush.xpose.msra.mxu0 %v1929
    %2971 = vmatpush.xpose.msra.mxu0 %v1926
    %2972 = vmatpush.xpose.msra.mxu0 %v1923
    %2973 = vmatpush.xpose.msra.mxu0 %v1920
    %2974 = vmatpush.xpose.msra.mxu0 %v1917
    %2975 = vmatpush.xpose.msra.mxu0 %v1914
    %2976 = vmatmul.f32.gmra.mxu0 %v2458
    %v2977 = vpop.f32.mrf.mxu0
    %v2978 = vadd.f32 %v2958, %v2977
    %2979 = vdwg.mxu0
    %v2980 = vrcp.pop %v2978
    %v2981 = vmul.f32 %v2978, %v2980
    %v2982 = vsub.f32 2.0, %v2981
    %v2983 = vmul.f32 %v2980, %v2982
    %v2984 = vpack.c.bf16 %v2983, %v2983
    %v2985 = vunpack.c.l.bf16 %v2984
    %v2986 = vsub.f32 %v2983, %v2985
    %v2988 = vsel %vm1909, %v2986, 0
    %2990 = vmatpush.msra.mxu0 0.0
    %2991 = vmatpush.msra.mxu0 0.0
    %2992 = vmatpush.msra.mxu0 0.0
    %2993 = vmatpush.msra.mxu0 0.0
    %2994 = vmatpush.msra.mxu0 0.0
    %2995 = vmatpush.msra.mxu0 0.0
    %2996 = vmatpush.msra.mxu0 0.0
    %2997 = vmatpush.msra.mxu0 0.0
    %2998 = vmatpush.msra.mxu0 %v1818
    %2999 = vmatpush.msra.mxu0 %v1792
    %3000 = vmatpush.msra.mxu0 %v1766
    %3001 = vmatpush.msra.mxu0 %v1740
    %3002 = vmatpush.msra.mxu0 %v1714
    %3003 = vmatpush.msra.mxu0 %v1688
    %3004 = vmatpush.msra.mxu0 %v1662
    %3005 = vmatpush.msra.mxu0 %v1636
    %3006 = vmatmul.f32.gmra.mxu0 %v2988
    %v3007 = vpop.f32.mrf.mxu0
    %v3008 = vadd.f32 0.0, %v3007
    %3009 = vdwg.mxu0
    %3010 = vmatpush.msra.mxu0 0.0
    %3011 = vmatpush.msra.mxu0 0.0
    %3012 = vmatpush.msra.mxu0 0.0
    %3013 = vmatpush.msra.mxu0 0.0
    %3014 = vmatpush.msra.mxu0 0.0
    %3015 = vmatpush.msra.mxu0 0.0
    %3016 = vmatpush.msra.mxu0 0.0
    %3017 = vmatpush.msra.mxu0 0.0
    %3018 = vmatpush.msra.mxu0 %v1819
    %3019 = vmatpush.msra.mxu0 %v1793
    %3020 = vmatpush.msra.mxu0 %v1767
    %3021 = vmatpush.msra.mxu0 %v1741
    %3022 = vmatpush.msra.mxu0 %v1715
    %3023 = vmatpush.msra.mxu0 %v1689
    %3024 = vmatpush.msra.mxu0 %v1663
    %3025 = vmatpush.msra.mxu0 %v1637
    %3026 = vmatmul.f32.gmra.mxu0 %v2988
    %v3027 = vpop.f32.mrf.mxu0
    %v3028 = vadd.f32 0.0, %v3027
    %3029 = vdwg.mxu0
    %3030 = vmatpush.msra.mxu0 0.0
    %3031 = vmatpush.msra.mxu0 0.0
    %3032 = vmatpush.msra.mxu0 0.0
    %3033 = vmatpush.msra.mxu0 0.0
    %3034 = vmatpush.msra.mxu0 0.0
    %3035 = vmatpush.msra.mxu0 0.0
    %3036 = vmatpush.msra.mxu0 0.0
    %3037 = vmatpush.msra.mxu0 0.0
    %3038 = vmatpush.msra.mxu0 %v1820
    %3039 = vmatpush.msra.mxu0 %v1794
    %3040 = vmatpush.msra.mxu0 %v1768
    %3041 = vmatpush.msra.mxu0 %v1742
    %3042 = vmatpush.msra.mxu0 %v1716
    %3043 = vmatpush.msra.mxu0 %v1690
    %3044 = vmatpush.msra.mxu0 %v1664
    %3045 = vmatpush.msra.mxu0 %v1638
    %3046 = vmatmul.f32.gmra.mxu0 %v2988
    %v3047 = vpop.f32.mrf.mxu0
    %v3048 = vadd.f32 0.0, %v3047
    %3049 = vdwg.mxu0
    %3050 = vmatpush.msra.mxu0 0.0
    %3051 = vmatpush.msra.mxu0 0.0
    %3052 = vmatpush.msra.mxu0 0.0
    %3053 = vmatpush.msra.mxu0 0.0
    %3054 = vmatpush.msra.mxu0 0.0
    %3055 = vmatpush.msra.mxu0 0.0
    %3056 = vmatpush.msra.mxu0 0.0
    %3057 = vmatpush.msra.mxu0 0.0
    %3058 = vmatpush.msra.mxu0 %v1821
    %3059 = vmatpush.msra.mxu0 %v1795
    %3060 = vmatpush.msra.mxu0 %v1769
    %3061 = vmatpush.msra.mxu0 %v1743
    %3062 = vmatpush.msra.mxu0 %v1717
    %3063 = vmatpush.msra.mxu0 %v1691
    %3064 = vmatpush.msra.mxu0 %v1665
    %3065 = vmatpush.msra.mxu0 %v1639
    %3066 = vmatmul.f32.gmra.mxu0 %v2988
    %v3067 = vpop.f32.mrf.mxu0
    %v3068 = vadd.f32 0.0, %v3067
    %3069 = vdwg.mxu0
    %3070 = vmatpush.msra.mxu0 0.0
    %3071 = vmatpush.msra.mxu0 0.0
    %3072 = vmatpush.msra.mxu0 0.0
    %3073 = vmatpush.msra.mxu0 0.0
    %3074 = vmatpush.msra.mxu0 0.0
    %3075 = vmatpush.msra.mxu0 0.0
    %3076 = vmatpush.msra.mxu0 0.0
    %3077 = vmatpush.msra.mxu0 0.0
    %3078 = vmatpush.msra.mxu0 %v1822
    %3079 = vmatpush.msra.mxu0 %v1796
    %3080 = vmatpush.msra.mxu0 %v1770
    %3081 = vmatpush.msra.mxu0 %v1744
    %3082 = vmatpush.msra.mxu0 %v1718
    %3083 = vmatpush.msra.mxu0 %v1692
    %3084 = vmatpush.msra.mxu0 %v1666
    %3085 = vmatpush.msra.mxu0 %v1640
    %3086 = vmatmul.f32.gmra.mxu0 %v2988
    %v3087 = vpop.f32.mrf.mxu0
    %v3088 = vadd.f32 0.0, %v3087
    %3089 = vdwg.mxu0
    %3090 = vmatpush.msra.mxu0 0.0
    %3091 = vmatpush.msra.mxu0 0.0
    %3092 = vmatpush.msra.mxu0 0.0
    %3093 = vmatpush.msra.mxu0 0.0
    %3094 = vmatpush.msra.mxu0 0.0
    %3095 = vmatpush.msra.mxu0 0.0
    %3096 = vmatpush.msra.mxu0 0.0
    %3097 = vmatpush.msra.mxu0 0.0
    %3098 = vmatpush.msra.mxu0 %v1823
    %3099 = vmatpush.msra.mxu0 %v1797
    %3100 = vmatpush.msra.mxu0 %v1771
    %3101 = vmatpush.msra.mxu0 %v1745
    %3102 = vmatpush.msra.mxu0 %v1719
    %3103 = vmatpush.msra.mxu0 %v1693
    %3104 = vmatpush.msra.mxu0 %v1667
    %3105 = vmatpush.msra.mxu0 %v1641
    %3106 = vmatmul.f32.gmra.mxu0 %v2988
    %v3107 = vpop.f32.mrf.mxu0
    %v3108 = vadd.f32 0.0, %v3107
    %3109 = vdwg.mxu0
    %3110 = vmatpush.msra.mxu0 0.0
    %3111 = vmatpush.msra.mxu0 0.0
    %3112 = vmatpush.msra.mxu0 0.0
    %3113 = vmatpush.msra.mxu0 0.0
    %3114 = vmatpush.msra.mxu0 0.0
    %3115 = vmatpush.msra.mxu0 0.0
    %3116 = vmatpush.msra.mxu0 0.0
    %3117 = vmatpush.msra.mxu0 0.0
    %3118 = vmatpush.msra.mxu0 %v1824
    %3119 = vmatpush.msra.mxu0 %v1798
    %3120 = vmatpush.msra.mxu0 %v1772
    %3121 = vmatpush.msra.mxu0 %v1746
    %3122 = vmatpush.msra.mxu0 %v1720
    %3123 = vmatpush.msra.mxu0 %v1694
    %3124 = vmatpush.msra.mxu0 %v1668
    %3125 = vmatpush.msra.mxu0 %v1642
    %3126 = vmatmul.f32.gmra.mxu0 %v2988
    %v3127 = vpop.f32.mrf.mxu0
    %v3128 = vadd.f32 0.0, %v3127
    %3129 = vdwg.mxu0
    %3130 = vmatpush.msra.mxu0 0.0
    %3131 = vmatpush.msra.mxu0 0.0
    %3132 = vmatpush.msra.mxu0 0.0
    %3133 = vmatpush.msra.mxu0 0.0
    %3134 = vmatpush.msra.mxu0 0.0
    %3135 = vmatpush.msra.mxu0 0.0
    %3136 = vmatpush.msra.mxu0 0.0
    %3137 = vmatpush.msra.mxu0 0.0
    %3138 = vmatpush.msra.mxu0 %v1825
    %3139 = vmatpush.msra.mxu0 %v1799
    %3140 = vmatpush.msra.mxu0 %v1773
    %3141 = vmatpush.msra.mxu0 %v1747
    %3142 = vmatpush.msra.mxu0 %v1721
    %3143 = vmatpush.msra.mxu0 %v1695
    %3144 = vmatpush.msra.mxu0 %v1669
    %3145 = vmatpush.msra.mxu0 %v1643
    %3146 = vmatmul.f32.gmra.mxu0 %v2988
    %v3147 = vpop.f32.mrf.mxu0
    %v3148 = vadd.f32 0.0, %v3147
    %3149 = vdwg.mxu0
    %3150 = vmatpush.msra.mxu0 0.0
    %3151 = vmatpush.msra.mxu0 0.0
    %3152 = vmatpush.msra.mxu0 0.0
    %3153 = vmatpush.msra.mxu0 0.0
    %3154 = vmatpush.msra.mxu0 0.0
    %3155 = vmatpush.msra.mxu0 0.0
    %3156 = vmatpush.msra.mxu0 0.0
    %3157 = vmatpush.msra.mxu0 0.0
    %3158 = vmatpush.msra.mxu0 %v1826
    %3159 = vmatpush.msra.mxu0 %v1800
    %3160 = vmatpush.msra.mxu0 %v1774
    %3161 = vmatpush.msra.mxu0 %v1748
    %3162 = vmatpush.msra.mxu0 %v1722
    %3163 = vmatpush.msra.mxu0 %v1696
    %3164 = vmatpush.msra.mxu0 %v1670
    %3165 = vmatpush.msra.mxu0 %v1644
    %3166 = vmatmul.f32.gmra.mxu0 %v2988
    %v3167 = vpop.f32.mrf.mxu0
    %v3168 = vadd.f32 0.0, %v3167
    %3169 = vdwg.mxu0
    %3170 = vmatpush.msra.mxu0 0.0
    %3171 = vmatpush.msra.mxu0 0.0
    %3172 = vmatpush.msra.mxu0 0.0
    %3173 = vmatpush.msra.mxu0 0.0
    %3174 = vmatpush.msra.mxu0 0.0
    %3175 = vmatpush.msra.mxu0 0.0
    %3176 = vmatpush.msra.mxu0 0.0
    %3177 = vmatpush.msra.mxu0 0.0
    %3178 = vmatpush.msra.mxu0 %v1827
    %3179 = vmatpush.msra.mxu0 %v1801
    %3180 = vmatpush.msra.mxu0 %v1775
    %3181 = vmatpush.msra.mxu0 %v1749
    %3182 = vmatpush.msra.mxu0 %v1723
    %3183 = vmatpush.msra.mxu0 %v1697
    %3184 = vmatpush.msra.mxu0 %v1671
    %3185 = vmatpush.msra.mxu0 %v1645
    %3186 = vmatmul.f32.gmra.mxu0 %v2988
    %v3187 = vpop.f32.mrf.mxu0
    %v3188 = vadd.f32 0.0, %v3187
    %3189 = vdwg.mxu0
    %3190 = vmatpush.msra.mxu0 0.0
    %3191 = vmatpush.msra.mxu0 0.0
    %3192 = vmatpush.msra.mxu0 0.0
    %3193 = vmatpush.msra.mxu0 0.0
    %3194 = vmatpush.msra.mxu0 0.0
    %3195 = vmatpush.msra.mxu0 0.0
    %3196 = vmatpush.msra.mxu0 0.0
    %3197 = vmatpush.msra.mxu0 0.0
    %3198 = vmatpush.msra.mxu0 %v1828
    %3199 = vmatpush.msra.mxu0 %v1802
    %3200 = vmatpush.msra.mxu0 %v1776
    %3201 = vmatpush.msra.mxu0 %v1750
    %3202 = vmatpush.msra.mxu0 %v1724
    %3203 = vmatpush.msra.mxu0 %v1698
    %3204 = vmatpush.msra.mxu0 %v1672
    %3205 = vmatpush.msra.mxu0 %v1646
    %3206 = vmatmul.f32.gmra.mxu0 %v2988
    %v3207 = vpop.f32.mrf.mxu0
    %v3208 = vadd.f32 0.0, %v3207
    %3209 = vdwg.mxu0
    %3210 = vmatpush.msra.mxu0 0.0
    %3211 = vmatpush.msra.mxu0 0.0
    %3212 = vmatpush.msra.mxu0 0.0
    %3213 = vmatpush.msra.mxu0 0.0
    %3214 = vmatpush.msra.mxu0 0.0
    %3215 = vmatpush.msra.mxu0 0.0
    %3216 = vmatpush.msra.mxu0 0.0
    %3217 = vmatpush.msra.mxu0 0.0
    %3218 = vmatpush.msra.mxu0 %v1829
    %3219 = vmatpush.msra.mxu0 %v1803
    %3220 = vmatpush.msra.mxu0 %v1777
    %3221 = vmatpush.msra.mxu0 %v1751
    %3222 = vmatpush.msra.mxu0 %v1725
    %3223 = vmatpush.msra.mxu0 %v1699
    %3224 = vmatpush.msra.mxu0 %v1673
    %3225 = vmatpush.msra.mxu0 %v1647
    %3226 = vmatmul.f32.gmra.mxu0 %v2988
    %v3227 = vpop.f32.mrf.mxu0
    %v3228 = vadd.f32 0.0, %v3227
    %3229 = vdwg.mxu0
    %3230 = vmatpush.msra.mxu0 0.0
    %3231 = vmatpush.msra.mxu0 0.0
    %3232 = vmatpush.msra.mxu0 0.0
    %3233 = vmatpush.msra.mxu0 0.0
    %3234 = vmatpush.msra.mxu0 0.0
    %3235 = vmatpush.msra.mxu0 0.0
    %3236 = vmatpush.msra.mxu0 0.0
    %3237 = vmatpush.msra.mxu0 0.0
    %3238 = vmatpush.msra.mxu0 %v1830
    %3239 = vmatpush.msra.mxu0 %v1804
    %3240 = vmatpush.msra.mxu0 %v1778
    %3241 = vmatpush.msra.mxu0 %v1752
    %3242 = vmatpush.msra.mxu0 %v1726
    %3243 = vmatpush.msra.mxu0 %v1700
    %3244 = vmatpush.msra.mxu0 %v1674
    %3245 = vmatpush.msra.mxu0 %v1648
    %3246 = vmatmul.f32.gmra.mxu0 %v2988
    %v3247 = vpop.f32.mrf.mxu0
    %v3248 = vadd.f32 0.0, %v3247
    %3249 = vdwg.mxu0
    %3250 = vmatpush.msra.mxu0 0.0
    %3251 = vmatpush.msra.mxu0 0.0
    %3252 = vmatpush.msra.mxu0 0.0
    %3253 = vmatpush.msra.mxu0 0.0
    %3254 = vmatpush.msra.mxu0 0.0
    %3255 = vmatpush.msra.mxu0 0.0
    %3256 = vmatpush.msra.mxu0 0.0
    %3257 = vmatpush.msra.mxu0 0.0
    %3258 = vmatpush.msra.mxu0 %v1831
    %3259 = vmatpush.msra.mxu0 %v1805
    %3260 = vmatpush.msra.mxu0 %v1779
    %3261 = vmatpush.msra.mxu0 %v1753
    %3262 = vmatpush.msra.mxu0 %v1727
    %3263 = vmatpush.msra.mxu0 %v1701
    %3264 = vmatpush.msra.mxu0 %v1675
    %3265 = vmatpush.msra.mxu0 %v1649
    %3266 = vmatmul.f32.gmra.mxu0 %v2988
    %v3267 = vpop.f32.mrf.mxu0
    %v3268 = vadd.f32 0.0, %v3267
    %3269 = vdwg.mxu0
    %3270 = vmatpush.msra.mxu0 0.0
    %3271 = vmatpush.msra.mxu0 0.0
    %3272 = vmatpush.msra.mxu0 0.0
    %3273 = vmatpush.msra.mxu0 0.0
    %3274 = vmatpush.msra.mxu0 0.0
    %3275 = vmatpush.msra.mxu0 0.0
    %3276 = vmatpush.msra.mxu0 0.0
    %3277 = vmatpush.msra.mxu0 0.0
    %3278 = vmatpush.msra.mxu0 %v1832
    %3279 = vmatpush.msra.mxu0 %v1806
    %3280 = vmatpush.msra.mxu0 %v1780
    %3281 = vmatpush.msra.mxu0 %v1754
    %3282 = vmatpush.msra.mxu0 %v1728
    %3283 = vmatpush.msra.mxu0 %v1702
    %3284 = vmatpush.msra.mxu0 %v1676
    %3285 = vmatpush.msra.mxu0 %v1650
    %3286 = vmatmul.f32.gmra.mxu0 %v2988
    %v3287 = vpop.f32.mrf.mxu0
    %v3288 = vadd.f32 0.0, %v3287
    %3289 = vdwg.mxu0
    %3290 = vmatpush.msra.mxu0 0.0
    %3291 = vmatpush.msra.mxu0 0.0
    %3292 = vmatpush.msra.mxu0 0.0
    %3293 = vmatpush.msra.mxu0 0.0
    %3294 = vmatpush.msra.mxu0 0.0
    %3295 = vmatpush.msra.mxu0 0.0
    %3296 = vmatpush.msra.mxu0 0.0
    %3297 = vmatpush.msra.mxu0 0.0
    %3298 = vmatpush.msra.mxu0 %v1833
    %3299 = vmatpush.msra.mxu0 %v1807
    %3300 = vmatpush.msra.mxu0 %v1781
    %3301 = vmatpush.msra.mxu0 %v1755
    %3302 = vmatpush.msra.mxu0 %v1729
    %3303 = vmatpush.msra.mxu0 %v1703
    %3304 = vmatpush.msra.mxu0 %v1677
    %3305 = vmatpush.msra.mxu0 %v1651
    %3306 = vmatmul.f32.gmra.mxu0 %v2988
    %v3307 = vpop.f32.mrf.mxu0
    %v3308 = vadd.f32 0.0, %v3307
    %3309 = vdwg.mxu0
    %3310 = vmatpush.msra.mxu0 0.0
    %3311 = vmatpush.msra.mxu0 0.0
    %3312 = vmatpush.msra.mxu0 0.0
    %3313 = vmatpush.msra.mxu0 0.0
    %3314 = vmatpush.msra.mxu0 0.0
    %3315 = vmatpush.msra.mxu0 0.0
    %3316 = vmatpush.msra.mxu0 0.0
    %3317 = vmatpush.msra.mxu0 0.0
    %3318 = vmatpush.msra.mxu0 %v1834
    %3319 = vmatpush.msra.mxu0 %v1808
    %3320 = vmatpush.msra.mxu0 %v1782
    %3321 = vmatpush.msra.mxu0 %v1756
    %3322 = vmatpush.msra.mxu0 %v1730
    %3323 = vmatpush.msra.mxu0 %v1704
    %3324 = vmatpush.msra.mxu0 %v1678
    %3325 = vmatpush.msra.mxu0 %v1652
    %3326 = vmatmul.f32.gmra.mxu0 %v2988
    %v3327 = vpop.f32.mrf.mxu0
    %v3328 = vadd.f32 0.0, %v3327
    %3329 = vdwg.mxu0
    %3330 = vmatpush.msra.mxu0 0.0
    %3331 = vmatpush.msra.mxu0 0.0
    %3332 = vmatpush.msra.mxu0 0.0
    %3333 = vmatpush.msra.mxu0 0.0
    %3334 = vmatpush.msra.mxu0 0.0
    %3335 = vmatpush.msra.mxu0 0.0
    %3336 = vmatpush.msra.mxu0 0.0
    %3337 = vmatpush.msra.mxu0 0.0
    %3338 = vmatpush.msra.mxu0 %v1835
    %3339 = vmatpush.msra.mxu0 %v1809
    %3340 = vmatpush.msra.mxu0 %v1783
    %3341 = vmatpush.msra.mxu0 %v1757
    %3342 = vmatpush.msra.mxu0 %v1731
    %3343 = vmatpush.msra.mxu0 %v1705
    %3344 = vmatpush.msra.mxu0 %v1679
    %3345 = vmatpush.msra.mxu0 %v1653
    %3346 = vmatmul.f32.gmra.mxu0 %v2988
    %v3347 = vpop.f32.mrf.mxu0
    %v3348 = vadd.f32 0.0, %v3347
    %3349 = vdwg.mxu0
    %3350 = vmatpush.msra.mxu0 0.0
    %3351 = vmatpush.msra.mxu0 0.0
    %3352 = vmatpush.msra.mxu0 0.0
    %3353 = vmatpush.msra.mxu0 0.0
    %3354 = vmatpush.msra.mxu0 0.0
    %3355 = vmatpush.msra.mxu0 0.0
    %3356 = vmatpush.msra.mxu0 0.0
    %3357 = vmatpush.msra.mxu0 0.0
    %3358 = vmatpush.msra.mxu0 %v1836
    %3359 = vmatpush.msra.mxu0 %v1810
    %3360 = vmatpush.msra.mxu0 %v1784
    %3361 = vmatpush.msra.mxu0 %v1758
    %3362 = vmatpush.msra.mxu0 %v1732
    %3363 = vmatpush.msra.mxu0 %v1706
    %3364 = vmatpush.msra.mxu0 %v1680
    %3365 = vmatpush.msra.mxu0 %v1654
    %3366 = vmatmul.f32.gmra.mxu0 %v2988
    %v3367 = vpop.f32.mrf.mxu0
    %v3368 = vadd.f32 0.0, %v3367
    %3369 = vdwg.mxu0
    %3370 = vmatpush.msra.mxu0 0.0
    %3371 = vmatpush.msra.mxu0 0.0
    %3372 = vmatpush.msra.mxu0 0.0
    %3373 = vmatpush.msra.mxu0 0.0
    %3374 = vmatpush.msra.mxu0 0.0
    %3375 = vmatpush.msra.mxu0 0.0
    %3376 = vmatpush.msra.mxu0 0.0
    %3377 = vmatpush.msra.mxu0 0.0
    %3378 = vmatpush.msra.mxu0 %v1837
    %3379 = vmatpush.msra.mxu0 %v1811
    %3380 = vmatpush.msra.mxu0 %v1785
    %3381 = vmatpush.msra.mxu0 %v1759
    %3382 = vmatpush.msra.mxu0 %v1733
    %3383 = vmatpush.msra.mxu0 %v1707
    %3384 = vmatpush.msra.mxu0 %v1681
    %3385 = vmatpush.msra.mxu0 %v1655
    %3386 = vmatmul.f32.gmra.mxu0 %v2988
    %v3387 = vpop.f32.mrf.mxu0
    %v3388 = vadd.f32 0.0, %v3387
    %3389 = vdwg.mxu0
    %3390 = vmatpush.msra.mxu0 0.0
    %3391 = vmatpush.msra.mxu0 0.0
    %3392 = vmatpush.msra.mxu0 0.0
    %3393 = vmatpush.msra.mxu0 0.0
    %3394 = vmatpush.msra.mxu0 0.0
    %3395 = vmatpush.msra.mxu0 0.0
    %3396 = vmatpush.msra.mxu0 0.0
    %3397 = vmatpush.msra.mxu0 0.0
    %3398 = vmatpush.msra.mxu0 %v1838
    %3399 = vmatpush.msra.mxu0 %v1812
    %3400 = vmatpush.msra.mxu0 %v1786
    %3401 = vmatpush.msra.mxu0 %v1760
    %3402 = vmatpush.msra.mxu0 %v1734
    %3403 = vmatpush.msra.mxu0 %v1708
    %3404 = vmatpush.msra.mxu0 %v1682
    %3405 = vmatpush.msra.mxu0 %v1656
    %3406 = vmatmul.f32.gmra.mxu0 %v2988
    %v3407 = vpop.f32.mrf.mxu0
    %v3408 = vadd.f32 0.0, %v3407
    %3409 = vdwg.mxu0
    %3410 = vmatpush.msra.mxu0 0.0
    %3411 = vmatpush.msra.mxu0 0.0
    %3412 = vmatpush.msra.mxu0 0.0
    %3413 = vmatpush.msra.mxu0 0.0
    %3414 = vmatpush.msra.mxu0 0.0
    %3415 = vmatpush.msra.mxu0 0.0
    %3416 = vmatpush.msra.mxu0 0.0
    %3417 = vmatpush.msra.mxu0 0.0
    %3418 = vmatpush.msra.mxu0 %v1839
    %3419 = vmatpush.msra.mxu0 %v1813
    %3420 = vmatpush.msra.mxu0 %v1787
    %3421 = vmatpush.msra.mxu0 %v1761
    %3422 = vmatpush.msra.mxu0 %v1735
    %3423 = vmatpush.msra.mxu0 %v1709
    %3424 = vmatpush.msra.mxu0 %v1683
    %3425 = vmatpush.msra.mxu0 %v1657
    %3426 = vmatmul.f32.gmra.mxu0 %v2988
    %v3427 = vpop.f32.mrf.mxu0
    %v3428 = vadd.f32 0.0, %v3427
    %3429 = vdwg.mxu0
    %3430 = vmatpush.msra.mxu0 0.0
    %3431 = vmatpush.msra.mxu0 0.0
    %3432 = vmatpush.msra.mxu0 0.0
    %3433 = vmatpush.msra.mxu0 0.0
    %3434 = vmatpush.msra.mxu0 0.0
    %3435 = vmatpush.msra.mxu0 0.0
    %3436 = vmatpush.msra.mxu0 0.0
    %3437 = vmatpush.msra.mxu0 0.0
    %3438 = vmatpush.msra.mxu0 %v1840
    %3439 = vmatpush.msra.mxu0 %v1814
    %3440 = vmatpush.msra.mxu0 %v1788
    %3441 = vmatpush.msra.mxu0 %v1762
    %3442 = vmatpush.msra.mxu0 %v1736
    %3443 = vmatpush.msra.mxu0 %v1710
    %3444 = vmatpush.msra.mxu0 %v1684
    %3445 = vmatpush.msra.mxu0 %v1658
    %3446 = vmatmul.f32.gmra.mxu0 %v2988
    %v3447 = vpop.f32.mrf.mxu0
    %v3448 = vadd.f32 0.0, %v3447
    %3449 = vdwg.mxu0
    %3450 = vmatpush.msra.mxu0 0.0
    %3451 = vmatpush.msra.mxu0 0.0
    %3452 = vmatpush.msra.mxu0 0.0
    %3453 = vmatpush.msra.mxu0 0.0
    %3454 = vmatpush.msra.mxu0 0.0
    %3455 = vmatpush.msra.mxu0 0.0
    %3456 = vmatpush.msra.mxu0 0.0
    %3457 = vmatpush.msra.mxu0 0.0
    %3458 = vmatpush.msra.mxu0 %v1841
    %3459 = vmatpush.msra.mxu0 %v1815
    %3460 = vmatpush.msra.mxu0 %v1789
    %3461 = vmatpush.msra.mxu0 %v1763
    %3462 = vmatpush.msra.mxu0 %v1737
    %3463 = vmatpush.msra.mxu0 %v1711
    %3464 = vmatpush.msra.mxu0 %v1685
    %3465 = vmatpush.msra.mxu0 %v1659
    %3466 = vmatmul.f32.gmra.mxu0 %v2988
    %v3467 = vpop.f32.mrf.mxu0
    %v3468 = vadd.f32 0.0, %v3467
    %3469 = vdwg.mxu0
    %3470 = vmatpush.msra.mxu0 0.0
    %3471 = vmatpush.msra.mxu0 0.0
    %3472 = vmatpush.msra.mxu0 0.0
    %3473 = vmatpush.msra.mxu0 0.0
    %3474 = vmatpush.msra.mxu0 0.0
    %3475 = vmatpush.msra.mxu0 0.0
    %3476 = vmatpush.msra.mxu0 0.0
    %3477 = vmatpush.msra.mxu0 0.0
    %3478 = vmatpush.msra.mxu0 %v1842
    %3479 = vmatpush.msra.mxu0 %v1816
    %3480 = vmatpush.msra.mxu0 %v1790
    %3481 = vmatpush.msra.mxu0 %v1764
    %3482 = vmatpush.msra.mxu0 %v1738
    %3483 = vmatpush.msra.mxu0 %v1712
    %3484 = vmatpush.msra.mxu0 %v1686
    %3485 = vmatpush.msra.mxu0 %v1660
    %3486 = vmatmul.f32.gmra.mxu0 %v2988
    %v3487 = vpop.f32.mrf.mxu0
    %v3488 = vadd.f32 0.0, %v3487
    %3489 = vdwg.mxu0
    %3490 = vmatpush.msra.mxu0 0.0
    %3491 = vmatpush.msra.mxu0 0.0
    %3492 = vmatpush.msra.mxu0 0.0
    %3493 = vmatpush.msra.mxu0 0.0
    %3494 = vmatpush.msra.mxu0 0.0
    %3495 = vmatpush.msra.mxu0 0.0
    %3496 = vmatpush.msra.mxu0 0.0
    %3497 = vmatpush.msra.mxu0 0.0
    %3498 = vmatpush.msra.mxu0 %v1843
    %3499 = vmatpush.msra.mxu0 %v1817
    %3500 = vmatpush.msra.mxu0 %v1791
    %3501 = vmatpush.msra.mxu0 %v1765
    %3502 = vmatpush.msra.mxu0 %v1739
    %3503 = vmatpush.msra.mxu0 %v1713
    %3504 = vmatpush.msra.mxu0 %v1687
    %3505 = vmatpush.msra.mxu0 %v1661
    %3506 = vmatmul.f32.gmra.mxu0 %v2988
    %v3507 = vpop.f32.mrf.mxu0
    %v3508 = vadd.f32 0.0, %v3507
    %3509 = vdwg.mxu0
    %v3511 = vsel %vm1909, %v2985, 0
    %3513 = vmatpush.msra.mxu0 0.0
    %3514 = vmatpush.msra.mxu0 0.0
    %3515 = vmatpush.msra.mxu0 0.0
    %3516 = vmatpush.msra.mxu0 0.0
    %3517 = vmatpush.msra.mxu0 0.0
    %3518 = vmatpush.msra.mxu0 0.0
    %3519 = vmatpush.msra.mxu0 0.0
    %3520 = vmatpush.msra.mxu0 0.0
    %3521 = vmatpush.msra.mxu0 %v1818
    %3522 = vmatpush.msra.mxu0 %v1792
    %3523 = vmatpush.msra.mxu0 %v1766
    %3524 = vmatpush.msra.mxu0 %v1740
    %3525 = vmatpush.msra.mxu0 %v1714
    %3526 = vmatpush.msra.mxu0 %v1688
    %3527 = vmatpush.msra.mxu0 %v1662
    %3528 = vmatpush.msra.mxu0 %v1636
    %3529 = vmatmul.f32.gmra.mxu0 %v3511
    %v3530 = vpop.f32.mrf.mxu0
    %v3531 = vadd.f32 %v3008, %v3530
    %3532 = vdwg.mxu0
    %3533 = vmatpush.msra.mxu0 0.0
    %3534 = vmatpush.msra.mxu0 0.0
    %3535 = vmatpush.msra.mxu0 0.0
    %3536 = vmatpush.msra.mxu0 0.0
    %3537 = vmatpush.msra.mxu0 0.0
    %3538 = vmatpush.msra.mxu0 0.0
    %3539 = vmatpush.msra.mxu0 0.0
    %3540 = vmatpush.msra.mxu0 0.0
    %3541 = vmatpush.msra.mxu0 %v1819
    %3542 = vmatpush.msra.mxu0 %v1793
    %3543 = vmatpush.msra.mxu0 %v1767
    %3544 = vmatpush.msra.mxu0 %v1741
    %3545 = vmatpush.msra.mxu0 %v1715
    %3546 = vmatpush.msra.mxu0 %v1689
    %3547 = vmatpush.msra.mxu0 %v1663
    %3548 = vmatpush.msra.mxu0 %v1637
    %3549 = vmatmul.f32.gmra.mxu0 %v3511
    %v3550 = vpop.f32.mrf.mxu0
    %v3551 = vadd.f32 %v3028, %v3550
    %3552 = vdwg.mxu0
    %3553 = vmatpush.msra.mxu0 0.0
    %3554 = vmatpush.msra.mxu0 0.0
    %3555 = vmatpush.msra.mxu0 0.0
    %3556 = vmatpush.msra.mxu0 0.0
    %3557 = vmatpush.msra.mxu0 0.0
    %3558 = vmatpush.msra.mxu0 0.0
    %3559 = vmatpush.msra.mxu0 0.0
    %3560 = vmatpush.msra.mxu0 0.0
    %3561 = vmatpush.msra.mxu0 %v1820
    %3562 = vmatpush.msra.mxu0 %v1794
    %3563 = vmatpush.msra.mxu0 %v1768
    %3564 = vmatpush.msra.mxu0 %v1742
    %3565 = vmatpush.msra.mxu0 %v1716
    %3566 = vmatpush.msra.mxu0 %v1690
    %3567 = vmatpush.msra.mxu0 %v1664
    %3568 = vmatpush.msra.mxu0 %v1638
    %3569 = vmatmul.f32.gmra.mxu0 %v3511
    %v3570 = vpop.f32.mrf.mxu0
    %v3571 = vadd.f32 %v3048, %v3570
    %3572 = vdwg.mxu0
    %3573 = vmatpush.msra.mxu0 0.0
    %3574 = vmatpush.msra.mxu0 0.0
    %3575 = vmatpush.msra.mxu0 0.0
    %3576 = vmatpush.msra.mxu0 0.0
    %3577 = vmatpush.msra.mxu0 0.0
    %3578 = vmatpush.msra.mxu0 0.0
    %3579 = vmatpush.msra.mxu0 0.0
    %3580 = vmatpush.msra.mxu0 0.0
    %3581 = vmatpush.msra.mxu0 %v1821
    %3582 = vmatpush.msra.mxu0 %v1795
    %3583 = vmatpush.msra.mxu0 %v1769
    %3584 = vmatpush.msra.mxu0 %v1743
    %3585 = vmatpush.msra.mxu0 %v1717
    %3586 = vmatpush.msra.mxu0 %v1691
    %3587 = vmatpush.msra.mxu0 %v1665
    %3588 = vmatpush.msra.mxu0 %v1639
    %3589 = vmatmul.f32.gmra.mxu0 %v3511
    %v3590 = vpop.f32.mrf.mxu0
    %v3591 = vadd.f32 %v3068, %v3590
    %3592 = vdwg.mxu0
    %3593 = vmatpush.msra.mxu0 0.0
    %3594 = vmatpush.msra.mxu0 0.0
    %3595 = vmatpush.msra.mxu0 0.0
    %3596 = vmatpush.msra.mxu0 0.0
    %3597 = vmatpush.msra.mxu0 0.0
    %3598 = vmatpush.msra.mxu0 0.0
    %3599 = vmatpush.msra.mxu0 0.0
    %3600 = vmatpush.msra.mxu0 0.0
    %3601 = vmatpush.msra.mxu0 %v1822
    %3602 = vmatpush.msra.mxu0 %v1796
    %3603 = vmatpush.msra.mxu0 %v1770
    %3604 = vmatpush.msra.mxu0 %v1744
    %3605 = vmatpush.msra.mxu0 %v1718
    %3606 = vmatpush.msra.mxu0 %v1692
    %3607 = vmatpush.msra.mxu0 %v1666
    %3608 = vmatpush.msra.mxu0 %v1640
    %3609 = vmatmul.f32.gmra.mxu0 %v3511
    %v3610 = vpop.f32.mrf.mxu0
    %v3611 = vadd.f32 %v3088, %v3610
    %3612 = vdwg.mxu0
    %3613 = vmatpush.msra.mxu0 0.0
    %3614 = vmatpush.msra.mxu0 0.0
    %3615 = vmatpush.msra.mxu0 0.0
    %3616 = vmatpush.msra.mxu0 0.0
    %3617 = vmatpush.msra.mxu0 0.0
    %3618 = vmatpush.msra.mxu0 0.0
    %3619 = vmatpush.msra.mxu0 0.0
    %3620 = vmatpush.msra.mxu0 0.0
    %3621 = vmatpush.msra.mxu0 %v1823
    %3622 = vmatpush.msra.mxu0 %v1797
    %3623 = vmatpush.msra.mxu0 %v1771
    %3624 = vmatpush.msra.mxu0 %v1745
    %3625 = vmatpush.msra.mxu0 %v1719
    %3626 = vmatpush.msra.mxu0 %v1693
    %3627 = vmatpush.msra.mxu0 %v1667
    %3628 = vmatpush.msra.mxu0 %v1641
    %3629 = vmatmul.f32.gmra.mxu0 %v3511
    %v3630 = vpop.f32.mrf.mxu0
    %v3631 = vadd.f32 %v3108, %v3630
    %3632 = vdwg.mxu0
    %3633 = vmatpush.msra.mxu0 0.0
    %3634 = vmatpush.msra.mxu0 0.0
    %3635 = vmatpush.msra.mxu0 0.0
    %3636 = vmatpush.msra.mxu0 0.0
    %3637 = vmatpush.msra.mxu0 0.0
    %3638 = vmatpush.msra.mxu0 0.0
    %3639 = vmatpush.msra.mxu0 0.0
    %3640 = vmatpush.msra.mxu0 0.0
    %3641 = vmatpush.msra.mxu0 %v1824
    %3642 = vmatpush.msra.mxu0 %v1798
    %3643 = vmatpush.msra.mxu0 %v1772
    %3644 = vmatpush.msra.mxu0 %v1746
    %3645 = vmatpush.msra.mxu0 %v1720
    %3646 = vmatpush.msra.mxu0 %v1694
    %3647 = vmatpush.msra.mxu0 %v1668
    %3648 = vmatpush.msra.mxu0 %v1642
    %3649 = vmatmul.f32.gmra.mxu0 %v3511
    %v3650 = vpop.f32.mrf.mxu0
    %v3651 = vadd.f32 %v3128, %v3650
    %3652 = vdwg.mxu0
    %3653 = vmatpush.msra.mxu0 0.0
    %3654 = vmatpush.msra.mxu0 0.0
    %3655 = vmatpush.msra.mxu0 0.0
    %3656 = vmatpush.msra.mxu0 0.0
    %3657 = vmatpush.msra.mxu0 0.0
    %3658 = vmatpush.msra.mxu0 0.0
    %3659 = vmatpush.msra.mxu0 0.0
    %3660 = vmatpush.msra.mxu0 0.0
    %3661 = vmatpush.msra.mxu0 %v1825
    %3662 = vmatpush.msra.mxu0 %v1799
    %3663 = vmatpush.msra.mxu0 %v1773
    %3664 = vmatpush.msra.mxu0 %v1747
    %3665 = vmatpush.msra.mxu0 %v1721
    %3666 = vmatpush.msra.mxu0 %v1695
    %3667 = vmatpush.msra.mxu0 %v1669
    %3668 = vmatpush.msra.mxu0 %v1643
    %3669 = vmatmul.f32.gmra.mxu0 %v3511
    %v3670 = vpop.f32.mrf.mxu0
    %v3671 = vadd.f32 %v3148, %v3670
    %3672 = vdwg.mxu0
    %3673 = vmatpush.msra.mxu0 0.0
    %3674 = vmatpush.msra.mxu0 0.0
    %3675 = vmatpush.msra.mxu0 0.0
    %3676 = vmatpush.msra.mxu0 0.0
    %3677 = vmatpush.msra.mxu0 0.0
    %3678 = vmatpush.msra.mxu0 0.0
    %3679 = vmatpush.msra.mxu0 0.0
    %3680 = vmatpush.msra.mxu0 0.0
    %3681 = vmatpush.msra.mxu0 %v1826
    %3682 = vmatpush.msra.mxu0 %v1800
    %3683 = vmatpush.msra.mxu0 %v1774
    %3684 = vmatpush.msra.mxu0 %v1748
    %3685 = vmatpush.msra.mxu0 %v1722
    %3686 = vmatpush.msra.mxu0 %v1696
    %3687 = vmatpush.msra.mxu0 %v1670
    %3688 = vmatpush.msra.mxu0 %v1644
    %3689 = vmatmul.f32.gmra.mxu0 %v3511
    %v3690 = vpop.f32.mrf.mxu0
    %v3691 = vadd.f32 %v3168, %v3690
    %3692 = vdwg.mxu0
    %3693 = vmatpush.msra.mxu0 0.0
    %3694 = vmatpush.msra.mxu0 0.0
    %3695 = vmatpush.msra.mxu0 0.0
    %3696 = vmatpush.msra.mxu0 0.0
    %3697 = vmatpush.msra.mxu0 0.0
    %3698 = vmatpush.msra.mxu0 0.0
    %3699 = vmatpush.msra.mxu0 0.0
    %3700 = vmatpush.msra.mxu0 0.0
    %3701 = vmatpush.msra.mxu0 %v1827
    %3702 = vmatpush.msra.mxu0 %v1801
    %3703 = vmatpush.msra.mxu0 %v1775
    %3704 = vmatpush.msra.mxu0 %v1749
    %3705 = vmatpush.msra.mxu0 %v1723
    %3706 = vmatpush.msra.mxu0 %v1697
    %3707 = vmatpush.msra.mxu0 %v1671
    %3708 = vmatpush.msra.mxu0 %v1645
    %3709 = vmatmul.f32.gmra.mxu0 %v3511
    %v3710 = vpop.f32.mrf.mxu0
    %v3711 = vadd.f32 %v3188, %v3710
    %3712 = vdwg.mxu0
    %3713 = vmatpush.msra.mxu0 0.0
    %3714 = vmatpush.msra.mxu0 0.0
    %3715 = vmatpush.msra.mxu0 0.0
    %3716 = vmatpush.msra.mxu0 0.0
    %3717 = vmatpush.msra.mxu0 0.0
    %3718 = vmatpush.msra.mxu0 0.0
    %3719 = vmatpush.msra.mxu0 0.0
    %3720 = vmatpush.msra.mxu0 0.0
    %3721 = vmatpush.msra.mxu0 %v1828
    %3722 = vmatpush.msra.mxu0 %v1802
    %3723 = vmatpush.msra.mxu0 %v1776
    %3724 = vmatpush.msra.mxu0 %v1750
    %3725 = vmatpush.msra.mxu0 %v1724
    %3726 = vmatpush.msra.mxu0 %v1698
    %3727 = vmatpush.msra.mxu0 %v1672
    %3728 = vmatpush.msra.mxu0 %v1646
    %3729 = vmatmul.f32.gmra.mxu0 %v3511
    %v3730 = vpop.f32.mrf.mxu0
    %v3731 = vadd.f32 %v3208, %v3730
    %3732 = vdwg.mxu0
    %3733 = vmatpush.msra.mxu0 0.0
    %3734 = vmatpush.msra.mxu0 0.0
    %3735 = vmatpush.msra.mxu0 0.0
    %3736 = vmatpush.msra.mxu0 0.0
    %3737 = vmatpush.msra.mxu0 0.0
    %3738 = vmatpush.msra.mxu0 0.0
    %3739 = vmatpush.msra.mxu0 0.0
    %3740 = vmatpush.msra.mxu0 0.0
    %3741 = vmatpush.msra.mxu0 %v1829
    %3742 = vmatpush.msra.mxu0 %v1803
    %3743 = vmatpush.msra.mxu0 %v1777
    %3744 = vmatpush.msra.mxu0 %v1751
    %3745 = vmatpush.msra.mxu0 %v1725
    %3746 = vmatpush.msra.mxu0 %v1699
    %3747 = vmatpush.msra.mxu0 %v1673
    %3748 = vmatpush.msra.mxu0 %v1647
    %3749 = vmatmul.f32.gmra.mxu0 %v3511
    %v3750 = vpop.f32.mrf.mxu0
    %v3751 = vadd.f32 %v3228, %v3750
    %3752 = vdwg.mxu0
    %3753 = vmatpush.msra.mxu0 0.0
    %3754 = vmatpush.msra.mxu0 0.0
    %3755 = vmatpush.msra.mxu0 0.0
    %3756 = vmatpush.msra.mxu0 0.0
    %3757 = vmatpush.msra.mxu0 0.0
    %3758 = vmatpush.msra.mxu0 0.0
    %3759 = vmatpush.msra.mxu0 0.0
    %3760 = vmatpush.msra.mxu0 0.0
    %3761 = vmatpush.msra.mxu0 %v1830
    %3762 = vmatpush.msra.mxu0 %v1804
    %3763 = vmatpush.msra.mxu0 %v1778
    %3764 = vmatpush.msra.mxu0 %v1752
    %3765 = vmatpush.msra.mxu0 %v1726
    %3766 = vmatpush.msra.mxu0 %v1700
    %3767 = vmatpush.msra.mxu0 %v1674
    %3768 = vmatpush.msra.mxu0 %v1648
    %3769 = vmatmul.f32.gmra.mxu0 %v3511
    %v3770 = vpop.f32.mrf.mxu0
    %v3771 = vadd.f32 %v3248, %v3770
    %3772 = vdwg.mxu0
    %3773 = vmatpush.msra.mxu0 0.0
    %3774 = vmatpush.msra.mxu0 0.0
    %3775 = vmatpush.msra.mxu0 0.0
    %3776 = vmatpush.msra.mxu0 0.0
    %3777 = vmatpush.msra.mxu0 0.0
    %3778 = vmatpush.msra.mxu0 0.0
    %3779 = vmatpush.msra.mxu0 0.0
    %3780 = vmatpush.msra.mxu0 0.0
    %3781 = vmatpush.msra.mxu0 %v1831
    %3782 = vmatpush.msra.mxu0 %v1805
    %3783 = vmatpush.msra.mxu0 %v1779
    %3784 = vmatpush.msra.mxu0 %v1753
    %3785 = vmatpush.msra.mxu0 %v1727
    %3786 = vmatpush.msra.mxu0 %v1701
    %3787 = vmatpush.msra.mxu0 %v1675
    %3788 = vmatpush.msra.mxu0 %v1649
    %3789 = vmatmul.f32.gmra.mxu0 %v3511
    %v3790 = vpop.f32.mrf.mxu0
    %v3791 = vadd.f32 %v3268, %v3790
    %3792 = vdwg.mxu0
    %3793 = vmatpush.msra.mxu0 0.0
    %3794 = vmatpush.msra.mxu0 0.0
    %3795 = vmatpush.msra.mxu0 0.0
    %3796 = vmatpush.msra.mxu0 0.0
    %3797 = vmatpush.msra.mxu0 0.0
    %3798 = vmatpush.msra.mxu0 0.0
    %3799 = vmatpush.msra.mxu0 0.0
    %3800 = vmatpush.msra.mxu0 0.0
    %3801 = vmatpush.msra.mxu0 %v1832
    %3802 = vmatpush.msra.mxu0 %v1806
    %3803 = vmatpush.msra.mxu0 %v1780
    %3804 = vmatpush.msra.mxu0 %v1754
    %3805 = vmatpush.msra.mxu0 %v1728
    %3806 = vmatpush.msra.mxu0 %v1702
    %3807 = vmatpush.msra.mxu0 %v1676
    %3808 = vmatpush.msra.mxu0 %v1650
    %3809 = vmatmul.f32.gmra.mxu0 %v3511
    %v3810 = vpop.f32.mrf.mxu0
    %v3811 = vadd.f32 %v3288, %v3810
    %3812 = vdwg.mxu0
    %3813 = vmatpush.msra.mxu0 0.0
    %3814 = vmatpush.msra.mxu0 0.0
    %3815 = vmatpush.msra.mxu0 0.0
    %3816 = vmatpush.msra.mxu0 0.0
    %3817 = vmatpush.msra.mxu0 0.0
    %3818 = vmatpush.msra.mxu0 0.0
    %3819 = vmatpush.msra.mxu0 0.0
    %3820 = vmatpush.msra.mxu0 0.0
    %3821 = vmatpush.msra.mxu0 %v1833
    %3822 = vmatpush.msra.mxu0 %v1807
    %3823 = vmatpush.msra.mxu0 %v1781
    %3824 = vmatpush.msra.mxu0 %v1755
    %3825 = vmatpush.msra.mxu0 %v1729
    %3826 = vmatpush.msra.mxu0 %v1703
    %3827 = vmatpush.msra.mxu0 %v1677
    %3828 = vmatpush.msra.mxu0 %v1651
    %3829 = vmatmul.f32.gmra.mxu0 %v3511
    %v3830 = vpop.f32.mrf.mxu0
    %v3831 = vadd.f32 %v3308, %v3830
    %3832 = vdwg.mxu0
    %3833 = vmatpush.msra.mxu0 0.0
    %3834 = vmatpush.msra.mxu0 0.0
    %3835 = vmatpush.msra.mxu0 0.0
    %3836 = vmatpush.msra.mxu0 0.0
    %3837 = vmatpush.msra.mxu0 0.0
    %3838 = vmatpush.msra.mxu0 0.0
    %3839 = vmatpush.msra.mxu0 0.0
    %3840 = vmatpush.msra.mxu0 0.0
    %3841 = vmatpush.msra.mxu0 %v1834
    %3842 = vmatpush.msra.mxu0 %v1808
    %3843 = vmatpush.msra.mxu0 %v1782
    %3844 = vmatpush.msra.mxu0 %v1756
    %3845 = vmatpush.msra.mxu0 %v1730
    %3846 = vmatpush.msra.mxu0 %v1704
    %3847 = vmatpush.msra.mxu0 %v1678
    %3848 = vmatpush.msra.mxu0 %v1652
    %3849 = vmatmul.f32.gmra.mxu0 %v3511
    %v3850 = vpop.f32.mrf.mxu0
    %v3851 = vadd.f32 %v3328, %v3850
    %3852 = vdwg.mxu0
    %3853 = vmatpush.msra.mxu0 0.0
    %3854 = vmatpush.msra.mxu0 0.0
    %3855 = vmatpush.msra.mxu0 0.0
    %3856 = vmatpush.msra.mxu0 0.0
    %3857 = vmatpush.msra.mxu0 0.0
    %3858 = vmatpush.msra.mxu0 0.0
    %3859 = vmatpush.msra.mxu0 0.0
    %3860 = vmatpush.msra.mxu0 0.0
    %3861 = vmatpush.msra.mxu0 %v1835
    %3862 = vmatpush.msra.mxu0 %v1809
    %3863 = vmatpush.msra.mxu0 %v1783
    %3864 = vmatpush.msra.mxu0 %v1757
    %3865 = vmatpush.msra.mxu0 %v1731
    %3866 = vmatpush.msra.mxu0 %v1705
    %3867 = vmatpush.msra.mxu0 %v1679
    %3868 = vmatpush.msra.mxu0 %v1653
    %3869 = vmatmul.f32.gmra.mxu0 %v3511
    %v3870 = vpop.f32.mrf.mxu0
    %v3871 = vadd.f32 %v3348, %v3870
    %3872 = vdwg.mxu0
    %3873 = vmatpush.msra.mxu0 0.0
    %3874 = vmatpush.msra.mxu0 0.0
    %3875 = vmatpush.msra.mxu0 0.0
    %3876 = vmatpush.msra.mxu0 0.0
    %3877 = vmatpush.msra.mxu0 0.0
    %3878 = vmatpush.msra.mxu0 0.0
    %3879 = vmatpush.msra.mxu0 0.0
    %3880 = vmatpush.msra.mxu0 0.0
    %3881 = vmatpush.msra.mxu0 %v1836
    %3882 = vmatpush.msra.mxu0 %v1810
    %3883 = vmatpush.msra.mxu0 %v1784
    %3884 = vmatpush.msra.mxu0 %v1758
    %3885 = vmatpush.msra.mxu0 %v1732
    %3886 = vmatpush.msra.mxu0 %v1706
    %3887 = vmatpush.msra.mxu0 %v1680
    %3888 = vmatpush.msra.mxu0 %v1654
    %3889 = vmatmul.f32.gmra.mxu0 %v3511
    %v3890 = vpop.f32.mrf.mxu0
    %v3891 = vadd.f32 %v3368, %v3890
    %3892 = vdwg.mxu0
    %3893 = vmatpush.msra.mxu0 0.0
    %3894 = vmatpush.msra.mxu0 0.0
    %3895 = vmatpush.msra.mxu0 0.0
    %3896 = vmatpush.msra.mxu0 0.0
    %3897 = vmatpush.msra.mxu0 0.0
    %3898 = vmatpush.msra.mxu0 0.0
    %3899 = vmatpush.msra.mxu0 0.0
    %3900 = vmatpush.msra.mxu0 0.0
    %3901 = vmatpush.msra.mxu0 %v1837
    %3902 = vmatpush.msra.mxu0 %v1811
    %3903 = vmatpush.msra.mxu0 %v1785
    %3904 = vmatpush.msra.mxu0 %v1759
    %3905 = vmatpush.msra.mxu0 %v1733
    %3906 = vmatpush.msra.mxu0 %v1707
    %3907 = vmatpush.msra.mxu0 %v1681
    %3908 = vmatpush.msra.mxu0 %v1655
    %3909 = vmatmul.f32.gmra.mxu0 %v3511
    %v3910 = vpop.f32.mrf.mxu0
    %v3911 = vadd.f32 %v3388, %v3910
    %3912 = vdwg.mxu0
    %3913 = vmatpush.msra.mxu0 0.0
    %3914 = vmatpush.msra.mxu0 0.0
    %3915 = vmatpush.msra.mxu0 0.0
    %3916 = vmatpush.msra.mxu0 0.0
    %3917 = vmatpush.msra.mxu0 0.0
    %3918 = vmatpush.msra.mxu0 0.0
    %3919 = vmatpush.msra.mxu0 0.0
    %3920 = vmatpush.msra.mxu0 0.0
    %3921 = vmatpush.msra.mxu0 %v1838
    %3922 = vmatpush.msra.mxu0 %v1812
    %3923 = vmatpush.msra.mxu0 %v1786
    %3924 = vmatpush.msra.mxu0 %v1760
    %3925 = vmatpush.msra.mxu0 %v1734
    %3926 = vmatpush.msra.mxu0 %v1708
    %3927 = vmatpush.msra.mxu0 %v1682
    %3928 = vmatpush.msra.mxu0 %v1656
    %3929 = vmatmul.f32.gmra.mxu0 %v3511
    %v3930 = vpop.f32.mrf.mxu0
    %v3931 = vadd.f32 %v3408, %v3930
    %3932 = vdwg.mxu0
    %3933 = vmatpush.msra.mxu0 0.0
    %3934 = vmatpush.msra.mxu0 0.0
    %3935 = vmatpush.msra.mxu0 0.0
    %3936 = vmatpush.msra.mxu0 0.0
    %3937 = vmatpush.msra.mxu0 0.0
    %3938 = vmatpush.msra.mxu0 0.0
    %3939 = vmatpush.msra.mxu0 0.0
    %3940 = vmatpush.msra.mxu0 0.0
    %3941 = vmatpush.msra.mxu0 %v1839
    %3942 = vmatpush.msra.mxu0 %v1813
    %3943 = vmatpush.msra.mxu0 %v1787
    %3944 = vmatpush.msra.mxu0 %v1761
    %3945 = vmatpush.msra.mxu0 %v1735
    %3946 = vmatpush.msra.mxu0 %v1709
    %3947 = vmatpush.msra.mxu0 %v1683
    %3948 = vmatpush.msra.mxu0 %v1657
    %3949 = vmatmul.f32.gmra.mxu0 %v3511
    %v3950 = vpop.f32.mrf.mxu0
    %v3951 = vadd.f32 %v3428, %v3950
    %3952 = vdwg.mxu0
    %3953 = vmatpush.msra.mxu0 0.0
    %3954 = vmatpush.msra.mxu0 0.0
    %3955 = vmatpush.msra.mxu0 0.0
    %3956 = vmatpush.msra.mxu0 0.0
    %3957 = vmatpush.msra.mxu0 0.0
    %3958 = vmatpush.msra.mxu0 0.0
    %3959 = vmatpush.msra.mxu0 0.0
    %3960 = vmatpush.msra.mxu0 0.0
    %3961 = vmatpush.msra.mxu0 %v1840
    %3962 = vmatpush.msra.mxu0 %v1814
    %3963 = vmatpush.msra.mxu0 %v1788
    %3964 = vmatpush.msra.mxu0 %v1762
    %3965 = vmatpush.msra.mxu0 %v1736
    %3966 = vmatpush.msra.mxu0 %v1710
    %3967 = vmatpush.msra.mxu0 %v1684
    %3968 = vmatpush.msra.mxu0 %v1658
    %3969 = vmatmul.f32.gmra.mxu0 %v3511
    %v3970 = vpop.f32.mrf.mxu0
    %v3971 = vadd.f32 %v3448, %v3970
    %3972 = vdwg.mxu0
    %3973 = vmatpush.msra.mxu0 0.0
    %3974 = vmatpush.msra.mxu0 0.0
    %3975 = vmatpush.msra.mxu0 0.0
    %3976 = vmatpush.msra.mxu0 0.0
    %3977 = vmatpush.msra.mxu0 0.0
    %3978 = vmatpush.msra.mxu0 0.0
    %3979 = vmatpush.msra.mxu0 0.0
    %3980 = vmatpush.msra.mxu0 0.0
    %3981 = vmatpush.msra.mxu0 %v1841
    %3982 = vmatpush.msra.mxu0 %v1815
    %3983 = vmatpush.msra.mxu0 %v1789
    %3984 = vmatpush.msra.mxu0 %v1763
    %3985 = vmatpush.msra.mxu0 %v1737
    %3986 = vmatpush.msra.mxu0 %v1711
    %3987 = vmatpush.msra.mxu0 %v1685
    %3988 = vmatpush.msra.mxu0 %v1659
    %3989 = vmatmul.f32.gmra.mxu0 %v3511
    %v3990 = vpop.f32.mrf.mxu0
    %v3991 = vadd.f32 %v3468, %v3990
    %3992 = vdwg.mxu0
    %3993 = vmatpush.msra.mxu0 0.0
    %3994 = vmatpush.msra.mxu0 0.0
    %3995 = vmatpush.msra.mxu0 0.0
    %3996 = vmatpush.msra.mxu0 0.0
    %3997 = vmatpush.msra.mxu0 0.0
    %3998 = vmatpush.msra.mxu0 0.0
    %3999 = vmatpush.msra.mxu0 0.0
    %4000 = vmatpush.msra.mxu0 0.0
    %4001 = vmatpush.msra.mxu0 %v1842
    %4002 = vmatpush.msra.mxu0 %v1816
    %4003 = vmatpush.msra.mxu0 %v1790
    %4004 = vmatpush.msra.mxu0 %v1764
    %4005 = vmatpush.msra.mxu0 %v1738
    %4006 = vmatpush.msra.mxu0 %v1712
    %4007 = vmatpush.msra.mxu0 %v1686
    %4008 = vmatpush.msra.mxu0 %v1660
    %4009 = vmatmul.f32.gmra.mxu0 %v3511
    %v4010 = vpop.f32.mrf.mxu0
    %v4011 = vadd.f32 %v3488, %v4010
    %4012 = vdwg.mxu0
    %4013 = vmatpush.msra.mxu0 0.0
    %4014 = vmatpush.msra.mxu0 0.0
    %4015 = vmatpush.msra.mxu0 0.0
    %4016 = vmatpush.msra.mxu0 0.0
    %4017 = vmatpush.msra.mxu0 0.0
    %4018 = vmatpush.msra.mxu0 0.0
    %4019 = vmatpush.msra.mxu0 0.0
    %4020 = vmatpush.msra.mxu0 0.0
    %4021 = vmatpush.msra.mxu0 %v1843
    %4022 = vmatpush.msra.mxu0 %v1817
    %4023 = vmatpush.msra.mxu0 %v1791
    %4024 = vmatpush.msra.mxu0 %v1765
    %4025 = vmatpush.msra.mxu0 %v1739
    %4026 = vmatpush.msra.mxu0 %v1713
    %4027 = vmatpush.msra.mxu0 %v1687
    %4028 = vmatpush.msra.mxu0 %v1661
    %4029 = vmatmul.f32.gmra.mxu0 %v3511
    %v4030 = vpop.f32.mrf.mxu0
    %v4031 = vadd.f32 %v3508, %v4030
    %4032 = vdwg.mxu0
    %v4033 = vmul.f32 %v909, %v3531
    %v4034 = vmul.f32 %v911, %v3551
    %v4035 = vmul.f32 %v913, %v3571
    %v4036 = vmul.f32 %v915, %v3591
    %v4037 = vmul.f32 %v917, %v3611
    %v4038 = vmul.f32 %v919, %v3631
    %v4039 = vmul.f32 %v921, %v3651
    %v4040 = vmul.f32 %v923, %v3671
    %v4041 = vmul.f32 %v925, %v3691
    %v4042 = vmul.f32 %v927, %v3711
    %v4043 = vmul.f32 %v929, %v3731
    %v4044 = vmul.f32 %v931, %v3751
    %v4045 = vmul.f32 %v933, %v3771
    %v4046 = vmul.f32 %v935, %v3791
    %v4047 = vmul.f32 %v937, %v3811
    %v4048 = vmul.f32 %v939, %v3831
    %v4049 = vmul.f32 %v941, %v3851
    %v4050 = vmul.f32 %v943, %v3871
    %v4051 = vmul.f32 %v945, %v3891
    %v4052 = vmul.f32 %v947, %v3911
    %v4053 = vmul.f32 %v949, %v3931
    %v4054 = vmul.f32 %v951, %v3951
    %v4055 = vmul.f32 %v953, %v3971
    %v4056 = vmul.f32 %v955, %v3991
    %v4057 = vmul.f32 %v957, %v4011
    %v4058 = vmul.f32 %v959, %v4031
    %v4085 = vrot.slane %v4034, 6
    %v4086 = vrot.slane %v4035, 4
    %v4087 = vrot.slane %v4036, 2
    %v4088 = vrot.slane %v4038, 6
    %v4089 = vrot.slane %v4039, 4
    %v4090 = vrot.slane %v4040, 2
    %v4091 = vrot.slane %v4042, 6
    %v4092 = vrot.slane %v4043, 4
    %v4093 = vrot.slane %v4044, 2
    %v4094 = vrot.slane %v4046, 6
    %v4095 = vrot.slane %v4047, 4
    %v4096 = vrot.slane %v4048, 2
    %v4097 = vrot.slane %v4050, 6
    %v4098 = vrot.slane %v4051, 4
    %v4099 = vrot.slane %v4052, 2
    %v4100 = vrot.slane %v4054, 6
    %v4101 = vrot.slane %v4055, 4
    %v4102 = vrot.slane %v4056, 2
    %v4103 = vrot.slane %v4058, 6
    %v4104 = vsel %vm827, %v4033, %v4085
    %vm4105 = vcmask 1045508
    %v4106 = vsel %vm4105, %v4086, %v4087
    %vm4107 = vcmask 1043456
    %v4108 = vsel %vm4107, %v4104, %v4106
    %v4109 = vsel %vm827, %v4037, %v4088
    %v4110 = vsel %vm4105, %v4089, %v4090
    %v4111 = vsel %vm4107, %v4109, %v4110
    %v4112 = vsel %vm827, %v4041, %v4091
    %v4113 = vsel %vm4105, %v4092, %v4093
    %v4114 = vsel %vm4107, %v4112, %v4113
    %v4115 = vsel %vm827, %v4045, %v4094
    %v4116 = vsel %vm4105, %v4095, %v4096
    %v4117 = vsel %vm4107, %v4115, %v4116
    %v4118 = vsel %vm827, %v4049, %v4097
    %v4119 = vsel %vm4105, %v4098, %v4099
    %v4120 = vsel %vm4107, %v4118, %v4119
    %v4121 = vsel %vm827, %v4053, %v4100
    %v4122 = vsel %vm4105, %v4101, %v4102
    %v4123 = vsel %vm4107, %v4121, %v4122
    %v4124 = vsel %vm827, %v4057, %v4103
    %4132 = vst [vmem:[#allocation10] sm:$0xff] %v4108
    %4133 = vst [vmem:[#allocation10 + $0x8] sm:$0xff] %v4111
    %4134 = vst [vmem:[#allocation10 + $0x10] sm:$0xff] %v4114
    %4135 = vst [vmem:[#allocation10 + $0x18] sm:$0xff] %v4117
    %4136 = vst [vmem:[#allocation10 + $0x20] sm:$0xff] %v4120
    %4137 = vst [vmem:[#allocation10 + $0x28] sm:$0xff] %v4123
    %vm4138 = vcmask 519170
    %vm4139 = vmor %vm4138, %vm827
    %4140 = vst.msk [vmem:[#allocation10 + $0x30] sm:$0xf] %vm4139, %v4124
    // Predicated region
    $region38: #{tpu_custom_call.1} parent=1 // pred_check
      _
    $region39: #{tpu_custom_call.1} parent=1 // pred_check_branch
      %4142 = sbr.rel (0) target = $region41
    $region40: #{tpu_custom_call.1} parent=1 // pred_region
      %4144 = vsyncadd [#allocation4], 0
      %s4146 = sshll.u32 [#allocation10], 4
      %s4147 = int_to_ptr.vmem [resolvable:$true] %s4146
      %s4148 = sshll.u32 %s5, 4
      %s4149 = int_to_ptr.hbm [resolvable:$true] %s4148
      %4151 = dma.vmem_to_hbm [thread:$0]  %s4147, 832, %s4149, [#allocation4]
    $region41: #{tpu_custom_call.1} parent=1 // pred_fallthru
      _
    // Predicated region
    $region42: #{tpu_custom_call.1} parent=1 // pred_check
      _
    $region43: #{tpu_custom_call.1} parent=1 // pred_check_branch
      %4153 = sbr.rel (0) target = $region45
    $region44: #{tpu_custom_call.1} parent=1 // pred_region
      %4155 = dma.done [#allocation4], 832
    $region45: #{tpu_custom_call.1} parent=1 // pred_fallthru
      _
    %4156 = vsyncpa [#allocation3], 1
    %4157 = vsyncpa [#allocation6], 1
    %4158 = vsyncpa [#allocation9], 1
    %4159 = vsyncpa [#allocation4], 1

</llo_original>
